<compile_context>
chip_gen: v7x
topology: tpu7x:2x2x1
jax: 0.10.0
libtpu: 0.0.40
codegen_flags: <defaults>
</compile_context>

<pallas_src>
import functools

import jax
import jax.numpy as jnp
from jax.experimental import pallas as pl
from jax.experimental.pallas import tpu as pltpu

EPS = 1e-5  # PyTorch nn.LayerNorm default eps

# Layout of the packed parameter-row slab (rows zero-padded to width max(F, Q)).
_ROW_ORDER = ("conv_b", "fc1_b", "fc2_b",
              "n1g", "n1b", "n2g", "n2b", "n3g", "n3b", "n4g", "n4b",
              "un_g", "un_b",
              "catt_b", "catt_q", "natt_b", "natt_q", "uatt_b", "uatt_q")
_ROW = {name: i for i, name in enumerate(_ROW_ORDER)}


def _layernorm(x, g, b):
    # PyTorch LayerNorm: biased variance over the last dim.
    mu = jnp.mean(x, axis=-1, keepdims=True)
    var = jnp.mean(jnp.square(x - mu), axis=-1, keepdims=True)
    return (x - mu) * jax.lax.rsqrt(var + EPS) * g + b


def _fused_user_encoder_kernel(u_tile, B, T, F_, Q,
                               we_ref, cat_ref, sub_ref,
                               convw_ref, fc1w_ref, fc2w_ref,
                               cattw_ref, nattw_ref, uattw_ref,
                               rows_ref, out_ref):
    f32 = jnp.float32
    K = convw_ref.shape[0]
    D = convw_ref.shape[1]
    N = u_tile * B                 # news items processed this grid step
    NT = N * T

    def row(name, n):
        i = _ROW[name]
        return rows_ref[i:i + 1, :n]                       # (1, n), static slice, f32

    def mm(a, w):                                          # MXU matmul, f32 accumulation
        return jnp.dot(a.astype(w.dtype), w, preferred_element_type=f32)

    # ---- title CNN as K shifted dots (+bias, ReLU); no im2col materialization ----
    we = we_ref[...]                                                      # (N, T+K-1, D)
    acc = mm(we[:, 0:T, :].reshape(NT, D), convw_ref[0])
    for k in range(1, K):
        acc = acc + mm(we[:, k:k + T, :].reshape(NT, D), convw_ref[k])
    act = jnp.maximum(acc + row("conv_b", F_), 0.0)                       # (N*T, F)

    # ---- word-level additive attention (softmax over T per news item) ----
    h = jnp.tanh(mm(act, cattw_ref[...]) + row("catt_b", Q))              # (N*T, Q)
    s = jnp.sum(h.reshape(N, T, Q) * row("catt_q", Q), axis=-1)           # (N, T)
    s = s - jnp.max(s, axis=-1, keepdims=True)
    e = jnp.exp(s)
    wts = e * pl.reciprocal(jnp.sum(e, axis=-1, keepdims=True), approx=True)
    word_rep = jnp.sum(wts[..., None] * act.reshape(N, T, F_), axis=1)    # (N, F)
    word_rep = _layernorm(word_rep, row("n3g", F_), row("n3b", F_))

    # ---- category / subcategory branches (batched over all news this step) ----
    cat_rep = _layernorm(mm(cat_ref[...], fc1w_ref[...]) + row("fc1_b", F_),
                         row("n1g", F_), row("n1b", F_))                  # (N, F)
    sub_rep = _layernorm(mm(sub_ref[...], fc2w_ref[...]) + row("fc2_b", F_),
                         row("n2g", F_), row("n2b", F_))                  # (N, F)

    # ---- additive attention over the 3 candidate vectors (per news item) ----
    nattw = nattw_ref[...]
    natt_b = row("natt_b", Q)
    natt_q = row("natt_q", Q)

    def score(x):
        hh = jnp.tanh(mm(x, nattw) + natt_b)                              # (N, Q)
        return jnp.sum(hh * natt_q, axis=-1, keepdims=True)               # (N, 1)

    s1, s2, s3 = score(word_rep), score(cat_rep), score(sub_rep)
    m = jnp.maximum(jnp.maximum(s1, s2), s3)
    e1, e2, e3 = jnp.exp(s1 - m), jnp.exp(s2 - m), jnp.exp(s3 - m)
    inv_z = pl.reciprocal(e1 + e2 + e3, approx=True)
    news_rep = (e1 * word_rep + e2 * cat_rep + e3 * sub_rep) * inv_z      # (N, F)
    news_rep = _layernorm(news_rep, row("n4g", F_), row("n4b", F_))

    # ---- user-level additive attention over the B news per user + final LN ----
    hu = jnp.tanh(mm(news_rep, uattw_ref[...]) + row("uatt_b", Q))        # (N, Q)
    su = jnp.sum(hu.reshape(u_tile, B, Q) * row("uatt_q", Q), axis=-1)    # (u_tile, B)
    su = su - jnp.max(su, axis=-1, keepdims=True)
    eu = jnp.exp(su)
    uw = eu * pl.reciprocal(jnp.sum(eu, axis=-1, keepdims=True), approx=True)
    user = jnp.sum(uw[..., None] * news_rep.reshape(u_tile, B, F_), axis=1)  # (u_tile, F)
    out_ref[...] = _layernorm(user, row("un_g", F_), row("un_b", F_))[None]


def _pick_u_tile(U, B, T):
    # Aim for >=256 matmul rows per step (fills v6e/v7x 2x256x256 MXU); the tile's
    # news count (u_tile*B) must be a multiple of 8 (sublane) unless it is the
    # whole array.
    want = max(1, 256 // max(B * T, 1))
    for c in range(min(U, want), 0, -1):
        if U % c == 0 and ((c * B) % 8 == 0 or c == U):
            return c
    return U


def user_encoder_forward(params, word_embedding, category_index, subcategory_index,
                         u_tile=None):
    """word_embedding: (U, B, T, D); category/subcategory_index: (U, B); returns (U, F).

    U = number of users (U=1 reproduces the original single-user PyTorch module),
    B = browsed news per user, T = title words, D = word dim.
    """
    U, B, T, D = word_embedding.shape
    K, Dw, F_ = params["conv_w"].shape
    assert Dw == D and K % 2 == 1
    Q = params["catt_w"].shape[-1]
    Dc = params["fc1_w"].shape[0]
    Ds = params["fc2_w"].shape[0]
    mxu_dtype = params["conv_w"].dtype

    if u_tile is None:
        u_tile = _pick_u_tile(U, B, T)
    assert U % u_tile == 0
    assert (u_tile * B) % 8 == 0 or u_tile == U, "u_tile*B must be a multiple of 8"

    # Glue (layout plumbing, not compute): embedding gathers + one symmetric pad of
    # the title axis (the Kx im2col inflation is gone; the conv is done in-kernel).
    pad = (K - 1) // 2
    T2 = T + K - 1
    we_pad = jnp.pad(word_embedding, ((0, 0), (0, 0), (pad, pad), (0, 0)))
    we_pad = we_pad.reshape(U * B, T2, D).astype(mxu_dtype)               # (U*B, T2, D)
    cat_emb = params["emb1"][category_index.reshape(-1)]                  # (U*B, Dc)
    sub_emb = params["emb2"][subcategory_index.reshape(-1)]               # (U*B, Ds)

    rows = params["rows"]                                                 # (19, max(F,Q))
    nrows, W = rows.shape

    kernel = functools.partial(_fused_user_encoder_kernel, u_tile, B, T, F_, Q)
    out = pl.pallas_call(
        kernel,
        out_shape=jax.ShapeDtypeStruct((U // u_tile, u_tile, F_), jnp.float32),
        grid_spec=pltpu.PrefetchScalarGridSpec(
            num_scalar_prefetch=0,
            grid=(U // u_tile,),
            in_specs=[
                # per-user-tile inputs (double-buffered across grid steps)
                pl.BlockSpec((u_tile * B, T2, D), lambda u: (u, 0, 0)),
                pl.BlockSpec((u_tile * B, Dc), lambda u: (u, 0)),
                pl.BlockSpec((u_tile * B, Ds), lambda u: (u, 0)),
                # weights + packed rows: constant block index -> resident in VMEM
                pl.BlockSpec((K, D, F_), lambda u: (0, 0, 0)),
                pl.BlockSpec((Dc, F_), lambda u: (0, 0)),
                pl.BlockSpec((Ds, F_), lambda u: (0, 0)),
                pl.BlockSpec((F_, Q), lambda u: (0, 0)),
                pl.BlockSpec((F_, Q), lambda u: (0, 0)),
                pl.BlockSpec((F_, Q), lambda u: (0, 0)),
                pl.BlockSpec((nrows, W), lambda u: (0, 0)),
            ],
            out_specs=pl.BlockSpec((1, u_tile, F_), lambda u: (u, 0, 0)),
        ),
        compiler_params=pltpu.CompilerParams(
            # v7x: shards the user axis across both TensorCores; no-op on v5e/v6e.
            dimension_semantics=("parallel",),
            # NOTE: at production NAML dims on v7x (64 MiB VMEM vs 128 MiB on
            # v5e/v6e) budget vmem_limit_bytes and re-sweep u_tile.
        ),
    )(we_pad, cat_emb, sub_emb,
      params["conv_w"], params["fc1_w"], params["fc2_w"],
      params["catt_w"], params["natt_w"], params["uatt_w"],
      rows)
    return out.reshape(U, F_)


def init_params(key, word_dim, category_dim, subcategory_dim, query_dim,
                num_filters, window, category_size, subcategory_size,
                mxu_dtype=jnp.bfloat16):
    # mxu_dtype=jnp.bfloat16 (default) pre-casts all MXU weight operands once;
    # pass jnp.float32 for exact parity with the f32 PyTorch reference.
    ks = jax.random.split(key, 17)
    f32 = jnp.float32
    rnd = lambda k, shape: jax.random.normal(k, shape, f32) * 0.1
    ones = lambda n: jnp.ones((1, n), f32)
    zeros = lambda n: jnp.zeros((1, n), f32)
    raw = dict(
        emb1=rnd(ks[0], (category_size, category_dim)),
        emb2=rnd(ks[1], (subcategory_size, subcategory_dim)),
        conv_w=rnd(ks[2], (window, word_dim, num_filters)),
        conv_b=rnd(ks[3], (1, num_filters)),
        fc1_w=rnd(ks[4], (category_dim, num_filters)),
        fc1_b=rnd(ks[5], (1, num_filters)),
        fc2_w=rnd(ks[6], (subcategory_dim, num_filters)),
        fc2_b=rnd(ks[7], (1, num_filters)),
        n1g=ones(num_filters), n1b=zeros(num_filters),
        n2g=ones(num_filters), n2b=zeros(num_filters),
        n3g=ones(num_filters), n3b=zeros(num_filters),
        n4g=ones(num_filters), n4b=zeros(num_filters),
        catt_w=rnd(ks[8], (num_filters, query_dim)),
        catt_b=rnd(ks[9], (1, query_dim)),
        catt_q=rnd(ks[10], (1, query_dim)),
        natt_w=rnd(ks[11], (num_filters, query_dim)),
        natt_b=rnd(ks[12], (1, query_dim)),
        natt_q=rnd(ks[13], (1, query_dim)),
        uatt_w=rnd(ks[14], (num_filters, query_dim)),
        uatt_b=rnd(ks[15], (1, query_dim)),
        uatt_q=rnd(ks[16], (1, query_dim)),
        un_g=ones(num_filters), un_b=zeros(num_filters),
    )
    # Pack every tiny (1,F)/(1,Q) parameter row ONCE -> single DMA, one kernel arg.
    W = max(num_filters, query_dim)
    rows = jnp.concatenate(
        [jnp.pad(raw[n], ((0, 0), (0, W - raw[n].shape[-1]))) for n in _ROW_ORDER],
        axis=0)                                                           # (19, W) f32
    params = {k: raw[k].astype(mxu_dtype)
              for k in ("emb1", "emb2", "conv_w", "fc1_w", "fc2_w",
                        "catt_w", "natt_w", "uatt_w")}
    params["rows"] = rows
    return params


if __name__ == "__main__":
    # small shapes: U users, B browsed news per user, T title words, D word dim
    U, B, T, D = 4, 8, 16, 32
    Dc, Ds, Q, F_, K = 16, 16, 32, 64, 3
    cat_size, subcat_size = 20, 30

    key = jax.random.PRNGKey(0)
    k1, k2, k3, kp = jax.random.split(key, 4)
    word_embedding = jax.random.normal(k1, (U, B, T, D), jnp.float32)
    category_index = jax.random.randint(k2, (U, B), 0, cat_size, jnp.int32)
    subcategory_index = jax.random.randint(k3, (U, B), 0, subcat_size, jnp.int32)

    params = init_params(kp, D, Dc, Ds, Q, F_, K, cat_size, subcat_size)

    out = user_encoder_forward(params, word_embedding, category_index, subcategory_index)
    out = jax.block_until_ready(out)
    assert out.shape == (U, F_) and out.dtype == jnp.float32
    assert bool(jnp.all(jnp.isfinite(out)))
    print("KERNEL_OK")
</pallas_src>

<mosaic_0001>
module attributes {stable_mosaic.version = 11 : i64} {
  func.func @_fused_user_encoder_kernel(%arg0: i32, %arg1: memref<16x18x32xbf16, #tpu.memory_space<vmem>>, %arg2: memref<16x16xbf16, #tpu.memory_space<vmem>>, %arg3: memref<16x16xbf16, #tpu.memory_space<vmem>>, %arg4: memref<3x32x64xbf16, #tpu.memory_space<vmem>>, %arg5: memref<16x64xbf16, #tpu.memory_space<vmem>>, %arg6: memref<16x64xbf16, #tpu.memory_space<vmem>>, %arg7: memref<64x32xbf16, #tpu.memory_space<vmem>>, %arg8: memref<64x32xbf16, #tpu.memory_space<vmem>>, %arg9: memref<64x32xbf16, #tpu.memory_space<vmem>>, %arg10: memref<19x64xf32, #tpu.memory_space<vmem>>, %arg11: memref<1x2x64xf32, #tpu.memory_space<vmem>>) attributes {dimension_semantics = [#tpu.dimension_semantics<parallel>], iteration_bounds = array<i64: 2>, scalar_prefetch = 0 : i64, scratch_operands = 0 : i64, tpu.core_type = #tpu.core_type<tc>, window_params = [{transform_indices = @transform_0, window_bounds = array<i64: 16, 18, 32>}, {transform_indices = @transform_1, window_bounds = array<i64: 16, 16>}, {transform_indices = @transform_2, window_bounds = array<i64: 16, 16>}, {pipeline_mode = #tpu.pipeline_mode<synchronous>, transform_indices = @transform_3, window_bounds = array<i64: 3, 32, 64>}, {pipeline_mode = #tpu.pipeline_mode<synchronous>, transform_indices = @transform_4, window_bounds = array<i64: 16, 64>}, {pipeline_mode = #tpu.pipeline_mode<synchronous>, transform_indices = @transform_5, window_bounds = array<i64: 16, 64>}, {pipeline_mode = #tpu.pipeline_mode<synchronous>, transform_indices = @transform_6, window_bounds = array<i64: 64, 32>}, {pipeline_mode = #tpu.pipeline_mode<synchronous>, transform_indices = @transform_7, window_bounds = array<i64: 64, 32>}, {pipeline_mode = #tpu.pipeline_mode<synchronous>, transform_indices = @transform_8, window_bounds = array<i64: 64, 32>}, {pipeline_mode = #tpu.pipeline_mode<synchronous>, transform_indices = @transform_9, window_bounds = array<i64: 19, 64>}, {transform_indices = @transform_10, window_bounds = array<i64: 1, 2, 64>}]} {
    %c0 = arith.constant 0 : index
    %c0_0 = arith.constant 0 : index
    %c0_1 = arith.constant 0 : index
    %0 = vector.load %arg1[%c0, %c0_0, %c0_1] : memref<16x18x32xbf16, #tpu.memory_space<vmem>>, vector<16x18x32xbf16>
    %1 = vector.extract_strided_slice %0 {offsets = [0, 0, 0], sizes = [16, 16, 32], strides = [1, 1, 1]} : vector<16x18x32xbf16> to vector<16x16x32xbf16>
    %2 = vector.shape_cast %1 : vector<16x16x32xbf16> to vector<256x32xbf16>
    %c0_2 = arith.constant 0 : index
    %c0_3 = arith.constant 0 : index
    %c0_4 = arith.constant 0 : index
    %3 = vector.load %arg4[%c0_2, %c0_3, %c0_4] : memref<3x32x64xbf16, #tpu.memory_space<vmem>>, vector<1x32x64xbf16>
    %4 = vector.shape_cast %3 : vector<1x32x64xbf16> to vector<32x64xbf16>
    %cst = arith.constant dense<0.000000e+00> : vector<256x64xf32>
    %5 = tpu.matmul %2, %4, %cst {dimension_numbers = #tpu.dot_dimension_numbers<[1], [0], [0], [1], [0, 0, 1, 1], [], []>} : vector<256x32xbf16>, vector<32x64xbf16>, vector<256x64xf32> -> vector<256x64xf32>
    %6 = vector.extract_strided_slice %0 {offsets = [0, 1, 0], sizes = [16, 16, 32], strides = [1, 1, 1]} : vector<16x18x32xbf16> to vector<16x16x32xbf16>
    %7 = vector.shape_cast %6 : vector<16x16x32xbf16> to vector<256x32xbf16>
    %c1 = arith.constant 1 : index
    %c0_5 = arith.constant 0 : index
    %c0_6 = arith.constant 0 : index
    %8 = vector.load %arg4[%c1, %c0_5, %c0_6] : memref<3x32x64xbf16, #tpu.memory_space<vmem>>, vector<1x32x64xbf16>
    %9 = vector.shape_cast %8 : vector<1x32x64xbf16> to vector<32x64xbf16>
    %cst_7 = arith.constant dense<0.000000e+00> : vector<256x64xf32>
    %10 = tpu.matmul %7, %9, %cst_7 {dimension_numbers = #tpu.dot_dimension_numbers<[1], [0], [0], [1], [0, 0, 1, 1], [], []>} : vector<256x32xbf16>, vector<32x64xbf16>, vector<256x64xf32> -> vector<256x64xf32>
    %11 = arith.addf %5, %10 : vector<256x64xf32>
    %12 = vector.extract_strided_slice %0 {offsets = [0, 2, 0], sizes = [16, 16, 32], strides = [1, 1, 1]} : vector<16x18x32xbf16> to vector<16x16x32xbf16>
    %13 = vector.shape_cast %12 : vector<16x16x32xbf16> to vector<256x32xbf16>
    %c2 = arith.constant 2 : index
    %c0_8 = arith.constant 0 : index
    %c0_9 = arith.constant 0 : index
    %14 = vector.load %arg4[%c2, %c0_8, %c0_9] : memref<3x32x64xbf16, #tpu.memory_space<vmem>>, vector<1x32x64xbf16>
    %15 = vector.shape_cast %14 : vector<1x32x64xbf16> to vector<32x64xbf16>
    %cst_10 = arith.constant dense<0.000000e+00> : vector<256x64xf32>
    %16 = tpu.matmul %13, %15, %cst_10 {dimension_numbers = #tpu.dot_dimension_numbers<[1], [0], [0], [1], [0, 0, 1, 1], [], []>} : vector<256x32xbf16>, vector<32x64xbf16>, vector<256x64xf32> -> vector<256x64xf32>
    %17 = arith.addf %11, %16 : vector<256x64xf32>
    %c0_11 = arith.constant 0 : index
    %c0_12 = arith.constant 0 : index
    %18 = vector.load %arg10[%c0_11, %c0_12] : memref<19x64xf32, #tpu.memory_space<vmem>>, vector<1x64xf32>
    %19 = vector.broadcast %18 : vector<1x64xf32> to vector<256x64xf32>
    %20 = arith.addf %17, %19 : vector<256x64xf32>
    %cst_13 = arith.constant 0.000000e+00 : f32
    %21 = vector.broadcast %cst_13 : f32 to vector<256x64xf32>
    %22 = arith.maximumf %20, %21 : vector<256x64xf32>
    %c0_14 = arith.constant 0 : index
    %c0_15 = arith.constant 0 : index
    %23 = vector.load %arg7[%c0_14, %c0_15] : memref<64x32xbf16, #tpu.memory_space<vmem>>, vector<64x32xbf16>
    %24 = arith.truncf %22 : vector<256x64xf32> to vector<256x64xbf16>
    %cst_16 = arith.constant dense<0.000000e+00> : vector<256x32xf32>
    %25 = tpu.matmul %24, %23, %cst_16 {dimension_numbers = #tpu.dot_dimension_numbers<[1], [0], [0], [1], [0, 0, 1, 1], [], []>} : vector<256x64xbf16>, vector<64x32xbf16>, vector<256x32xf32> -> vector<256x32xf32>
    %c13 = arith.constant 13 : index
    %c0_17 = arith.constant 0 : index
    %26 = vector.load %arg10[%c13, %c0_17] : memref<19x64xf32, #tpu.memory_space<vmem>>, vector<1x32xf32>
    %27 = vector.broadcast %26 : vector<1x32xf32> to vector<256x32xf32>
    %28 = arith.addf %25, %27 : vector<256x32xf32>
    %29 = math.tanh %28 : vector<256x32xf32>
    %30 = vector.shape_cast %29 : vector<256x32xf32> to vector<16x16x32xf32>
    %c14 = arith.constant 14 : index
    %c0_18 = arith.constant 0 : index
    %31 = vector.load %arg10[%c14, %c0_18] : memref<19x64xf32, #tpu.memory_space<vmem>>, vector<1x32xf32>
    %32 = vector.shape_cast %31 : vector<1x32xf32> to vector<1x1x32xf32>
    %33 = vector.broadcast %32 : vector<1x1x32xf32> to vector<16x16x32xf32>
    %34 = arith.mulf %30, %33 : vector<16x16x32xf32>
    %cst_19 = arith.constant dense<0.000000e+00> : vector<16x16xf32>
    %35 = vector.multi_reduction <add>, %34, %cst_19 [2] : vector<16x16x32xf32> to vector<16x16xf32>
    %cst_20 = arith.constant dense<0xFF800000> : vector<16xf32>
    %36 = vector.multi_reduction <maximumf>, %35, %cst_20 [1] : vector<16x16xf32> to vector<16xf32>
    %37 = vector.shape_cast %36 : vector<16xf32> to vector<16x1xf32>
    %38 = vector.broadcast %37 : vector<16x1xf32> to vector<16x16xf32>
    %39 = arith.subf %35, %38 : vector<16x16xf32>
    %40 = math.exp %39 : vector<16x16xf32>
    %cst_21 = arith.constant dense<0.000000e+00> : vector<16xf32>
    %41 = vector.multi_reduction <add>, %40, %cst_21 [1] : vector<16x16xf32> to vector<16xf32>
    %42 = vector.shape_cast %41 : vector<16xf32> to vector<16x1xf32>
    %43 = tpu.reciprocal %42 {approx = true} : vector<16x1xf32> -> vector<16x1xf32>
    %44 = vector.broadcast %43 : vector<16x1xf32> to vector<16x16xf32>
    %45 = arith.mulf %40, %44 : vector<16x16xf32>
    %46 = vector.shape_cast %45 : vector<16x16xf32> to vector<16x16x1xf32>
    %47 = vector.shape_cast %22 : vector<256x64xf32> to vector<16x16x64xf32>
    %48 = vector.broadcast %46 : vector<16x16x1xf32> to vector<16x16x64xf32>
    %49 = arith.mulf %48, %47 : vector<16x16x64xf32>
    %cst_22 = arith.constant dense<0.000000e+00> : vector<16x64xf32>
    %50 = vector.multi_reduction <add>, %49, %cst_22 [1] : vector<16x16x64xf32> to vector<16x64xf32>
    %c7 = arith.constant 7 : index
    %c0_23 = arith.constant 0 : index
    %51 = vector.load %arg10[%c7, %c0_23] : memref<19x64xf32, #tpu.memory_space<vmem>>, vector<1x64xf32>
    %c8 = arith.constant 8 : index
    %c0_24 = arith.constant 0 : index
    %52 = vector.load %arg10[%c8, %c0_24] : memref<19x64xf32, #tpu.memory_space<vmem>>, vector<1x64xf32>
    %cst_25 = arith.constant dense<0.000000e+00> : vector<16xf32>
    %53 = vector.multi_reduction <add>, %50, %cst_25 [1] : vector<16x64xf32> to vector<16xf32>
    %54 = vector.shape_cast %53 : vector<16xf32> to vector<16x1xf32>
    %cst_26 = arith.constant 6.400000e+01 : f32
    %55 = vector.broadcast %cst_26 : f32 to vector<16x1xf32>
    %56 = arith.divf %54, %55 : vector<16x1xf32>
    %57 = vector.broadcast %56 : vector<16x1xf32> to vector<16x64xf32>
    %58 = arith.subf %50, %57 : vector<16x64xf32>
    %59 = arith.mulf %58, %58 : vector<16x64xf32>
    %cst_27 = arith.constant dense<0.000000e+00> : vector<16xf32>
    %60 = vector.multi_reduction <add>, %59, %cst_27 [1] : vector<16x64xf32> to vector<16xf32>
    %61 = vector.shape_cast %60 : vector<16xf32> to vector<16x1xf32>
    %cst_28 = arith.constant 6.400000e+01 : f32
    %62 = vector.broadcast %cst_28 : f32 to vector<16x1xf32>
    %63 = arith.divf %61, %62 : vector<16x1xf32>
    %64 = vector.broadcast %56 : vector<16x1xf32> to vector<16x64xf32>
    %65 = arith.subf %50, %64 : vector<16x64xf32>
    %cst_29 = arith.constant 9.99999974E-6 : f32
    %66 = vector.broadcast %cst_29 : f32 to vector<16x1xf32>
    %67 = arith.addf %63, %66 : vector<16x1xf32>
    %68 = math.rsqrt %67 : vector<16x1xf32>
    %69 = vector.broadcast %68 : vector<16x1xf32> to vector<16x64xf32>
    %70 = arith.mulf %65, %69 : vector<16x64xf32>
    %71 = vector.broadcast %51 : vector<1x64xf32> to vector<16x64xf32>
    %72 = arith.mulf %70, %71 : vector<16x64xf32>
    %73 = vector.broadcast %52 : vector<1x64xf32> to vector<16x64xf32>
    %74 = arith.addf %72, %73 : vector<16x64xf32>
    %c0_30 = arith.constant 0 : index
    %c0_31 = arith.constant 0 : index
    %75 = vector.load %arg2[%c0_30, %c0_31] : memref<16x16xbf16, #tpu.memory_space<vmem>>, vector<16x16xbf16>
    %c0_32 = arith.constant 0 : index
    %c0_33 = arith.constant 0 : index
    %76 = vector.load %arg5[%c0_32, %c0_33] : memref<16x64xbf16, #tpu.memory_space<vmem>>, vector<16x64xbf16>
    %cst_34 = arith.constant dense<0.000000e+00> : vector<16x64xf32>
    %77 = tpu.matmul %75, %76, %cst_34 {dimension_numbers = #tpu.dot_dimension_numbers<[1], [0], [0], [1], [0, 0, 1, 1], [], []>} : vector<16x16xbf16>, vector<16x64xbf16>, vector<16x64xf32> -> vector<16x64xf32>
    %c1_35 = arith.constant 1 : index
    %c0_36 = arith.constant 0 : index
    %78 = vector.load %arg10[%c1_35, %c0_36] : memref<19x64xf32, #tpu.memory_space<vmem>>, vector<1x64xf32>
    %79 = vector.broadcast %78 : vector<1x64xf32> to vector<16x64xf32>
    %80 = arith.addf %77, %79 : vector<16x64xf32>
    %c3 = arith.constant 3 : index
    %c0_37 = arith.constant 0 : index
    %81 = vector.load %arg10[%c3, %c0_37] : memref<19x64xf32, #tpu.memory_space<vmem>>, vector<1x64xf32>
    %c4 = arith.constant 4 : index
    %c0_38 = arith.constant 0 : index
    %82 = vector.load %arg10[%c4, %c0_38] : memref<19x64xf32, #tpu.memory_space<vmem>>, vector<1x64xf32>
    %cst_39 = arith.constant dense<0.000000e+00> : vector<16xf32>
    %83 = vector.multi_reduction <add>, %80, %cst_39 [1] : vector<16x64xf32> to vector<16xf32>
    %84 = vector.shape_cast %83 : vector<16xf32> to vector<16x1xf32>
    %cst_40 = arith.constant 6.400000e+01 : f32
    %85 = vector.broadcast %cst_40 : f32 to vector<16x1xf32>
    %86 = arith.divf %84, %85 : vector<16x1xf32>
    %87 = vector.broadcast %86 : vector<16x1xf32> to vector<16x64xf32>
    %88 = arith.subf %80, %87 : vector<16x64xf32>
    %89 = arith.mulf %88, %88 : vector<16x64xf32>
    %cst_41 = arith.constant dense<0.000000e+00> : vector<16xf32>
    %90 = vector.multi_reduction <add>, %89, %cst_41 [1] : vector<16x64xf32> to vector<16xf32>
    %91 = vector.shape_cast %90 : vector<16xf32> to vector<16x1xf32>
    %cst_42 = arith.constant 6.400000e+01 : f32
    %92 = vector.broadcast %cst_42 : f32 to vector<16x1xf32>
    %93 = arith.divf %91, %92 : vector<16x1xf32>
    %94 = vector.broadcast %86 : vector<16x1xf32> to vector<16x64xf32>
    %95 = arith.subf %80, %94 : vector<16x64xf32>
    %cst_43 = arith.constant 9.99999974E-6 : f32
    %96 = vector.broadcast %cst_43 : f32 to vector<16x1xf32>
    %97 = arith.addf %93, %96 : vector<16x1xf32>
    %98 = math.rsqrt %97 : vector<16x1xf32>
    %99 = vector.broadcast %98 : vector<16x1xf32> to vector<16x64xf32>
    %100 = arith.mulf %95, %99 : vector<16x64xf32>
    %101 = vector.broadcast %81 : vector<1x64xf32> to vector<16x64xf32>
    %102 = arith.mulf %100, %101 : vector<16x64xf32>
    %103 = vector.broadcast %82 : vector<1x64xf32> to vector<16x64xf32>
    %104 = arith.addf %102, %103 : vector<16x64xf32>
    %c0_44 = arith.constant 0 : index
    %c0_45 = arith.constant 0 : index
    %105 = vector.load %arg3[%c0_44, %c0_45] : memref<16x16xbf16, #tpu.memory_space<vmem>>, vector<16x16xbf16>
    %c0_46 = arith.constant 0 : index
    %c0_47 = arith.constant 0 : index
    %106 = vector.load %arg6[%c0_46, %c0_47] : memref<16x64xbf16, #tpu.memory_space<vmem>>, vector<16x64xbf16>
    %cst_48 = arith.constant dense<0.000000e+00> : vector<16x64xf32>
    %107 = tpu.matmul %105, %106, %cst_48 {dimension_numbers = #tpu.dot_dimension_numbers<[1], [0], [0], [1], [0, 0, 1, 1], [], []>} : vector<16x16xbf16>, vector<16x64xbf16>, vector<16x64xf32> -> vector<16x64xf32>
    %c2_49 = arith.constant 2 : index
    %c0_50 = arith.constant 0 : index
    %108 = vector.load %arg10[%c2_49, %c0_50] : memref<19x64xf32, #tpu.memory_space<vmem>>, vector<1x64xf32>
    %109 = vector.broadcast %108 : vector<1x64xf32> to vector<16x64xf32>
    %110 = arith.addf %107, %109 : vector<16x64xf32>
    %c5 = arith.constant 5 : index
    %c0_51 = arith.constant 0 : index
    %111 = vector.load %arg10[%c5, %c0_51] : memref<19x64xf32, #tpu.memory_space<vmem>>, vector<1x64xf32>
    %c6 = arith.constant 6 : index
    %c0_52 = arith.constant 0 : index
    %112 = vector.load %arg10[%c6, %c0_52] : memref<19x64xf32, #tpu.memory_space<vmem>>, vector<1x64xf32>
    %cst_53 = arith.constant dense<0.000000e+00> : vector<16xf32>
    %113 = vector.multi_reduction <add>, %110, %cst_53 [1] : vector<16x64xf32> to vector<16xf32>
    %114 = vector.shape_cast %113 : vector<16xf32> to vector<16x1xf32>
    %cst_54 = arith.constant 6.400000e+01 : f32
    %115 = vector.broadcast %cst_54 : f32 to vector<16x1xf32>
    %116 = arith.divf %114, %115 : vector<16x1xf32>
    %117 = vector.broadcast %116 : vector<16x1xf32> to vector<16x64xf32>
    %118 = arith.subf %110, %117 : vector<16x64xf32>
    %119 = arith.mulf %118, %118 : vector<16x64xf32>
    %cst_55 = arith.constant dense<0.000000e+00> : vector<16xf32>
    %120 = vector.multi_reduction <add>, %119, %cst_55 [1] : vector<16x64xf32> to vector<16xf32>
    %121 = vector.shape_cast %120 : vector<16xf32> to vector<16x1xf32>
    %cst_56 = arith.constant 6.400000e+01 : f32
    %122 = vector.broadcast %cst_56 : f32 to vector<16x1xf32>
    %123 = arith.divf %121, %122 : vector<16x1xf32>
    %124 = vector.broadcast %116 : vector<16x1xf32> to vector<16x64xf32>
    %125 = arith.subf %110, %124 : vector<16x64xf32>
    %cst_57 = arith.constant 9.99999974E-6 : f32
    %126 = vector.broadcast %cst_57 : f32 to vector<16x1xf32>
    %127 = arith.addf %123, %126 : vector<16x1xf32>
    %128 = math.rsqrt %127 : vector<16x1xf32>
    %129 = vector.broadcast %128 : vector<16x1xf32> to vector<16x64xf32>
    %130 = arith.mulf %125, %129 : vector<16x64xf32>
    %131 = vector.broadcast %111 : vector<1x64xf32> to vector<16x64xf32>
    %132 = arith.mulf %130, %131 : vector<16x64xf32>
    %133 = vector.broadcast %112 : vector<1x64xf32> to vector<16x64xf32>
    %134 = arith.addf %132, %133 : vector<16x64xf32>
    %c0_58 = arith.constant 0 : index
    %c0_59 = arith.constant 0 : index
    %135 = vector.load %arg8[%c0_58, %c0_59] : memref<64x32xbf16, #tpu.memory_space<vmem>>, vector<64x32xbf16>
    %c15 = arith.constant 15 : index
    %c0_60 = arith.constant 0 : index
    %136 = vector.load %arg10[%c15, %c0_60] : memref<19x64xf32, #tpu.memory_space<vmem>>, vector<1x32xf32>
    %c16 = arith.constant 16 : index
    %c0_61 = arith.constant 0 : index
    %137 = vector.load %arg10[%c16, %c0_61] : memref<19x64xf32, #tpu.memory_space<vmem>>, vector<1x32xf32>
    %138 = arith.truncf %74 : vector<16x64xf32> to vector<16x64xbf16>
    %cst_62 = arith.constant dense<0.000000e+00> : vector<16x32xf32>
    %139 = tpu.matmul %138, %135, %cst_62 {dimension_numbers = #tpu.dot_dimension_numbers<[1], [0], [0], [1], [0, 0, 1, 1], [], []>} : vector<16x64xbf16>, vector<64x32xbf16>, vector<16x32xf32> -> vector<16x32xf32>
    %140 = vector.broadcast %136 : vector<1x32xf32> to vector<16x32xf32>
    %141 = arith.addf %139, %140 : vector<16x32xf32>
    %142 = math.tanh %141 : vector<16x32xf32>
    %143 = vector.broadcast %137 : vector<1x32xf32> to vector<16x32xf32>
    %144 = arith.mulf %142, %143 : vector<16x32xf32>
    %cst_63 = arith.constant dense<0.000000e+00> : vector<16xf32>
    %145 = vector.multi_reduction <add>, %144, %cst_63 [1] : vector<16x32xf32> to vector<16xf32>
    %146 = vector.shape_cast %145 : vector<16xf32> to vector<16x1xf32>
    %147 = arith.truncf %104 : vector<16x64xf32> to vector<16x64xbf16>
    %cst_64 = arith.constant dense<0.000000e+00> : vector<16x32xf32>
    %148 = tpu.matmul %147, %135, %cst_64 {dimension_numbers = #tpu.dot_dimension_numbers<[1], [0], [0], [1], [0, 0, 1, 1], [], []>} : vector<16x64xbf16>, vector<64x32xbf16>, vector<16x32xf32> -> vector<16x32xf32>
    %149 = vector.broadcast %136 : vector<1x32xf32> to vector<16x32xf32>
    %150 = arith.addf %148, %149 : vector<16x32xf32>
    %151 = math.tanh %150 : vector<16x32xf32>
    %152 = vector.broadcast %137 : vector<1x32xf32> to vector<16x32xf32>
    %153 = arith.mulf %151, %152 : vector<16x32xf32>
    %cst_65 = arith.constant dense<0.000000e+00> : vector<16xf32>
    %154 = vector.multi_reduction <add>, %153, %cst_65 [1] : vector<16x32xf32> to vector<16xf32>
    %155 = vector.shape_cast %154 : vector<16xf32> to vector<16x1xf32>
    %156 = arith.truncf %134 : vector<16x64xf32> to vector<16x64xbf16>
    %cst_66 = arith.constant dense<0.000000e+00> : vector<16x32xf32>
    %157 = tpu.matmul %156, %135, %cst_66 {dimension_numbers = #tpu.dot_dimension_numbers<[1], [0], [0], [1], [0, 0, 1, 1], [], []>} : vector<16x64xbf16>, vector<64x32xbf16>, vector<16x32xf32> -> vector<16x32xf32>
    %158 = vector.broadcast %136 : vector<1x32xf32> to vector<16x32xf32>
    %159 = arith.addf %157, %158 : vector<16x32xf32>
    %160 = math.tanh %159 : vector<16x32xf32>
    %161 = vector.broadcast %137 : vector<1x32xf32> to vector<16x32xf32>
    %162 = arith.mulf %160, %161 : vector<16x32xf32>
    %cst_67 = arith.constant dense<0.000000e+00> : vector<16xf32>
    %163 = vector.multi_reduction <add>, %162, %cst_67 [1] : vector<16x32xf32> to vector<16xf32>
    %164 = vector.shape_cast %163 : vector<16xf32> to vector<16x1xf32>
    %165 = arith.maximumf %146, %155 : vector<16x1xf32>
    %166 = arith.maximumf %165, %164 : vector<16x1xf32>
    %167 = arith.subf %146, %166 : vector<16x1xf32>
    %168 = math.exp %167 : vector<16x1xf32>
    %169 = arith.subf %155, %166 : vector<16x1xf32>
    %170 = math.exp %169 : vector<16x1xf32>
    %171 = arith.subf %164, %166 : vector<16x1xf32>
    %172 = math.exp %171 : vector<16x1xf32>
    %173 = arith.addf %168, %170 : vector<16x1xf32>
    %174 = arith.addf %173, %172 : vector<16x1xf32>
    %175 = tpu.reciprocal %174 {approx = true} : vector<16x1xf32> -> vector<16x1xf32>
    %176 = vector.broadcast %168 : vector<16x1xf32> to vector<16x64xf32>
    %177 = arith.mulf %176, %74 : vector<16x64xf32>
    %178 = vector.broadcast %170 : vector<16x1xf32> to vector<16x64xf32>
    %179 = arith.mulf %178, %104 : vector<16x64xf32>
    %180 = arith.addf %177, %179 : vector<16x64xf32>
    %181 = vector.broadcast %172 : vector<16x1xf32> to vector<16x64xf32>
    %182 = arith.mulf %181, %134 : vector<16x64xf32>
    %183 = arith.addf %180, %182 : vector<16x64xf32>
    %184 = vector.broadcast %175 : vector<16x1xf32> to vector<16x64xf32>
    %185 = arith.mulf %183, %184 : vector<16x64xf32>
    %c9 = arith.constant 9 : index
    %c0_68 = arith.constant 0 : index
    %186 = vector.load %arg10[%c9, %c0_68] : memref<19x64xf32, #tpu.memory_space<vmem>>, vector<1x64xf32>
    %c10 = arith.constant 10 : index
    %c0_69 = arith.constant 0 : index
    %187 = vector.load %arg10[%c10, %c0_69] : memref<19x64xf32, #tpu.memory_space<vmem>>, vector<1x64xf32>
    %cst_70 = arith.constant dense<0.000000e+00> : vector<16xf32>
    %188 = vector.multi_reduction <add>, %185, %cst_70 [1] : vector<16x64xf32> to vector<16xf32>
    %189 = vector.shape_cast %188 : vector<16xf32> to vector<16x1xf32>
    %cst_71 = arith.constant 6.400000e+01 : f32
    %190 = vector.broadcast %cst_71 : f32 to vector<16x1xf32>
    %191 = arith.divf %189, %190 : vector<16x1xf32>
    %192 = vector.broadcast %191 : vector<16x1xf32> to vector<16x64xf32>
    %193 = arith.subf %185, %192 : vector<16x64xf32>
    %194 = arith.mulf %193, %193 : vector<16x64xf32>
    %cst_72 = arith.constant dense<0.000000e+00> : vector<16xf32>
    %195 = vector.multi_reduction <add>, %194, %cst_72 [1] : vector<16x64xf32> to vector<16xf32>
    %196 = vector.shape_cast %195 : vector<16xf32> to vector<16x1xf32>
    %cst_73 = arith.constant 6.400000e+01 : f32
    %197 = vector.broadcast %cst_73 : f32 to vector<16x1xf32>
    %198 = arith.divf %196, %197 : vector<16x1xf32>
    %199 = vector.broadcast %191 : vector<16x1xf32> to vector<16x64xf32>
    %200 = arith.subf %185, %199 : vector<16x64xf32>
    %cst_74 = arith.constant 9.99999974E-6 : f32
    %201 = vector.broadcast %cst_74 : f32 to vector<16x1xf32>
    %202 = arith.addf %198, %201 : vector<16x1xf32>
    %203 = math.rsqrt %202 : vector<16x1xf32>
    %204 = vector.broadcast %203 : vector<16x1xf32> to vector<16x64xf32>
    %205 = arith.mulf %200, %204 : vector<16x64xf32>
    %206 = vector.broadcast %186 : vector<1x64xf32> to vector<16x64xf32>
    %207 = arith.mulf %205, %206 : vector<16x64xf32>
    %208 = vector.broadcast %187 : vector<1x64xf32> to vector<16x64xf32>
    %209 = arith.addf %207, %208 : vector<16x64xf32>
    %c0_75 = arith.constant 0 : index
    %c0_76 = arith.constant 0 : index
    %210 = vector.load %arg9[%c0_75, %c0_76] : memref<64x32xbf16, #tpu.memory_space<vmem>>, vector<64x32xbf16>
    %211 = arith.truncf %209 : vector<16x64xf32> to vector<16x64xbf16>
    %cst_77 = arith.constant dense<0.000000e+00> : vector<16x32xf32>
    %212 = tpu.matmul %211, %210, %cst_77 {dimension_numbers = #tpu.dot_dimension_numbers<[1], [0], [0], [1], [0, 0, 1, 1], [], []>} : vector<16x64xbf16>, vector<64x32xbf16>, vector<16x32xf32> -> vector<16x32xf32>
    %c17 = arith.constant 17 : index
    %c0_78 = arith.constant 0 : index
    %213 = vector.load %arg10[%c17, %c0_78] : memref<19x64xf32, #tpu.memory_space<vmem>>, vector<1x32xf32>
    %214 = vector.broadcast %213 : vector<1x32xf32> to vector<16x32xf32>
    %215 = arith.addf %212, %214 : vector<16x32xf32>
    %216 = math.tanh %215 : vector<16x32xf32>
    %217 = vector.shape_cast %216 : vector<16x32xf32> to vector<2x8x32xf32>
    %c18 = arith.constant 18 : index
    %c0_79 = arith.constant 0 : index
    %218 = vector.load %arg10[%c18, %c0_79] : memref<19x64xf32, #tpu.memory_space<vmem>>, vector<1x32xf32>
    %219 = vector.shape_cast %218 : vector<1x32xf32> to vector<1x1x32xf32>
    %220 = vector.broadcast %219 : vector<1x1x32xf32> to vector<2x8x32xf32>
    %221 = arith.mulf %217, %220 : vector<2x8x32xf32>
    %cst_80 = arith.constant dense<0.000000e+00> : vector<2x8xf32>
    %222 = vector.multi_reduction <add>, %221, %cst_80 [2] : vector<2x8x32xf32> to vector<2x8xf32>
    %cst_81 = arith.constant dense<0xFF800000> : vector<2xf32>
    %223 = vector.multi_reduction <maximumf>, %222, %cst_81 [1] : vector<2x8xf32> to vector<2xf32>
    %224 = vector.shape_cast %223 : vector<2xf32> to vector<2x1xf32>
    %225 = vector.broadcast %224 : vector<2x1xf32> to vector<2x8xf32>
    %226 = arith.subf %222, %225 : vector<2x8xf32>
    %227 = math.exp %226 : vector<2x8xf32>
    %cst_82 = arith.constant dense<0.000000e+00> : vector<2xf32>
    %228 = vector.multi_reduction <add>, %227, %cst_82 [1] : vector<2x8xf32> to vector<2xf32>
    %229 = vector.shape_cast %228 : vector<2xf32> to vector<2x1xf32>
    %230 = tpu.reciprocal %229 {approx = true} : vector<2x1xf32> -> vector<2x1xf32>
    %231 = vector.broadcast %230 : vector<2x1xf32> to vector<2x8xf32>
    %232 = arith.mulf %227, %231 : vector<2x8xf32>
    %233 = vector.shape_cast %232 : vector<2x8xf32> to vector<2x8x1xf32>
    %234 = vector.shape_cast %209 : vector<16x64xf32> to vector<2x8x64xf32>
    %235 = vector.broadcast %233 : vector<2x8x1xf32> to vector<2x8x64xf32>
    %236 = arith.mulf %235, %234 : vector<2x8x64xf32>
    %cst_83 = arith.constant dense<0.000000e+00> : vector<2x64xf32>
    %237 = vector.multi_reduction <add>, %236, %cst_83 [1] : vector<2x8x64xf32> to vector<2x64xf32>
    %c11 = arith.constant 11 : index
    %c0_84 = arith.constant 0 : index
    %238 = vector.load %arg10[%c11, %c0_84] : memref<19x64xf32, #tpu.memory_space<vmem>>, vector<1x64xf32>
    %c12 = arith.constant 12 : index
    %c0_85 = arith.constant 0 : index
    %239 = vector.load %arg10[%c12, %c0_85] : memref<19x64xf32, #tpu.memory_space<vmem>>, vector<1x64xf32>
    %cst_86 = arith.constant dense<0.000000e+00> : vector<2xf32>
    %240 = vector.multi_reduction <add>, %237, %cst_86 [1] : vector<2x64xf32> to vector<2xf32>
    %241 = vector.shape_cast %240 : vector<2xf32> to vector<2x1xf32>
    %cst_87 = arith.constant 6.400000e+01 : f32
    %242 = vector.broadcast %cst_87 : f32 to vector<2x1xf32>
    %243 = arith.divf %241, %242 : vector<2x1xf32>
    %244 = vector.broadcast %243 : vector<2x1xf32> to vector<2x64xf32>
    %245 = arith.subf %237, %244 : vector<2x64xf32>
    %246 = arith.mulf %245, %245 : vector<2x64xf32>
    %cst_88 = arith.constant dense<0.000000e+00> : vector<2xf32>
    %247 = vector.multi_reduction <add>, %246, %cst_88 [1] : vector<2x64xf32> to vector<2xf32>
    %248 = vector.shape_cast %247 : vector<2xf32> to vector<2x1xf32>
    %cst_89 = arith.constant 6.400000e+01 : f32
    %249 = vector.broadcast %cst_89 : f32 to vector<2x1xf32>
    %250 = arith.divf %248, %249 : vector<2x1xf32>
    %251 = vector.broadcast %243 : vector<2x1xf32> to vector<2x64xf32>
    %252 = arith.subf %237, %251 : vector<2x64xf32>
    %cst_90 = arith.constant 9.99999974E-6 : f32
    %253 = vector.broadcast %cst_90 : f32 to vector<2x1xf32>
    %254 = arith.addf %250, %253 : vector<2x1xf32>
    %255 = math.rsqrt %254 : vector<2x1xf32>
    %256 = vector.broadcast %255 : vector<2x1xf32> to vector<2x64xf32>
    %257 = arith.mulf %252, %256 : vector<2x64xf32>
    %258 = vector.broadcast %238 : vector<1x64xf32> to vector<2x64xf32>
    %259 = arith.mulf %257, %258 : vector<2x64xf32>
    %260 = vector.broadcast %239 : vector<1x64xf32> to vector<2x64xf32>
    %261 = arith.addf %259, %260 : vector<2x64xf32>
    %262 = vector.shape_cast %261 : vector<2x64xf32> to vector<1x2x64xf32>
    %c0_91 = arith.constant 0 : index
    %c0_92 = arith.constant 0 : index
    %c0_93 = arith.constant 0 : index
    %263 = vector.load %arg11[%c0_91, %c0_92, %c0_93] : memref<1x2x64xf32, #tpu.memory_space<vmem>>, vector<1x2x64xf32>
    tpu.vector_store %arg11[%c0_91, %c0_92, %c0_93], %262 {strides = array<i32>} : memref<1x2x64xf32, #tpu.memory_space<vmem>>, vector<1x2x64xf32>,
    return
  }
  func.func @transform_0(%arg0: i32) -> (i32, i32, i32) {
    %c0_i32 = arith.constant 0 : i32
    %c0_i32_0 = arith.constant 0 : i32
    %c0_i32_1 = arith.constant 0 : i32
    return %arg0, %c0_i32, %c0_i32_0 : i32, i32, i32
  }
  func.func @transform_1(%arg0: i32) -> (i32, i32) {
    %c0_i32 = arith.constant 0 : i32
    %c0_i32_0 = arith.constant 0 : i32
    return %arg0, %c0_i32 : i32, i32
  }
  func.func @transform_2(%arg0: i32) -> (i32, i32) {
    %c0_i32 = arith.constant 0 : i32
    %c0_i32_0 = arith.constant 0 : i32
    return %arg0, %c0_i32 : i32, i32
  }
  func.func @transform_3(%arg0: i32) -> (i32, i32, i32) {
    %c0_i32 = arith.constant 0 : i32
    %c0_i32_0 = arith.constant 0 : i32
    %c0_i32_1 = arith.constant 0 : i32
    %c0_i32_2 = arith.constant 0 : i32
    return %c0_i32, %c0_i32_0, %c0_i32_1 : i32, i32, i32
  }
  func.func @transform_4(%arg0: i32) -> (i32, i32) {
    %c0_i32 = arith.constant 0 : i32
    %c0_i32_0 = arith.constant 0 : i32
    %c0_i32_1 = arith.constant 0 : i32
    return %c0_i32, %c0_i32_0 : i32, i32
  }
  func.func @transform_5(%arg0: i32) -> (i32, i32) {
    %c0_i32 = arith.constant 0 : i32
    %c0_i32_0 = arith.constant 0 : i32
    %c0_i32_1 = arith.constant 0 : i32
    return %c0_i32, %c0_i32_0 : i32, i32
  }
  func.func @transform_6(%arg0: i32) -> (i32, i32) {
    %c0_i32 = arith.constant 0 : i32
    %c0_i32_0 = arith.constant 0 : i32
    %c0_i32_1 = arith.constant 0 : i32
    return %c0_i32, %c0_i32_0 : i32, i32
  }
  func.func @transform_7(%arg0: i32) -> (i32, i32) {
    %c0_i32 = arith.constant 0 : i32
    %c0_i32_0 = arith.constant 0 : i32
    %c0_i32_1 = arith.constant 0 : i32
    return %c0_i32, %c0_i32_0 : i32, i32
  }
  func.func @transform_8(%arg0: i32) -> (i32, i32) {
    %c0_i32 = arith.constant 0 : i32
    %c0_i32_0 = arith.constant 0 : i32
    %c0_i32_1 = arith.constant 0 : i32
    return %c0_i32, %c0_i32_0 : i32, i32
  }
  func.func @transform_9(%arg0: i32) -> (i32, i32) {
    %c0_i32 = arith.constant 0 : i32
    %c0_i32_0 = arith.constant 0 : i32
    %c0_i32_1 = arith.constant 0 : i32
    return %c0_i32, %c0_i32_0 : i32, i32
  }
  func.func @transform_10(%arg0: i32) -> (i32, i32, i32) {
    %c0_i32 = arith.constant 0 : i32
    %c0_i32_0 = arith.constant 0 : i32
    %c0_i32_1 = arith.constant 0 : i32
    return %arg0, %c0_i32, %c0_i32_0 : i32, i32, i32
  }
}

</mosaic_0001>

<llo_original>
// kernel: tpu_custom_call.1
$region0: #{tpu_custom_call.1}
  #allocation0 [shape = 'u32[]', space=smem, size = 0x4, offset = 0x4, fixed_abs, tag = 'smem constant byte address 0x4 - core index']
  #allocation1 [shape = 'u32[144,128]{1,0:T(1,128)}', space=vmem, size = 0x12000, scoped, tag = 'internal scratch']
  %s0 = inlined_call_operand.vmem [shape: bf16[32,18,32], index: 0, kind: input, shape index: {}]
  %s1 = inlined_call_operand.vmem [shape: bf16[32,16], index: 1, kind: input, shape index: {}]
  %s2 = inlined_call_operand.vmem [shape: bf16[32,16], index: 2, kind: input, shape index: {}]
  %s3 = inlined_call_operand.vmem [shape: bf16[3,32,64], index: 3, kind: input, shape index: {}]
  %s4 = inlined_call_operand.vmem [shape: bf16[16,64], index: 4, kind: input, shape index: {}]
  %s5 = inlined_call_operand.vmem [shape: bf16[16,64], index: 5, kind: input, shape index: {}]
  %s6 = inlined_call_operand.vmem [shape: bf16[64,32], index: 6, kind: input, shape index: {}]
  %s7 = inlined_call_operand.vmem [shape: bf16[64,32], index: 7, kind: input, shape index: {}]
  %s8 = inlined_call_operand.vmem [shape: bf16[64,32], index: 8, kind: input, shape index: {}]
  %s9 = inlined_call_operand.vmem [shape: f32[19,64], index: 9, kind: input, shape index: {}]
  %s10 = inlined_call_operand.hbm [shape: f32[2,2,64], index: 10, kind: output, shape index: {}]
  %s11 = sld [smem:[#allocation0]]
  $region73: #{tpu_custom_call.1} parent=0
    _
  %s13 = ssub.s32 1, %s11
  %s14 = scalar_select 0, %s13, %s11
  $region1: #{tpu_custom_call.1} parent=0
    #allocation2 [shape = 'u8[2048]{0}', space=vmem, size = 0x800, scoped, tag = 'output window, operand 0']
    #allocation3 [shape = 's32[2]{0}', space=sflag, size = 0x8, scoped, tag = 'scoped memory for tpu_custom_call.1']
    %15 = vsyncpa [#allocation3], 0
    %s16 = scalar_lea.sflag [#allocation3], 1
    %17 = vsyncpa %s16, 0
    loop: start=0, step=1, limit=4
    $region2: #{tpu_custom_call.1} parent=1 // loop_pre_header
      _
    $region3: #{tpu_custom_call.1} parent=1 // loop_header
      %s19 = sphi 0, %s23
      %p20 = scmp.ge.s32.totalorder %s19, 4
      %s29 = sphi 0, %s31
      %s32 = sphi 0, %s29
      %s33 = sphi 0, %s32
      %s49 = sphi 0, %s33
      %s55 = sphi 0, %s57
      %s58 = sphi 0, %s55
      %s59 = sphi 0, %s58
      %s75 = sphi 0, %s59
      %s81 = sphi 0, %s83
      %s84 = sphi 0, %s81
      %s85 = sphi 0, %s84
      %s101 = sphi 0, %s85
      %s105 = sphi 0, %s105
      %s107 = sphi 0, %s105
      %s108 = sphi 0, %s107
      %s122 = sphi 0, %s108
      %s126 = sphi 0, %s126
      %s128 = sphi 0, %s126
      %s129 = sphi 0, %s128
      %s143 = sphi 0, %s129
      %s147 = sphi 0, %s147
      %s149 = sphi 0, %s147
      %s150 = sphi 0, %s149
      %s164 = sphi 0, %s150
      %s168 = sphi 0, %s168
      %s170 = sphi 0, %s168
      %s171 = sphi 0, %s170
      %s185 = sphi 0, %s171
      %s189 = sphi 0, %s189
      %s191 = sphi 0, %s189
      %s192 = sphi 0, %s191
      %s206 = sphi 0, %s192
      %s210 = sphi 0, %s210
      %s212 = sphi 0, %s210
      %s213 = sphi 0, %s212
      %s227 = sphi 0, %s213
      %s231 = sphi 0, %s231
      %s233 = sphi 0, %s231
      %s234 = sphi 0, %s233
      %s248 = sphi 0, %s234
      %s254 = sphi 0, %s256
      %s257 = sphi 0, %s254
      %s258 = sphi 0, %s257
      %s274 = sphi 0, %s258
    $region4: #{tpu_custom_call.1} parent=1 // loop_header_branch
      %22 = sbr.rel (%p20) target = $region8
    $region5: #{tpu_custom_call.1} parent=1 // loop_body
      %s24 = ssub.s32 %s19, 1
      %s25 = ssub.s32 %s19, 2
      %s26 = sadd.s32 %s19, 1
      %s27 = ssub.s32 %s19, %s26
      %p28 = scmp.eq.s32.totalorder %s27, 0
      %s30 = sadd.s32 %s29, 1
      %s31 = scalar_select %p28, %s29, %s30
      %p34 = pneg %p28
      %p35 = scmp.eq.s32.totalorder %s19, 1
      %p36 = por %p34, %p35
      %p37 = scmp.ne.s32.totalorder %s29, %s32
      %p38 = scmp.eq.s32.totalorder %s19, 0
      %p39 = por %p37, %p38
      %p40 = scmp.ne.s32.totalorder %s29, %s32
      %p41 = scmp.eq.s32.totalorder %s24, 1
      %p42 = por %p40, %p41
      %p43 = scmp.ne.s32.totalorder %s32, %s33
      %p44 = scmp.eq.s32.totalorder %s24, 0
      %p45 = por %p43, %p44
      %p46 = scmp.ne.s32.totalorder %s32, %s33
      %p47 = scmp.eq.s32.totalorder %s25, 1
      %p48 = por %p46, %p47
      %p50 = scmp.ne.s32.totalorder %s33, %s49
      %p51 = scmp.eq.s32.totalorder %s25, 0
      %p52 = por %p50, %p51
      %s53 = ssub.s32 %s19, %s26
      %p54 = scmp.eq.s32.totalorder %s53, 0
      %s56 = sadd.s32 %s55, 1
      %s57 = scalar_select %p54, %s55, %s56
      %p60 = pneg %p54
      %p61 = scmp.eq.s32.totalorder %s19, 1
      %p62 = por %p60, %p61
      %p63 = scmp.ne.s32.totalorder %s55, %s58
      %p64 = scmp.eq.s32.totalorder %s19, 0
      %p65 = por %p63, %p64
      %p66 = scmp.ne.s32.totalorder %s55, %s58
      %p67 = scmp.eq.s32.totalorder %s24, 1
      %p68 = por %p66, %p67
      %p69 = scmp.ne.s32.totalorder %s58, %s59
      %p70 = scmp.eq.s32.totalorder %s24, 0
      %p71 = por %p69, %p70
      %p72 = scmp.ne.s32.totalorder %s58, %s59
      %p73 = scmp.eq.s32.totalorder %s25, 1
      %p74 = por %p72, %p73
      %p76 = scmp.ne.s32.totalorder %s59, %s75
      %p77 = scmp.eq.s32.totalorder %s25, 0
      %p78 = por %p76, %p77
      %s79 = ssub.s32 %s19, %s26
      %p80 = scmp.eq.s32.totalorder %s79, 0
      %s82 = sadd.s32 %s81, 1
      %s83 = scalar_select %p80, %s81, %s82
      %p86 = pneg %p80
      %p87 = scmp.eq.s32.totalorder %s19, 1
      %p88 = por %p86, %p87
      %p89 = scmp.ne.s32.totalorder %s81, %s84
      %p90 = scmp.eq.s32.totalorder %s19, 0
      %p91 = por %p89, %p90
      %p92 = scmp.ne.s32.totalorder %s81, %s84
      %p93 = scmp.eq.s32.totalorder %s24, 1
      %p94 = por %p92, %p93
      %p95 = scmp.ne.s32.totalorder %s84, %s85
      %p96 = scmp.eq.s32.totalorder %s24, 0
      %p97 = por %p95, %p96
      %p98 = scmp.ne.s32.totalorder %s84, %s85
      %p99 = scmp.eq.s32.totalorder %s25, 1
      %p100 = por %p98, %p99
      %p102 = scmp.ne.s32.totalorder %s85, %s101
      %p103 = scmp.eq.s32.totalorder %s25, 0
      %p104 = por %p102, %p103
      %s106 = sadd.s32 %s105, 1
      %p109 = scmp.eq.s32.totalorder %s19, 1
      %p110 = scmp.ne.s32.totalorder %s105, %s107
      %p111 = scmp.eq.s32.totalorder %s19, 0
      %p112 = por %p110, %p111
      %p113 = scmp.ne.s32.totalorder %s105, %s107
      %p114 = scmp.eq.s32.totalorder %s24, 1
      %p115 = por %p113, %p114
      %p116 = scmp.ne.s32.totalorder %s107, %s108
      %p117 = scmp.eq.s32.totalorder %s24, 0
      %p118 = por %p116, %p117
      %p119 = scmp.ne.s32.totalorder %s107, %s108
      %p120 = scmp.eq.s32.totalorder %s25, 1
      %p121 = por %p119, %p120
      %p123 = scmp.ne.s32.totalorder %s108, %s122
      %p124 = scmp.eq.s32.totalorder %s25, 0
      %p125 = por %p123, %p124
      %s127 = sadd.s32 %s126, 1
      %p130 = scmp.eq.s32.totalorder %s19, 1
      %p131 = scmp.ne.s32.totalorder %s126, %s128
      %p132 = scmp.eq.s32.totalorder %s19, 0
      %p133 = por %p131, %p132
      %p134 = scmp.ne.s32.totalorder %s126, %s128
      %p135 = scmp.eq.s32.totalorder %s24, 1
      %p136 = por %p134, %p135
      %p137 = scmp.ne.s32.totalorder %s128, %s129
      %p138 = scmp.eq.s32.totalorder %s24, 0
      %p139 = por %p137, %p138
      %p140 = scmp.ne.s32.totalorder %s128, %s129
      %p141 = scmp.eq.s32.totalorder %s25, 1
      %p142 = por %p140, %p141
      %p144 = scmp.ne.s32.totalorder %s129, %s143
      %p145 = scmp.eq.s32.totalorder %s25, 0
      %p146 = por %p144, %p145
      %s148 = sadd.s32 %s147, 1
      %p151 = scmp.eq.s32.totalorder %s19, 1
      %p152 = scmp.ne.s32.totalorder %s147, %s149
      %p153 = scmp.eq.s32.totalorder %s19, 0
      %p154 = por %p152, %p153
      %p155 = scmp.ne.s32.totalorder %s147, %s149
      %p156 = scmp.eq.s32.totalorder %s24, 1
      %p157 = por %p155, %p156
      %p158 = scmp.ne.s32.totalorder %s149, %s150
      %p159 = scmp.eq.s32.totalorder %s24, 0
      %p160 = por %p158, %p159
      %p161 = scmp.ne.s32.totalorder %s149, %s150
      %p162 = scmp.eq.s32.totalorder %s25, 1
      %p163 = por %p161, %p162
      %p165 = scmp.ne.s32.totalorder %s150, %s164
      %p166 = scmp.eq.s32.totalorder %s25, 0
      %p167 = por %p165, %p166
      %s169 = sadd.s32 %s168, 1
      %p172 = scmp.eq.s32.totalorder %s19, 1
      %p173 = scmp.ne.s32.totalorder %s168, %s170
      %p174 = scmp.eq.s32.totalorder %s19, 0
      %p175 = por %p173, %p174
      %p176 = scmp.ne.s32.totalorder %s168, %s170
      %p177 = scmp.eq.s32.totalorder %s24, 1
      %p178 = por %p176, %p177
      %p179 = scmp.ne.s32.totalorder %s170, %s171
      %p180 = scmp.eq.s32.totalorder %s24, 0
      %p181 = por %p179, %p180
      %p182 = scmp.ne.s32.totalorder %s170, %s171
      %p183 = scmp.eq.s32.totalorder %s25, 1
      %p184 = por %p182, %p183
      %p186 = scmp.ne.s32.totalorder %s171, %s185
      %p187 = scmp.eq.s32.totalorder %s25, 0
      %p188 = por %p186, %p187
      %s190 = sadd.s32 %s189, 1
      %p193 = scmp.eq.s32.totalorder %s19, 1
      %p194 = scmp.ne.s32.totalorder %s189, %s191
      %p195 = scmp.eq.s32.totalorder %s19, 0
      %p196 = por %p194, %p195
      %p197 = scmp.ne.s32.totalorder %s189, %s191
      %p198 = scmp.eq.s32.totalorder %s24, 1
      %p199 = por %p197, %p198
      %p200 = scmp.ne.s32.totalorder %s191, %s192
      %p201 = scmp.eq.s32.totalorder %s24, 0
      %p202 = por %p200, %p201
      %p203 = scmp.ne.s32.totalorder %s191, %s192
      %p204 = scmp.eq.s32.totalorder %s25, 1
      %p205 = por %p203, %p204
      %p207 = scmp.ne.s32.totalorder %s192, %s206
      %p208 = scmp.eq.s32.totalorder %s25, 0
      %p209 = por %p207, %p208
      %s211 = sadd.s32 %s210, 1
      %p214 = scmp.eq.s32.totalorder %s19, 1
      %p215 = scmp.ne.s32.totalorder %s210, %s212
      %p216 = scmp.eq.s32.totalorder %s19, 0
      %p217 = por %p215, %p216
      %p218 = scmp.ne.s32.totalorder %s210, %s212
      %p219 = scmp.eq.s32.totalorder %s24, 1
      %p220 = por %p218, %p219
      %p221 = scmp.ne.s32.totalorder %s212, %s213
      %p222 = scmp.eq.s32.totalorder %s24, 0
      %p223 = por %p221, %p222
      %p224 = scmp.ne.s32.totalorder %s212, %s213
      %p225 = scmp.eq.s32.totalorder %s25, 1
      %p226 = por %p224, %p225
      %p228 = scmp.ne.s32.totalorder %s213, %s227
      %p229 = scmp.eq.s32.totalorder %s25, 0
      %p230 = por %p228, %p229
      %s232 = sadd.s32 %s231, 1
      %p235 = scmp.eq.s32.totalorder %s19, 1
      %p236 = scmp.ne.s32.totalorder %s231, %s233
      %p237 = scmp.eq.s32.totalorder %s19, 0
      %p238 = por %p236, %p237
      %p239 = scmp.ne.s32.totalorder %s231, %s233
      %p240 = scmp.eq.s32.totalorder %s24, 1
      %p241 = por %p239, %p240
      %p242 = scmp.ne.s32.totalorder %s233, %s234
      %p243 = scmp.eq.s32.totalorder %s24, 0
      %p244 = por %p242, %p243
      %p245 = scmp.ne.s32.totalorder %s233, %s234
      %p246 = scmp.eq.s32.totalorder %s25, 1
      %p247 = por %p245, %p246
      %p249 = scmp.ne.s32.totalorder %s234, %s248
      %p250 = scmp.eq.s32.totalorder %s25, 0
      %p251 = por %p249, %p250
      %s252 = ssub.s32 %s19, %s26
      %p253 = scmp.eq.s32.totalorder %s252, 0
      %s255 = sadd.s32 %s254, 1
      %s256 = scalar_select %p253, %s254, %s255
      %p259 = pneg %p253
      %p260 = scmp.eq.s32.totalorder %s19, 1
      %p261 = por %p259, %p260
      %p262 = scmp.ne.s32.totalorder %s254, %s257
      %p263 = scmp.eq.s32.totalorder %s19, 0
      %p264 = por %p262, %p263
      %p265 = scmp.ne.s32.totalorder %s254, %s257
      %p266 = scmp.eq.s32.totalorder %s24, 1
      %p267 = por %p265, %p266
      %p268 = scmp.ne.s32.totalorder %s257, %s258
      %p269 = scmp.eq.s32.totalorder %s24, 0
      %p270 = por %p268, %p269
      %p271 = scmp.ne.s32.totalorder %s257, %s258
      %p272 = scmp.eq.s32.totalorder %s25, 1
      %p273 = por %p271, %p272
      %p275 = scmp.ne.s32.totalorder %s258, %s274
      %p276 = scmp.eq.s32.totalorder %s25, 0
      %p277 = por %p275, %p276
      %p278 = scmp.le.s32.totalorder 1, %s19
      %p279 = scmp.lt.s32.totalorder %s19, 3
      %p280 = pnand %p278, %p279
      %p281 = pneg %p280
      // Predicated region
      $region9: #{tpu_custom_call.1} parent=5 // pred_check
        _
      $region10: #{tpu_custom_call.1} parent=5 // pred_check_branch
        %283 = sbr.rel (%p280) target = $region12
      $region11: #{tpu_custom_call.1} parent=5 // pred_region
        %s284 = ssub.s32 %s19, 1
        // Predicated region
        $region13: #{tpu_custom_call.1} parent=11 // pred_check
          %p285 = pneg %p118
        $region14: #{tpu_custom_call.1} parent=11 // pred_check_branch
          %287 = sbr.rel (%p285) target = $region16
        $region15: #{tpu_custom_call.1} parent=11 // pred_region
          _
        $region16: #{tpu_custom_call.1} parent=11 // pred_fallthru
          _
        // Predicated region
        $region17: #{tpu_custom_call.1} parent=11 // pred_check
          %p288 = pneg %p139
        $region18: #{tpu_custom_call.1} parent=11 // pred_check_branch
          %290 = sbr.rel (%p288) target = $region20
        $region19: #{tpu_custom_call.1} parent=11 // pred_region
          _
        $region20: #{tpu_custom_call.1} parent=11 // pred_fallthru
          _
        // Predicated region
        $region21: #{tpu_custom_call.1} parent=11 // pred_check
          %p291 = pneg %p160
        $region22: #{tpu_custom_call.1} parent=11 // pred_check_branch
          %293 = sbr.rel (%p291) target = $region24
        $region23: #{tpu_custom_call.1} parent=11 // pred_region
          _
        $region24: #{tpu_custom_call.1} parent=11 // pred_fallthru
          _
        // Predicated region
        $region25: #{tpu_custom_call.1} parent=11 // pred_check
          %p294 = pneg %p181
        $region26: #{tpu_custom_call.1} parent=11 // pred_check_branch
          %296 = sbr.rel (%p294) target = $region28
        $region27: #{tpu_custom_call.1} parent=11 // pred_region
          _
        $region28: #{tpu_custom_call.1} parent=11 // pred_fallthru
          _
        // Predicated region
        $region29: #{tpu_custom_call.1} parent=11 // pred_check
          %p297 = pneg %p202
        $region30: #{tpu_custom_call.1} parent=11 // pred_check_branch
          %299 = sbr.rel (%p297) target = $region32
        $region31: #{tpu_custom_call.1} parent=11 // pred_region
          _
        $region32: #{tpu_custom_call.1} parent=11 // pred_fallthru
          _
        // Predicated region
        $region33: #{tpu_custom_call.1} parent=11 // pred_check
          %p300 = pneg %p223
        $region34: #{tpu_custom_call.1} parent=11 // pred_check_branch
          %302 = sbr.rel (%p300) target = $region36
        $region35: #{tpu_custom_call.1} parent=11 // pred_region
          _
        $region36: #{tpu_custom_call.1} parent=11 // pred_fallthru
          _
        // Predicated region
        $region37: #{tpu_custom_call.1} parent=11 // pred_check
          %p303 = pneg %p244
        $region38: #{tpu_custom_call.1} parent=11 // pred_check_branch
          %305 = sbr.rel (%p303) target = $region40
        $region39: #{tpu_custom_call.1} parent=11 // pred_region
          _
        $region40: #{tpu_custom_call.1} parent=11 // pred_fallthru
          _
      $region12: #{tpu_custom_call.1} parent=5 // pred_fallthru
        _
      %p306 = scmp.lt.s32.totalorder %s19, 2
      // Predicated region
      $region41: #{tpu_custom_call.1} parent=5 // pred_check
        %p307 = pneg %p306
      $region42: #{tpu_custom_call.1} parent=5 // pred_check_branch
        %309 = sbr.rel (%p307) target = $region44
      $region43: #{tpu_custom_call.1} parent=5 // pred_region
        // Predicated region
        $region45: #{tpu_custom_call.1} parent=43 // pred_check
          %p310 = pneg %p39
        $region46: #{tpu_custom_call.1} parent=43 // pred_check_branch
          %312 = sbr.rel (%p310) target = $region48
        $region47: #{tpu_custom_call.1} parent=43 // pred_region
          %s313 = smul.u32 16, %s19
          %p314 = scmp.lt.s32.totalorder %s313, 31
          %s315 = scalar_select %p314, %s313, 31
          %s316 = smul.addr %s315, 3
          %s317 = smul.addr %s316, 4
          %s318 = scalar_lea.vmem %s0, %s317
          %s319 = smul.u32 16, %s19
        $region48: #{tpu_custom_call.1} parent=43 // pred_fallthru
          _
        // Predicated region
        $region49: #{tpu_custom_call.1} parent=43 // pred_check
          %p320 = pneg %p65
        $region50: #{tpu_custom_call.1} parent=43 // pred_check_branch
          %322 = sbr.rel (%p320) target = $region52
        $region51: #{tpu_custom_call.1} parent=43 // pred_region
          %s323 = smul.u32 2, %s19
          %p324 = scmp.lt.s32.totalorder %s323, 3
          %s325 = scalar_select %p324, %s323, 3
          %s326 = smul.addr %s325, 4
          %s327 = scalar_lea.vmem %s1, %s326
          %s328 = smul.u32 2, %s19
        $region52: #{tpu_custom_call.1} parent=43 // pred_fallthru
          _
        // Predicated region
        $region53: #{tpu_custom_call.1} parent=43 // pred_check
          %p329 = pneg %p91
        $region54: #{tpu_custom_call.1} parent=43 // pred_check_branch
          %331 = sbr.rel (%p329) target = $region56
        $region55: #{tpu_custom_call.1} parent=43 // pred_region
          %s332 = smul.u32 2, %s19
          %p333 = scmp.lt.s32.totalorder %s332, 3
          %s334 = scalar_select %p333, %s332, 3
          %s335 = smul.addr %s334, 4
          %s336 = scalar_lea.vmem %s2, %s335
          %s337 = smul.u32 2, %s19
        $region56: #{tpu_custom_call.1} parent=43 // pred_fallthru
          _
      $region44: #{tpu_custom_call.1} parent=5 // pred_fallthru
        _
      %p338 = scmp.le.s32.totalorder 1, %s19
      %p339 = scmp.lt.s32.totalorder %s19, 3
      %p340 = pnand %p338, %p339
      %p341 = pneg %p340
      // Predicated region
      $region57: #{tpu_custom_call.1} parent=5 // pred_check
        _
      $region58: #{tpu_custom_call.1} parent=5 // pred_check_branch
        %343 = sbr.rel (%p340) target = $region60
      $region59: #{tpu_custom_call.1} parent=5 // pred_region
        %s344 = ssub.s32 %s19, 1
        %s345 = smul.u32 16, %s24
        %p346 = scmp.lt.s32.totalorder %s345, 31
        %s347 = scalar_select %p346, %s345, 31
        %s348 = smul.addr %s347, 3
        %s349 = smul.addr %s348, 4
        %s350 = scalar_lea.vmem %s0, %s349
        %p351 = pneg %p45
        %p352 = pneg %p42
        %s353 = smul.u32 2, %s24
        %p354 = scmp.lt.s32.totalorder %s353, 3
        %s355 = scalar_select %p354, %s353, 3
        %s356 = smul.addr %s355, 4
        %s357 = scalar_lea.vmem %s1, %s356
        %p358 = pneg %p71
        %p359 = pneg %p68
        %s360 = smul.u32 2, %s24
        %p361 = scmp.lt.s32.totalorder %s360, 3
        %s362 = scalar_select %p361, %s360, 3
        %s363 = smul.addr %s362, 4
        %s364 = scalar_lea.vmem %s2, %s363
        %p365 = pneg %p97
        %p366 = pneg %p94
        %p367 = pneg %p118
        %p368 = pneg %p115
        %p369 = pneg %p139
        %p370 = pneg %p136
        %p371 = pneg %p160
        %p372 = pneg %p157
        %p373 = pneg %p181
        %p374 = pneg %p178
        %p375 = pneg %p202
        %p376 = pneg %p199
        %p377 = pneg %p223
        %p378 = pneg %p220
        %p379 = pneg %p244
        %p380 = pneg %p241
        %p381 = pneg %p270
        %p382 = pneg %p267
        %s383 = sand.u32 %s257, 1
        %s384 = scalar_lea.sflag [#allocation3], %s383
        %s385 = sand.u32 %s257, 1
        %s386 = smul.addr %s385, 2
        %s387 = scalar_lea.vmem [#allocation2], %s386
        %s388 = smul.u32 16, %s24
        %p389 = scmp.lt.s32.totalorder %s388, 31
        %s390 = scalar_select %p389, %s388, 31
        %s391 = smul.addr %s390, 3
        %s392 = smul.addr %s391, 4
        %s393 = scalar_lea.vmem %s0, %s392
        %s394 = smul.u32 16, %s24
        %s395 = smul.u32 2, %s24
        %p396 = scmp.lt.s32.totalorder %s395, 3
        %s397 = scalar_select %p396, %s395, 3
        %s398 = smul.addr %s397, 4
        %s399 = scalar_lea.vmem %s1, %s398
        %s400 = smul.u32 2, %s24
        %s401 = smul.u32 2, %s24
        %p402 = scmp.lt.s32.totalorder %s401, 3
        %s403 = scalar_select %p402, %s401, 3
        %s404 = smul.addr %s403, 4
        %s405 = scalar_lea.vmem %s2, %s404
        %s406 = smul.u32 2, %s24
        %v408 = vld [vmem:[%s393] sm:$0xf]
        %v409 = vld [vmem:[%s393 + $0x4] sm:$0xf]
        %v410 = vld [vmem:[%s393 + $0x8] sm:$0x1]
        %v411 = vld [vmem:[%s393 + $0xc] sm:$0xf]
        %v412 = vld [vmem:[%s393 + $0x10] sm:$0xf]
        %v413 = vld [vmem:[%s393 + $0x14] sm:$0x1]
        %v414 = vld [vmem:[%s393 + $0x18] sm:$0xf]
        %v415 = vld [vmem:[%s393 + $0x1c] sm:$0xf]
        %v416 = vld [vmem:[%s393 + $0x20] sm:$0x1]
        %v417 = vld [vmem:[%s393 + $0x24] sm:$0xf]
        %v418 = vld [vmem:[%s393 + $0x28] sm:$0xf]
        %v419 = vld [vmem:[%s393 + $0x2c] sm:$0x1]
        %v420 = vld [vmem:[%s393 + $0x30] sm:$0xf]
        %v421 = vld [vmem:[%s393 + $0x34] sm:$0xf]
        %v422 = vld [vmem:[%s393 + $0x38] sm:$0x1]
        %v423 = vld [vmem:[%s393 + $0x3c] sm:$0xf]
        %v424 = vld [vmem:[%s393 + $0x40] sm:$0xf]
        %v425 = vld [vmem:[%s393 + $0x44] sm:$0x1]
        %v426 = vld [vmem:[%s393 + $0x48] sm:$0xf]
        %v427 = vld [vmem:[%s393 + $0x4c] sm:$0xf]
        %v428 = vld [vmem:[%s393 + $0x50] sm:$0x1]
        %v429 = vld [vmem:[%s393 + $0x54] sm:$0xf]
        %v430 = vld [vmem:[%s393 + $0x58] sm:$0xf]
        %v431 = vld [vmem:[%s393 + $0x5c] sm:$0x1]
        %v432 = vld [vmem:[%s393 + $0x60] sm:$0xf]
        %v433 = vld [vmem:[%s393 + $0x64] sm:$0xf]
        %v434 = vld [vmem:[%s393 + $0x68] sm:$0x1]
        %v435 = vld [vmem:[%s393 + $0x6c] sm:$0xf]
        %v436 = vld [vmem:[%s393 + $0x70] sm:$0xf]
        %v437 = vld [vmem:[%s393 + $0x74] sm:$0x1]
        %v438 = vld [vmem:[%s393 + $0x78] sm:$0xf]
        %v439 = vld [vmem:[%s393 + $0x7c] sm:$0xf]
        %v440 = vld [vmem:[%s393 + $0x80] sm:$0x1]
        %v441 = vld [vmem:[%s393 + $0x84] sm:$0xf]
        %v442 = vld [vmem:[%s393 + $0x88] sm:$0xf]
        %v443 = vld [vmem:[%s393 + $0x8c] sm:$0x1]
        %v444 = vld [vmem:[%s393 + $0x90] sm:$0xf]
        %v445 = vld [vmem:[%s393 + $0x94] sm:$0xf]
        %v446 = vld [vmem:[%s393 + $0x98] sm:$0x1]
        %v447 = vld [vmem:[%s393 + $0x9c] sm:$0xf]
        %v448 = vld [vmem:[%s393 + $0xa0] sm:$0xf]
        %v449 = vld [vmem:[%s393 + $0xa4] sm:$0x1]
        %v450 = vld [vmem:[%s393 + $0xa8] sm:$0xf]
        %v451 = vld [vmem:[%s393 + $0xac] sm:$0xf]
        %v452 = vld [vmem:[%s393 + $0xb0] sm:$0x1]
        %v453 = vld [vmem:[%s393 + $0xb4] sm:$0xf]
        %v454 = vld [vmem:[%s393 + $0xb8] sm:$0xf]
        %v455 = vld [vmem:[%s393 + $0xbc] sm:$0x1]
        %v456 = vld [vmem:[%s3] sm:$0xf]
        %v457 = vld [vmem:[%s3 + $0x4] sm:$0xf]
        %v458 = vld [vmem:[%s3 + $0x8] sm:$0xf]
        %v459 = vld [vmem:[%s3 + $0xc] sm:$0xf]
        %vm460 = vsmask.f32 3328
        %vm461 = vsmask.f32 7440
        %vm462 = vmor %vm460, %vm461
        %v464 = vshrl.u32 %v408, 16
        %v466 = vrot.slane %v464, 4
        %v467 = vshll.u32 %v408, 16
        %v469 = vrot.slane %v467, 5
        %v470 = vor.u32 %v466, %v469
        %v471 = vrot.slane %v470, 4
        %v473 = vshll.u32 %v409, 16
        %v475 = vrot.slane %v473, 5
        %v476 = vsel %vm462, %v471, %v475
        %v477 = vshrl.u32 %v409, 16
        %v479 = vrot.slane %v477, 4
        %v480 = vor.u32 %v479, %v475
        %v481 = vrot.slane %v480, 4
        %v483 = vshll.u32 %v410, 16
        %v485 = vrot.slane %v483, 5
        %v486 = vsel %vm462, %v481, %v485
        %v488 = vshrl.u32 %v411, 16
        %v490 = vrot.slane %v488, 4
        %v491 = vshll.u32 %v411, 16
        %v493 = vrot.slane %v491, 5
        %v494 = vor.u32 %v490, %v493
        %v495 = vrot.slane %v494, 4
        %v497 = vshll.u32 %v412, 16
        %v499 = vrot.slane %v497, 5
        %v500 = vsel %vm462, %v495, %v499
        %v501 = vshrl.u32 %v412, 16
        %v503 = vrot.slane %v501, 4
        %v504 = vor.u32 %v503, %v499
        %v505 = vrot.slane %v504, 4
        %v507 = vshll.u32 %v413, 16
        %v509 = vrot.slane %v507, 5
        %v510 = vsel %vm462, %v505, %v509
        %v512 = vshrl.u32 %v414, 16
        %v514 = vrot.slane %v512, 4
        %v515 = vshll.u32 %v414, 16
        %v517 = vrot.slane %v515, 5
        %v518 = vor.u32 %v514, %v517
        %v519 = vrot.slane %v518, 4
        %v521 = vshll.u32 %v415, 16
        %v523 = vrot.slane %v521, 5
        %v524 = vsel %vm462, %v519, %v523
        %v525 = vshrl.u32 %v415, 16
        %v527 = vrot.slane %v525, 4
        %v528 = vor.u32 %v527, %v523
        %v529 = vrot.slane %v528, 4
        %v531 = vshll.u32 %v416, 16
        %v533 = vrot.slane %v531, 5
        %v534 = vsel %vm462, %v529, %v533
        %v536 = vshrl.u32 %v417, 16
        %v538 = vrot.slane %v536, 4
        %v539 = vshll.u32 %v417, 16
        %v541 = vrot.slane %v539, 5
        %v542 = vor.u32 %v538, %v541
        %v543 = vrot.slane %v542, 4
        %v545 = vshll.u32 %v418, 16
        %v547 = vrot.slane %v545, 5
        %v548 = vsel %vm462, %v543, %v547
        %v549 = vshrl.u32 %v418, 16
        %v551 = vrot.slane %v549, 4
        %v552 = vor.u32 %v551, %v547
        %v553 = vrot.slane %v552, 4
        %v555 = vshll.u32 %v419, 16
        %v557 = vrot.slane %v555, 5
        %v558 = vsel %vm462, %v553, %v557
        %v560 = vshrl.u32 %v420, 16
        %v562 = vrot.slane %v560, 4
        %v563 = vshll.u32 %v420, 16
        %v565 = vrot.slane %v563, 5
        %v566 = vor.u32 %v562, %v565
        %v567 = vrot.slane %v566, 4
        %v569 = vshll.u32 %v421, 16
        %v571 = vrot.slane %v569, 5
        %v572 = vsel %vm462, %v567, %v571
        %v573 = vshrl.u32 %v421, 16
        %v575 = vrot.slane %v573, 4
        %v576 = vor.u32 %v575, %v571
        %v577 = vrot.slane %v576, 4
        %v579 = vshll.u32 %v422, 16
        %v581 = vrot.slane %v579, 5
        %v582 = vsel %vm462, %v577, %v581
        %v584 = vshrl.u32 %v423, 16
        %v586 = vrot.slane %v584, 4
        %v587 = vshll.u32 %v423, 16
        %v589 = vrot.slane %v587, 5
        %v590 = vor.u32 %v586, %v589
        %v591 = vrot.slane %v590, 4
        %v593 = vshll.u32 %v424, 16
        %v595 = vrot.slane %v593, 5
        %v596 = vsel %vm462, %v591, %v595
        %v597 = vshrl.u32 %v424, 16
        %v599 = vrot.slane %v597, 4
        %v600 = vor.u32 %v599, %v595
        %v601 = vrot.slane %v600, 4
        %v603 = vshll.u32 %v425, 16
        %v605 = vrot.slane %v603, 5
        %v606 = vsel %vm462, %v601, %v605
        %v608 = vshrl.u32 %v426, 16
        %v610 = vrot.slane %v608, 4
        %v611 = vshll.u32 %v426, 16
        %v613 = vrot.slane %v611, 5
        %v614 = vor.u32 %v610, %v613
        %v615 = vrot.slane %v614, 4
        %v617 = vshll.u32 %v427, 16
        %v619 = vrot.slane %v617, 5
        %v620 = vsel %vm462, %v615, %v619
        %v621 = vshrl.u32 %v427, 16
        %v623 = vrot.slane %v621, 4
        %v624 = vor.u32 %v623, %v619
        %v625 = vrot.slane %v624, 4
        %v627 = vshll.u32 %v428, 16
        %v629 = vrot.slane %v627, 5
        %v630 = vsel %vm462, %v625, %v629
        %v632 = vshrl.u32 %v429, 16
        %v634 = vrot.slane %v632, 4
        %v635 = vshll.u32 %v429, 16
        %v637 = vrot.slane %v635, 5
        %v638 = vor.u32 %v634, %v637
        %v639 = vrot.slane %v638, 4
        %v641 = vshll.u32 %v430, 16
        %v643 = vrot.slane %v641, 5
        %v644 = vsel %vm462, %v639, %v643
        %v645 = vshrl.u32 %v430, 16
        %v647 = vrot.slane %v645, 4
        %v648 = vor.u32 %v647, %v643
        %v649 = vrot.slane %v648, 4
        %v651 = vshll.u32 %v431, 16
        %v653 = vrot.slane %v651, 5
        %v654 = vsel %vm462, %v649, %v653
        %v656 = vshrl.u32 %v432, 16
        %v658 = vrot.slane %v656, 4
        %v659 = vshll.u32 %v432, 16
        %v661 = vrot.slane %v659, 5
        %v662 = vor.u32 %v658, %v661
        %v663 = vrot.slane %v662, 4
        %v665 = vshll.u32 %v433, 16
        %v667 = vrot.slane %v665, 5
        %v668 = vsel %vm462, %v663, %v667
        %v669 = vshrl.u32 %v433, 16
        %v671 = vrot.slane %v669, 4
        %v672 = vor.u32 %v671, %v667
        %v673 = vrot.slane %v672, 4
        %v675 = vshll.u32 %v434, 16
        %v677 = vrot.slane %v675, 5
        %v678 = vsel %vm462, %v673, %v677
        %v680 = vshrl.u32 %v435, 16
        %v682 = vrot.slane %v680, 4
        %v683 = vshll.u32 %v435, 16
        %v685 = vrot.slane %v683, 5
        %v686 = vor.u32 %v682, %v685
        %v687 = vrot.slane %v686, 4
        %v689 = vshll.u32 %v436, 16
        %v691 = vrot.slane %v689, 5
        %v692 = vsel %vm462, %v687, %v691
        %v693 = vshrl.u32 %v436, 16
        %v695 = vrot.slane %v693, 4
        %v696 = vor.u32 %v695, %v691
        %v697 = vrot.slane %v696, 4
        %v699 = vshll.u32 %v437, 16
        %v701 = vrot.slane %v699, 5
        %v702 = vsel %vm462, %v697, %v701
        %v704 = vshrl.u32 %v438, 16
        %v706 = vrot.slane %v704, 4
        %v707 = vshll.u32 %v438, 16
        %v709 = vrot.slane %v707, 5
        %v710 = vor.u32 %v706, %v709
        %v711 = vrot.slane %v710, 4
        %v713 = vshll.u32 %v439, 16
        %v715 = vrot.slane %v713, 5
        %v716 = vsel %vm462, %v711, %v715
        %v717 = vshrl.u32 %v439, 16
        %v719 = vrot.slane %v717, 4
        %v720 = vor.u32 %v719, %v715
        %v721 = vrot.slane %v720, 4
        %v723 = vshll.u32 %v440, 16
        %v725 = vrot.slane %v723, 5
        %v726 = vsel %vm462, %v721, %v725
        %v728 = vshrl.u32 %v441, 16
        %v730 = vrot.slane %v728, 4
        %v731 = vshll.u32 %v441, 16
        %v733 = vrot.slane %v731, 5
        %v734 = vor.u32 %v730, %v733
        %v735 = vrot.slane %v734, 4
        %v737 = vshll.u32 %v442, 16
        %v739 = vrot.slane %v737, 5
        %v740 = vsel %vm462, %v735, %v739
        %v741 = vshrl.u32 %v442, 16
        %v743 = vrot.slane %v741, 4
        %v744 = vor.u32 %v743, %v739
        %v745 = vrot.slane %v744, 4
        %v747 = vshll.u32 %v443, 16
        %v749 = vrot.slane %v747, 5
        %v750 = vsel %vm462, %v745, %v749
        %v752 = vshrl.u32 %v444, 16
        %v754 = vrot.slane %v752, 4
        %v755 = vshll.u32 %v444, 16
        %v757 = vrot.slane %v755, 5
        %v758 = vor.u32 %v754, %v757
        %v759 = vrot.slane %v758, 4
        %v761 = vshll.u32 %v445, 16
        %v763 = vrot.slane %v761, 5
        %v764 = vsel %vm462, %v759, %v763
        %v765 = vshrl.u32 %v445, 16
        %v767 = vrot.slane %v765, 4
        %v768 = vor.u32 %v767, %v763
        %v769 = vrot.slane %v768, 4
        %v771 = vshll.u32 %v446, 16
        %v773 = vrot.slane %v771, 5
        %v774 = vsel %vm462, %v769, %v773
        %v776 = vshrl.u32 %v447, 16
        %v778 = vrot.slane %v776, 4
        %v779 = vshll.u32 %v447, 16
        %v781 = vrot.slane %v779, 5
        %v782 = vor.u32 %v778, %v781
        %v783 = vrot.slane %v782, 4
        %v785 = vshll.u32 %v448, 16
        %v787 = vrot.slane %v785, 5
        %v788 = vsel %vm462, %v783, %v787
        %v789 = vshrl.u32 %v448, 16
        %v791 = vrot.slane %v789, 4
        %v792 = vor.u32 %v791, %v787
        %v793 = vrot.slane %v792, 4
        %v795 = vshll.u32 %v449, 16
        %v797 = vrot.slane %v795, 5
        %v798 = vsel %vm462, %v793, %v797
        %v800 = vshrl.u32 %v450, 16
        %v802 = vrot.slane %v800, 4
        %v803 = vshll.u32 %v450, 16
        %v805 = vrot.slane %v803, 5
        %v806 = vor.u32 %v802, %v805
        %v807 = vrot.slane %v806, 4
        %v809 = vshll.u32 %v451, 16
        %v811 = vrot.slane %v809, 5
        %v812 = vsel %vm462, %v807, %v811
        %v813 = vshrl.u32 %v451, 16
        %v815 = vrot.slane %v813, 4
        %v816 = vor.u32 %v815, %v811
        %v817 = vrot.slane %v816, 4
        %v819 = vshll.u32 %v452, 16
        %v821 = vrot.slane %v819, 5
        %v822 = vsel %vm462, %v817, %v821
        %v824 = vshrl.u32 %v453, 16
        %v826 = vrot.slane %v824, 4
        %v827 = vshll.u32 %v453, 16
        %v829 = vrot.slane %v827, 5
        %v830 = vor.u32 %v826, %v829
        %v831 = vrot.slane %v830, 4
        %v833 = vshll.u32 %v454, 16
        %v835 = vrot.slane %v833, 5
        %v836 = vsel %vm462, %v831, %v835
        %v837 = vshrl.u32 %v454, 16
        %v839 = vrot.slane %v837, 4
        %v840 = vor.u32 %v839, %v835
        %v841 = vrot.slane %v840, 4
        %v843 = vshll.u32 %v455, 16
        %v845 = vrot.slane %v843, 5
        %v846 = vsel %vm462, %v841, %v845
        %s847 = scalar_lea.vmem %s3, 16
        %v848 = vld [vmem:[%s847] sm:$0xf]
        %v849 = vld [vmem:[%s847 + $0x4] sm:$0xf]
        %v850 = vld [vmem:[%s847 + $0x8] sm:$0xf]
        %v851 = vld [vmem:[%s847 + $0xc] sm:$0xf]
        %v852 = vunpack.c.l.b16 %v476
        %v853 = vunpack.c.l.b16 %v486
        %v854 = vunpack.c.l.b16 %v500
        %v855 = vunpack.c.l.b16 %v510
        %v856 = vunpack.c.l.b16 %v524
        %v857 = vunpack.c.l.b16 %v534
        %v858 = vunpack.c.l.b16 %v548
        %v859 = vunpack.c.l.b16 %v558
        %v860 = vunpack.c.l.b16 %v572
        %v861 = vunpack.c.l.b16 %v582
        %v862 = vunpack.c.l.b16 %v596
        %v863 = vunpack.c.l.b16 %v606
        %v864 = vunpack.c.l.b16 %v620
        %v865 = vunpack.c.l.b16 %v630
        %v866 = vunpack.c.l.b16 %v644
        %v867 = vunpack.c.l.b16 %v654
        %v868 = vunpack.c.l.b16 %v668
        %v869 = vunpack.c.l.b16 %v678
        %v870 = vunpack.c.l.b16 %v692
        %v871 = vunpack.c.l.b16 %v702
        %v872 = vunpack.c.l.b16 %v716
        %v873 = vunpack.c.l.b16 %v726
        %v874 = vunpack.c.l.b16 %v740
        %v875 = vunpack.c.l.b16 %v750
        %v876 = vunpack.c.l.b16 %v764
        %v877 = vunpack.c.l.b16 %v774
        %v878 = vunpack.c.l.b16 %v788
        %v879 = vunpack.c.l.b16 %v798
        %v880 = vunpack.c.l.b16 %v812
        %v881 = vunpack.c.l.b16 %v822
        %v882 = vunpack.c.l.b16 %v836
        %v883 = vunpack.c.l.b16 %v846
        %v884 = vpack.c.b16 %v853, %v852
        %v885 = vpack.c.b16 %v855, %v854
        %v886 = vpack.c.b16 %v857, %v856
        %v887 = vpack.c.b16 %v859, %v858
        %v888 = vpack.c.b16 %v861, %v860
        %v889 = vpack.c.b16 %v863, %v862
        %v890 = vpack.c.b16 %v865, %v864
        %v891 = vpack.c.b16 %v867, %v866
        %v892 = vpack.c.b16 %v869, %v868
        %v893 = vpack.c.b16 %v871, %v870
        %v894 = vpack.c.b16 %v873, %v872
        %v895 = vpack.c.b16 %v875, %v874
        %v896 = vpack.c.b16 %v877, %v876
        %v897 = vpack.c.b16 %v879, %v878
        %v898 = vpack.c.b16 %v881, %v880
        %v899 = vpack.c.b16 %v883, %v882
        %v904 = vunpack.c.l.b16 %v848
        %v905 = vunpack.c.l.b16 %v849
        %v906 = vunpack.c.l.b16 %v850
        %v907 = vunpack.c.l.b16 %v851
        %v908 = vpack.c.b16 %v905, %v904
        %v909 = vpack.c.b16 %v907, %v906
        %vm912 = vcmask 261120
        %v914 = vsel %vm912, %v884, 0
        %v917 = vsel %vm912, %v885, 0
        %v920 = vsel %vm912, %v886, 0
        %v923 = vsel %vm912, %v887, 0
        %v926 = vsel %vm912, %v888, 0
        %v929 = vsel %vm912, %v889, 0
        %v932 = vsel %vm912, %v890, 0
        %v935 = vsel %vm912, %v891, 0
        %v938 = vsel %vm912, %v892, 0
        %v941 = vsel %vm912, %v893, 0
        %v944 = vsel %vm912, %v894, 0
        %v947 = vsel %vm912, %v895, 0
        %v950 = vsel %vm912, %v896, 0
        %v953 = vsel %vm912, %v897, 0
        %v956 = vsel %vm912, %v898, 0
        %v959 = vsel %vm912, %v899, 0
        %961 = vmatprep.subr.bf16.mxu0 0
        %962 = vmatpush1.bf16.msra.mxu0 %v908
        %963 = vmatprep.subr.bf16.mxu0 0
        %964 = vmatpush1.bf16.msra.mxu0 %v909
        %965 = vmatprep.subr.bf16.mxu0 0
        %966 = vmatpush1.bf16.msra.mxu0 0
        %967 = vmatprep.subr.bf16.mxu0 0
        %968 = vmatpush1.bf16.msra.mxu0 0
        %969 = vmatprep.subr.bf16.mxu0 0
        %970 = vmatpush1.bf16.msra.mxu0 0
        %971 = vmatprep.subr.bf16.mxu0 0
        %972 = vmatpush1.bf16.msra.mxu0 0
        %973 = vmatprep.subr.bf16.mxu0 0
        %974 = vmatpush1.bf16.msra.mxu0 0
        %975 = vmatprep.subr.bf16.mxu0 0
        %976 = vmatpush1.bf16.msra.mxu0 0
        %977 = vmatprep.subr.bf16.mxu0 0
        %978 = vmatpush1.bf16.msra.mxu0 0
        %979 = vmatprep.subr.bf16.mxu0 0
        %980 = vmatpush1.bf16.msra.mxu0 0
        %981 = vmatprep.subr.bf16.mxu0 0
        %982 = vmatpush1.bf16.msra.mxu0 0
        %983 = vmatprep.subr.bf16.mxu0 0
        %984 = vmatpush1.bf16.msra.mxu0 0
        %985 = vmatprep.subr.bf16.mxu0 0
        %986 = vmatpush1.bf16.msra.mxu0 0
        %987 = vmatprep.subr.bf16.mxu0 0
        %988 = vmatpush1.bf16.msra.mxu0 0
        %989 = vmatprep.subr.bf16.mxu0 0
        %990 = vmatpush1.bf16.msra.mxu0 0
        %991 = vmatprep.subr.bf16.mxu0 0
        %992 = vmatpush1.bf16.msra.mxu0 0
        %993 = vmatprep.mubr.bf16.mxu0 0
        %994 = vmatmul.mubr.bf16.gmra.mrb[0].mxu0 %v914
        %v995 = vpop.f32.mrb[0].mxu0
        %v996 = vadd.f32 0.0, %v995
        %v997 = vpop.f32.mrb[0].mxu0
        %v998 = vpop.f32.mrb[0].mxu0
        %v999 = vadd.f32 0.0, %v998
        %v1000 = vpop.f32.mrb[0].mxu0
        %1001 = vmatprep.mubr.bf16.mxu0 0
        %1002 = vmatmul.mubr.bf16.gmra.mrb[0].mxu0 %v917
        %v1003 = vpop.f32.mrb[0].mxu0
        %v1004 = vadd.f32 0.0, %v1003
        %v1005 = vpop.f32.mrb[0].mxu0
        %v1006 = vpop.f32.mrb[0].mxu0
        %v1007 = vadd.f32 0.0, %v1006
        %v1008 = vpop.f32.mrb[0].mxu0
        %1009 = vmatprep.mubr.bf16.mxu0 0
        %1010 = vmatmul.mubr.bf16.gmra.mrb[0].mxu0 %v920
        %v1011 = vpop.f32.mrb[0].mxu0
        %v1012 = vadd.f32 0.0, %v1011
        %v1013 = vpop.f32.mrb[0].mxu0
        %v1014 = vpop.f32.mrb[0].mxu0
        %v1015 = vadd.f32 0.0, %v1014
        %v1016 = vpop.f32.mrb[0].mxu0
        %1017 = vmatprep.mubr.bf16.mxu0 0
        %1018 = vmatmul.mubr.bf16.gmra.mrb[0].mxu0 %v923
        %v1019 = vpop.f32.mrb[0].mxu0
        %v1020 = vadd.f32 0.0, %v1019
        %v1021 = vpop.f32.mrb[0].mxu0
        %v1022 = vpop.f32.mrb[0].mxu0
        %v1023 = vadd.f32 0.0, %v1022
        %v1024 = vpop.f32.mrb[0].mxu0
        %1025 = vmatprep.mubr.bf16.mxu0 0
        %1026 = vmatmul.mubr.bf16.gmra.mrb[0].mxu0 %v926
        %v1027 = vpop.f32.mrb[0].mxu0
        %v1028 = vadd.f32 0.0, %v1027
        %v1029 = vpop.f32.mrb[0].mxu0
        %v1030 = vpop.f32.mrb[0].mxu0
        %v1031 = vadd.f32 0.0, %v1030
        %v1032 = vpop.f32.mrb[0].mxu0
        %1033 = vmatprep.mubr.bf16.mxu0 0
        %1034 = vmatmul.mubr.bf16.gmra.mrb[0].mxu0 %v929
        %v1035 = vpop.f32.mrb[0].mxu0
        %v1036 = vadd.f32 0.0, %v1035
        %v1037 = vpop.f32.mrb[0].mxu0
        %v1038 = vpop.f32.mrb[0].mxu0
        %v1039 = vadd.f32 0.0, %v1038
        %v1040 = vpop.f32.mrb[0].mxu0
        %1041 = vmatprep.mubr.bf16.mxu0 0
        %1042 = vmatmul.mubr.bf16.gmra.mrb[0].mxu0 %v932
        %v1043 = vpop.f32.mrb[0].mxu0
        %v1044 = vadd.f32 0.0, %v1043
        %v1045 = vpop.f32.mrb[0].mxu0
        %v1046 = vpop.f32.mrb[0].mxu0
        %v1047 = vadd.f32 0.0, %v1046
        %v1048 = vpop.f32.mrb[0].mxu0
        %1049 = vmatprep.mubr.bf16.mxu0 0
        %1050 = vmatmul.mubr.bf16.gmra.mrb[0].mxu0 %v935
        %v1051 = vpop.f32.mrb[0].mxu0
        %v1052 = vadd.f32 0.0, %v1051
        %v1053 = vpop.f32.mrb[0].mxu0
        %v1054 = vpop.f32.mrb[0].mxu0
        %v1055 = vadd.f32 0.0, %v1054
        %v1056 = vpop.f32.mrb[0].mxu0
        %1057 = vmatprep.mubr.bf16.mxu0 0
        %1058 = vmatmul.mubr.bf16.gmra.mrb[0].mxu0 %v938
        %v1059 = vpop.f32.mrb[0].mxu0
        %v1060 = vadd.f32 0.0, %v1059
        %v1061 = vpop.f32.mrb[0].mxu0
        %v1062 = vpop.f32.mrb[0].mxu0
        %v1063 = vadd.f32 0.0, %v1062
        %v1064 = vpop.f32.mrb[0].mxu0
        %1065 = vmatprep.mubr.bf16.mxu0 0
        %1066 = vmatmul.mubr.bf16.gmra.mrb[0].mxu0 %v941
        %v1067 = vpop.f32.mrb[0].mxu0
        %v1068 = vadd.f32 0.0, %v1067
        %v1069 = vpop.f32.mrb[0].mxu0
        %v1070 = vpop.f32.mrb[0].mxu0
        %v1071 = vadd.f32 0.0, %v1070
        %v1072 = vpop.f32.mrb[0].mxu0
        %1073 = vmatprep.mubr.bf16.mxu0 0
        %1074 = vmatmul.mubr.bf16.gmra.mrb[0].mxu0 %v944
        %v1075 = vpop.f32.mrb[0].mxu0
        %v1076 = vadd.f32 0.0, %v1075
        %v1077 = vpop.f32.mrb[0].mxu0
        %v1078 = vpop.f32.mrb[0].mxu0
        %v1079 = vadd.f32 0.0, %v1078
        %v1080 = vpop.f32.mrb[0].mxu0
        %1081 = vmatprep.mubr.bf16.mxu0 0
        %1082 = vmatmul.mubr.bf16.gmra.mrb[0].mxu0 %v947
        %v1083 = vpop.f32.mrb[0].mxu0
        %v1084 = vadd.f32 0.0, %v1083
        %v1085 = vpop.f32.mrb[0].mxu0
        %v1086 = vpop.f32.mrb[0].mxu0
        %v1087 = vadd.f32 0.0, %v1086
        %v1088 = vpop.f32.mrb[0].mxu0
        %1089 = vmatprep.mubr.bf16.mxu0 0
        %1090 = vmatmul.mubr.bf16.gmra.mrb[0].mxu0 %v950
        %v1091 = vpop.f32.mrb[0].mxu0
        %v1092 = vadd.f32 0.0, %v1091
        %v1093 = vpop.f32.mrb[0].mxu0
        %v1094 = vpop.f32.mrb[0].mxu0
        %v1095 = vadd.f32 0.0, %v1094
        %v1096 = vpop.f32.mrb[0].mxu0
        %1097 = vmatprep.mubr.bf16.mxu0 0
        %1098 = vmatmul.mubr.bf16.gmra.mrb[0].mxu0 %v953
        %v1099 = vpop.f32.mrb[0].mxu0
        %v1100 = vadd.f32 0.0, %v1099
        %v1101 = vpop.f32.mrb[0].mxu0
        %v1102 = vpop.f32.mrb[0].mxu0
        %v1103 = vadd.f32 0.0, %v1102
        %v1104 = vpop.f32.mrb[0].mxu0
        %1105 = vmatprep.mubr.bf16.mxu0 0
        %1106 = vmatmul.mubr.bf16.gmra.mrb[0].mxu0 %v956
        %v1107 = vpop.f32.mrb[0].mxu0
        %v1108 = vadd.f32 0.0, %v1107
        %v1109 = vpop.f32.mrb[0].mxu0
        %v1110 = vpop.f32.mrb[0].mxu0
        %v1111 = vadd.f32 0.0, %v1110
        %v1112 = vpop.f32.mrb[0].mxu0
        %1113 = vmatprep.mubr.bf16.mxu0 0
        %1114 = vmatmul.mubr.bf16.gmra.mrb[0].mxu0 %v959
        %v1115 = vpop.f32.mrb[0].mxu0
        %v1116 = vadd.f32 0.0, %v1115
        %v1117 = vpop.f32.mrb[0].mxu0
        %v1118 = vpop.f32.mrb[0].mxu0
        %v1119 = vadd.f32 0.0, %v1118
        %v1120 = vpop.f32.mrb[0].mxu0
        %1121 = vdwg.mxu0
        %v1154 = vunpack.c.l.b16 %v408
        %v1155 = vunpack.c.l.b16 %v409
        %v1156 = vunpack.c.l.b16 %v411
        %v1157 = vunpack.c.l.b16 %v412
        %v1158 = vunpack.c.l.b16 %v414
        %v1159 = vunpack.c.l.b16 %v415
        %v1160 = vunpack.c.l.b16 %v417
        %v1161 = vunpack.c.l.b16 %v418
        %v1162 = vunpack.c.l.b16 %v420
        %v1163 = vunpack.c.l.b16 %v421
        %v1164 = vunpack.c.l.b16 %v423
        %v1165 = vunpack.c.l.b16 %v424
        %v1166 = vunpack.c.l.b16 %v426
        %v1167 = vunpack.c.l.b16 %v427
        %v1168 = vunpack.c.l.b16 %v429
        %v1169 = vunpack.c.l.b16 %v430
        %v1170 = vunpack.c.l.b16 %v432
        %v1171 = vunpack.c.l.b16 %v433
        %v1172 = vunpack.c.l.b16 %v435
        %v1173 = vunpack.c.l.b16 %v436
        %v1174 = vunpack.c.l.b16 %v438
        %v1175 = vunpack.c.l.b16 %v439
        %v1176 = vunpack.c.l.b16 %v441
        %v1177 = vunpack.c.l.b16 %v442
        %v1178 = vunpack.c.l.b16 %v444
        %v1179 = vunpack.c.l.b16 %v445
        %v1180 = vunpack.c.l.b16 %v447
        %v1181 = vunpack.c.l.b16 %v448
        %v1182 = vunpack.c.l.b16 %v450
        %v1183 = vunpack.c.l.b16 %v451
        %v1184 = vunpack.c.l.b16 %v453
        %v1185 = vunpack.c.l.b16 %v454
        %v1186 = vpack.c.b16 %v1155, %v1154
        %v1187 = vpack.c.b16 %v1157, %v1156
        %v1188 = vpack.c.b16 %v1159, %v1158
        %v1189 = vpack.c.b16 %v1161, %v1160
        %v1190 = vpack.c.b16 %v1163, %v1162
        %v1191 = vpack.c.b16 %v1165, %v1164
        %v1192 = vpack.c.b16 %v1167, %v1166
        %v1193 = vpack.c.b16 %v1169, %v1168
        %v1194 = vpack.c.b16 %v1171, %v1170
        %v1195 = vpack.c.b16 %v1173, %v1172
        %v1196 = vpack.c.b16 %v1175, %v1174
        %v1197 = vpack.c.b16 %v1177, %v1176
        %v1198 = vpack.c.b16 %v1179, %v1178
        %v1199 = vpack.c.b16 %v1181, %v1180
        %v1200 = vpack.c.b16 %v1183, %v1182
        %v1201 = vpack.c.b16 %v1185, %v1184
        %v1206 = vunpack.c.l.b16 %v456
        %v1207 = vunpack.c.l.b16 %v457
        %v1208 = vunpack.c.l.b16 %v458
        %v1209 = vunpack.c.l.b16 %v459
        %v1210 = vpack.c.b16 %v1207, %v1206
        %v1211 = vpack.c.b16 %v1209, %v1208
        %v1215 = vsel %vm912, %v1186, 0
        %v1218 = vsel %vm912, %v1187, 0
        %v1221 = vsel %vm912, %v1188, 0
        %v1224 = vsel %vm912, %v1189, 0
        %v1227 = vsel %vm912, %v1190, 0
        %v1230 = vsel %vm912, %v1191, 0
        %v1233 = vsel %vm912, %v1192, 0
        %v1236 = vsel %vm912, %v1193, 0
        %v1239 = vsel %vm912, %v1194, 0
        %v1242 = vsel %vm912, %v1195, 0
        %v1245 = vsel %vm912, %v1196, 0
        %v1248 = vsel %vm912, %v1197, 0
        %v1251 = vsel %vm912, %v1198, 0
        %v1254 = vsel %vm912, %v1199, 0
        %v1257 = vsel %vm912, %v1200, 0
        %v1260 = vsel %vm912, %v1201, 0
        %1262 = vmatprep.subr.bf16.mxu0 0
        %1263 = vmatpush1.bf16.msra.mxu0 %v1210
        %1264 = vmatprep.subr.bf16.mxu0 0
        %1265 = vmatpush1.bf16.msra.mxu0 %v1211
        %1266 = vmatprep.subr.bf16.mxu0 0
        %1267 = vmatpush1.bf16.msra.mxu0 0
        %1268 = vmatprep.subr.bf16.mxu0 0
        %1269 = vmatpush1.bf16.msra.mxu0 0
        %1270 = vmatprep.subr.bf16.mxu0 0
        %1271 = vmatpush1.bf16.msra.mxu0 0
        %1272 = vmatprep.subr.bf16.mxu0 0
        %1273 = vmatpush1.bf16.msra.mxu0 0
        %1274 = vmatprep.subr.bf16.mxu0 0
        %1275 = vmatpush1.bf16.msra.mxu0 0
        %1276 = vmatprep.subr.bf16.mxu0 0
        %1277 = vmatpush1.bf16.msra.mxu0 0
        %1278 = vmatprep.subr.bf16.mxu0 0
        %1279 = vmatpush1.bf16.msra.mxu0 0
        %1280 = vmatprep.subr.bf16.mxu0 0
        %1281 = vmatpush1.bf16.msra.mxu0 0
        %1282 = vmatprep.subr.bf16.mxu0 0
        %1283 = vmatpush1.bf16.msra.mxu0 0
        %1284 = vmatprep.subr.bf16.mxu0 0
        %1285 = vmatpush1.bf16.msra.mxu0 0
        %1286 = vmatprep.subr.bf16.mxu0 0
        %1287 = vmatpush1.bf16.msra.mxu0 0
        %1288 = vmatprep.subr.bf16.mxu0 0
        %1289 = vmatpush1.bf16.msra.mxu0 0
        %1290 = vmatprep.subr.bf16.mxu0 0
        %1291 = vmatpush1.bf16.msra.mxu0 0
        %1292 = vmatprep.subr.bf16.mxu0 0
        %1293 = vmatpush1.bf16.msra.mxu0 0
        %1294 = vmatprep.mubr.bf16.mxu0 0
        %1295 = vmatmul.mubr.bf16.gmra.mrb[0].mxu0 %v1215
        %v1296 = vpop.f32.mrb[0].mxu0
        %v1297 = vadd.f32 %v996, %v1296
        %v1298 = vpop.f32.mrb[0].mxu0
        %v1299 = vpop.f32.mrb[0].mxu0
        %v1300 = vadd.f32 %v999, %v1299
        %v1301 = vpop.f32.mrb[0].mxu0
        %1302 = vmatprep.mubr.bf16.mxu0 0
        %1303 = vmatmul.mubr.bf16.gmra.mrb[0].mxu0 %v1218
        %v1304 = vpop.f32.mrb[0].mxu0
        %v1305 = vadd.f32 %v1004, %v1304
        %v1306 = vpop.f32.mrb[0].mxu0
        %v1307 = vpop.f32.mrb[0].mxu0
        %v1308 = vadd.f32 %v1007, %v1307
        %v1309 = vpop.f32.mrb[0].mxu0
        %1310 = vmatprep.mubr.bf16.mxu0 0
        %1311 = vmatmul.mubr.bf16.gmra.mrb[0].mxu0 %v1221
        %v1312 = vpop.f32.mrb[0].mxu0
        %v1313 = vadd.f32 %v1012, %v1312
        %v1314 = vpop.f32.mrb[0].mxu0
        %v1315 = vpop.f32.mrb[0].mxu0
        %v1316 = vadd.f32 %v1015, %v1315
        %v1317 = vpop.f32.mrb[0].mxu0
        %1318 = vmatprep.mubr.bf16.mxu0 0
        %1319 = vmatmul.mubr.bf16.gmra.mrb[0].mxu0 %v1224
        %v1320 = vpop.f32.mrb[0].mxu0
        %v1321 = vadd.f32 %v1020, %v1320
        %v1322 = vpop.f32.mrb[0].mxu0
        %v1323 = vpop.f32.mrb[0].mxu0
        %v1324 = vadd.f32 %v1023, %v1323
        %v1325 = vpop.f32.mrb[0].mxu0
        %1326 = vmatprep.mubr.bf16.mxu0 0
        %1327 = vmatmul.mubr.bf16.gmra.mrb[0].mxu0 %v1227
        %v1328 = vpop.f32.mrb[0].mxu0
        %v1329 = vadd.f32 %v1028, %v1328
        %v1330 = vpop.f32.mrb[0].mxu0
        %v1331 = vpop.f32.mrb[0].mxu0
        %v1332 = vadd.f32 %v1031, %v1331
        %v1333 = vpop.f32.mrb[0].mxu0
        %1334 = vmatprep.mubr.bf16.mxu0 0
        %1335 = vmatmul.mubr.bf16.gmra.mrb[0].mxu0 %v1230
        %v1336 = vpop.f32.mrb[0].mxu0
        %v1337 = vadd.f32 %v1036, %v1336
        %v1338 = vpop.f32.mrb[0].mxu0
        %v1339 = vpop.f32.mrb[0].mxu0
        %v1340 = vadd.f32 %v1039, %v1339
        %v1341 = vpop.f32.mrb[0].mxu0
        %1342 = vmatprep.mubr.bf16.mxu0 0
        %1343 = vmatmul.mubr.bf16.gmra.mrb[0].mxu0 %v1233
        %v1344 = vpop.f32.mrb[0].mxu0
        %v1345 = vadd.f32 %v1044, %v1344
        %v1346 = vpop.f32.mrb[0].mxu0
        %v1347 = vpop.f32.mrb[0].mxu0
        %v1348 = vadd.f32 %v1047, %v1347
        %v1349 = vpop.f32.mrb[0].mxu0
        %1350 = vmatprep.mubr.bf16.mxu0 0
        %1351 = vmatmul.mubr.bf16.gmra.mrb[0].mxu0 %v1236
        %v1352 = vpop.f32.mrb[0].mxu0
        %v1353 = vadd.f32 %v1052, %v1352
        %v1354 = vpop.f32.mrb[0].mxu0
        %v1355 = vpop.f32.mrb[0].mxu0
        %v1356 = vadd.f32 %v1055, %v1355
        %v1357 = vpop.f32.mrb[0].mxu0
        %1358 = vmatprep.mubr.bf16.mxu0 0
        %1359 = vmatmul.mubr.bf16.gmra.mrb[0].mxu0 %v1239
        %v1360 = vpop.f32.mrb[0].mxu0
        %v1361 = vadd.f32 %v1060, %v1360
        %v1362 = vpop.f32.mrb[0].mxu0
        %v1363 = vpop.f32.mrb[0].mxu0
        %v1364 = vadd.f32 %v1063, %v1363
        %v1365 = vpop.f32.mrb[0].mxu0
        %1366 = vmatprep.mubr.bf16.mxu0 0
        %1367 = vmatmul.mubr.bf16.gmra.mrb[0].mxu0 %v1242
        %v1368 = vpop.f32.mrb[0].mxu0
        %v1369 = vadd.f32 %v1068, %v1368
        %v1370 = vpop.f32.mrb[0].mxu0
        %v1371 = vpop.f32.mrb[0].mxu0
        %v1372 = vadd.f32 %v1071, %v1371
        %v1373 = vpop.f32.mrb[0].mxu0
        %1374 = vmatprep.mubr.bf16.mxu0 0
        %1375 = vmatmul.mubr.bf16.gmra.mrb[0].mxu0 %v1245
        %v1376 = vpop.f32.mrb[0].mxu0
        %v1377 = vadd.f32 %v1076, %v1376
        %v1378 = vpop.f32.mrb[0].mxu0
        %v1379 = vpop.f32.mrb[0].mxu0
        %v1380 = vadd.f32 %v1079, %v1379
        %v1381 = vpop.f32.mrb[0].mxu0
        %1382 = vmatprep.mubr.bf16.mxu0 0
        %1383 = vmatmul.mubr.bf16.gmra.mrb[0].mxu0 %v1248
        %v1384 = vpop.f32.mrb[0].mxu0
        %v1385 = vadd.f32 %v1084, %v1384
        %v1386 = vpop.f32.mrb[0].mxu0
        %v1387 = vpop.f32.mrb[0].mxu0
        %v1388 = vadd.f32 %v1087, %v1387
        %v1389 = vpop.f32.mrb[0].mxu0
        %1390 = vmatprep.mubr.bf16.mxu0 0
        %1391 = vmatmul.mubr.bf16.gmra.mrb[0].mxu0 %v1251
        %v1392 = vpop.f32.mrb[0].mxu0
        %v1393 = vadd.f32 %v1092, %v1392
        %v1394 = vpop.f32.mrb[0].mxu0
        %v1395 = vpop.f32.mrb[0].mxu0
        %v1396 = vadd.f32 %v1095, %v1395
        %v1397 = vpop.f32.mrb[0].mxu0
        %1398 = vmatprep.mubr.bf16.mxu0 0
        %1399 = vmatmul.mubr.bf16.gmra.mrb[0].mxu0 %v1254
        %v1400 = vpop.f32.mrb[0].mxu0
        %v1401 = vadd.f32 %v1100, %v1400
        %v1402 = vpop.f32.mrb[0].mxu0
        %v1403 = vpop.f32.mrb[0].mxu0
        %v1404 = vadd.f32 %v1103, %v1403
        %v1405 = vpop.f32.mrb[0].mxu0
        %1406 = vmatprep.mubr.bf16.mxu0 0
        %1407 = vmatmul.mubr.bf16.gmra.mrb[0].mxu0 %v1257
        %v1408 = vpop.f32.mrb[0].mxu0
        %v1409 = vadd.f32 %v1108, %v1408
        %v1410 = vpop.f32.mrb[0].mxu0
        %v1411 = vpop.f32.mrb[0].mxu0
        %v1412 = vadd.f32 %v1111, %v1411
        %v1413 = vpop.f32.mrb[0].mxu0
        %1414 = vmatprep.mubr.bf16.mxu0 0
        %1415 = vmatmul.mubr.bf16.gmra.mrb[0].mxu0 %v1260
        %v1416 = vpop.f32.mrb[0].mxu0
        %v1417 = vadd.f32 %v1116, %v1416
        %v1418 = vpop.f32.mrb[0].mxu0
        %v1419 = vpop.f32.mrb[0].mxu0
        %v1420 = vadd.f32 %v1119, %v1419
        %v1421 = vpop.f32.mrb[0].mxu0
        %1422 = vdwg.mxu0
        %vm1439 = vcmask 1042432
        %vm1440 = vcmask 1046532
        %vm1441 = vmor %vm1439, %vm1440
        %v1442 = vrot.slane %v408, 5
        %v1443 = vrot.slane %v1442, 4
        %v1444 = vrot.slane %v409, 5
        %v1445 = vsel %vm1441, %v1443, %v1444
        %v1446 = vrot.slane %v1444, 4
        %v1447 = vrot.slane %v410, 5
        %v1448 = vsel %vm1441, %v1446, %v1447
        %v1449 = vrot.slane %v411, 5
        %v1450 = vrot.slane %v1449, 4
        %v1451 = vrot.slane %v412, 5
        %v1452 = vsel %vm1441, %v1450, %v1451
        %v1453 = vrot.slane %v1451, 4
        %v1454 = vrot.slane %v413, 5
        %v1455 = vsel %vm1441, %v1453, %v1454
        %v1456 = vrot.slane %v414, 5
        %v1457 = vrot.slane %v1456, 4
        %v1458 = vrot.slane %v415, 5
        %v1459 = vsel %vm1441, %v1457, %v1458
        %v1460 = vrot.slane %v1458, 4
        %v1461 = vrot.slane %v416, 5
        %v1462 = vsel %vm1441, %v1460, %v1461
        %v1463 = vrot.slane %v417, 5
        %v1464 = vrot.slane %v1463, 4
        %v1465 = vrot.slane %v418, 5
        %v1466 = vsel %vm1441, %v1464, %v1465
        %v1467 = vrot.slane %v1465, 4
        %v1468 = vrot.slane %v419, 5
        %v1469 = vsel %vm1441, %v1467, %v1468
        %v1470 = vrot.slane %v420, 5
        %v1471 = vrot.slane %v1470, 4
        %v1472 = vrot.slane %v421, 5
        %v1473 = vsel %vm1441, %v1471, %v1472
        %v1474 = vrot.slane %v1472, 4
        %v1475 = vrot.slane %v422, 5
        %v1476 = vsel %vm1441, %v1474, %v1475
        %v1477 = vrot.slane %v423, 5
        %v1478 = vrot.slane %v1477, 4
        %v1479 = vrot.slane %v424, 5
        %v1480 = vsel %vm1441, %v1478, %v1479
        %v1481 = vrot.slane %v1479, 4
        %v1482 = vrot.slane %v425, 5
        %v1483 = vsel %vm1441, %v1481, %v1482
        %v1484 = vrot.slane %v426, 5
        %v1485 = vrot.slane %v1484, 4
        %v1486 = vrot.slane %v427, 5
        %v1487 = vsel %vm1441, %v1485, %v1486
        %v1488 = vrot.slane %v1486, 4
        %v1489 = vrot.slane %v428, 5
        %v1490 = vsel %vm1441, %v1488, %v1489
        %v1491 = vrot.slane %v429, 5
        %v1492 = vrot.slane %v1491, 4
        %v1493 = vrot.slane %v430, 5
        %v1494 = vsel %vm1441, %v1492, %v1493
        %v1495 = vrot.slane %v1493, 4
        %v1496 = vrot.slane %v431, 5
        %v1497 = vsel %vm1441, %v1495, %v1496
        %v1498 = vrot.slane %v432, 5
        %v1499 = vrot.slane %v1498, 4
        %v1500 = vrot.slane %v433, 5
        %v1501 = vsel %vm1441, %v1499, %v1500
        %v1502 = vrot.slane %v1500, 4
        %v1503 = vrot.slane %v434, 5
        %v1504 = vsel %vm1441, %v1502, %v1503
        %v1505 = vrot.slane %v435, 5
        %v1506 = vrot.slane %v1505, 4
        %v1507 = vrot.slane %v436, 5
        %v1508 = vsel %vm1441, %v1506, %v1507
        %v1509 = vrot.slane %v1507, 4
        %v1510 = vrot.slane %v437, 5
        %v1511 = vsel %vm1441, %v1509, %v1510
        %v1512 = vrot.slane %v438, 5
        %v1513 = vrot.slane %v1512, 4
        %v1514 = vrot.slane %v439, 5
        %v1515 = vsel %vm1441, %v1513, %v1514
        %v1516 = vrot.slane %v1514, 4
        %v1517 = vrot.slane %v440, 5
        %v1518 = vsel %vm1441, %v1516, %v1517
        %v1519 = vrot.slane %v441, 5
        %v1520 = vrot.slane %v1519, 4
        %v1521 = vrot.slane %v442, 5
        %v1522 = vsel %vm1441, %v1520, %v1521
        %v1523 = vrot.slane %v1521, 4
        %v1524 = vrot.slane %v443, 5
        %v1525 = vsel %vm1441, %v1523, %v1524
        %v1526 = vrot.slane %v444, 5
        %v1527 = vrot.slane %v1526, 4
        %v1528 = vrot.slane %v445, 5
        %v1529 = vsel %vm1441, %v1527, %v1528
        %v1530 = vrot.slane %v1528, 4
        %v1531 = vrot.slane %v446, 5
        %v1532 = vsel %vm1441, %v1530, %v1531
        %v1533 = vrot.slane %v447, 5
        %v1534 = vrot.slane %v1533, 4
        %v1535 = vrot.slane %v448, 5
        %v1536 = vsel %vm1441, %v1534, %v1535
        %v1537 = vrot.slane %v1535, 4
        %v1538 = vrot.slane %v449, 5
        %v1539 = vsel %vm1441, %v1537, %v1538
        %v1540 = vrot.slane %v450, 5
        %v1541 = vrot.slane %v1540, 4
        %v1542 = vrot.slane %v451, 5
        %v1543 = vsel %vm1441, %v1541, %v1542
        %v1544 = vrot.slane %v1542, 4
        %v1545 = vrot.slane %v452, 5
        %v1546 = vsel %vm1441, %v1544, %v1545
        %v1547 = vrot.slane %v453, 5
        %v1548 = vrot.slane %v1547, 4
        %v1549 = vrot.slane %v454, 5
        %v1550 = vsel %vm1441, %v1548, %v1549
        %v1551 = vrot.slane %v1549, 4
        %v1552 = vrot.slane %v455, 5
        %v1553 = vsel %vm1441, %v1551, %v1552
        %s1554 = scalar_lea.vmem %s3, 32
        %v1555 = vld [vmem:[%s1554] sm:$0xf]
        %v1556 = vld [vmem:[%s1554 + $0x4] sm:$0xf]
        %v1557 = vld [vmem:[%s1554 + $0x8] sm:$0xf]
        %v1558 = vld [vmem:[%s1554 + $0xc] sm:$0xf]
        %v1559 = vunpack.c.l.b16 %v1445
        %v1560 = vunpack.c.l.b16 %v1448
        %v1561 = vunpack.c.l.b16 %v1452
        %v1562 = vunpack.c.l.b16 %v1455
        %v1563 = vunpack.c.l.b16 %v1459
        %v1564 = vunpack.c.l.b16 %v1462
        %v1565 = vunpack.c.l.b16 %v1466
        %v1566 = vunpack.c.l.b16 %v1469
        %v1567 = vunpack.c.l.b16 %v1473
        %v1568 = vunpack.c.l.b16 %v1476
        %v1569 = vunpack.c.l.b16 %v1480
        %v1570 = vunpack.c.l.b16 %v1483
        %v1571 = vunpack.c.l.b16 %v1487
        %v1572 = vunpack.c.l.b16 %v1490
        %v1573 = vunpack.c.l.b16 %v1494
        %v1574 = vunpack.c.l.b16 %v1497
        %v1575 = vunpack.c.l.b16 %v1501
        %v1576 = vunpack.c.l.b16 %v1504
        %v1577 = vunpack.c.l.b16 %v1508
        %v1578 = vunpack.c.l.b16 %v1511
        %v1579 = vunpack.c.l.b16 %v1515
        %v1580 = vunpack.c.l.b16 %v1518
        %v1581 = vunpack.c.l.b16 %v1522
        %v1582 = vunpack.c.l.b16 %v1525
        %v1583 = vunpack.c.l.b16 %v1529
        %v1584 = vunpack.c.l.b16 %v1532
        %v1585 = vunpack.c.l.b16 %v1536
        %v1586 = vunpack.c.l.b16 %v1539
        %v1587 = vunpack.c.l.b16 %v1543
        %v1588 = vunpack.c.l.b16 %v1546
        %v1589 = vunpack.c.l.b16 %v1550
        %v1590 = vunpack.c.l.b16 %v1553
        %v1591 = vpack.c.b16 %v1560, %v1559
        %v1592 = vpack.c.b16 %v1562, %v1561
        %v1593 = vpack.c.b16 %v1564, %v1563
        %v1594 = vpack.c.b16 %v1566, %v1565
        %v1595 = vpack.c.b16 %v1568, %v1567
        %v1596 = vpack.c.b16 %v1570, %v1569
        %v1597 = vpack.c.b16 %v1572, %v1571
        %v1598 = vpack.c.b16 %v1574, %v1573
        %v1599 = vpack.c.b16 %v1576, %v1575
        %v1600 = vpack.c.b16 %v1578, %v1577
        %v1601 = vpack.c.b16 %v1580, %v1579
        %v1602 = vpack.c.b16 %v1582, %v1581
        %v1603 = vpack.c.b16 %v1584, %v1583
        %v1604 = vpack.c.b16 %v1586, %v1585
        %v1605 = vpack.c.b16 %v1588, %v1587
        %v1606 = vpack.c.b16 %v1590, %v1589
        %v1611 = vunpack.c.l.b16 %v1555
        %v1612 = vunpack.c.l.b16 %v1556
        %v1613 = vunpack.c.l.b16 %v1557
        %v1614 = vunpack.c.l.b16 %v1558
        %v1615 = vpack.c.b16 %v1612, %v1611
        %v1616 = vpack.c.b16 %v1614, %v1613
        %v1620 = vsel %vm912, %v1591, 0
        %v1623 = vsel %vm912, %v1592, 0
        %v1626 = vsel %vm912, %v1593, 0
        %v1629 = vsel %vm912, %v1594, 0
        %v1632 = vsel %vm912, %v1595, 0
        %v1635 = vsel %vm912, %v1596, 0
        %v1638 = vsel %vm912, %v1597, 0
        %v1641 = vsel %vm912, %v1598, 0
        %v1644 = vsel %vm912, %v1599, 0
        %v1647 = vsel %vm912, %v1600, 0
        %v1650 = vsel %vm912, %v1601, 0
        %v1653 = vsel %vm912, %v1602, 0
        %v1656 = vsel %vm912, %v1603, 0
        %v1659 = vsel %vm912, %v1604, 0
        %v1662 = vsel %vm912, %v1605, 0
        %v1665 = vsel %vm912, %v1606, 0
        %1667 = vmatprep.subr.bf16.mxu0 0
        %1668 = vmatpush1.bf16.msra.mxu0 %v1615
        %1669 = vmatprep.subr.bf16.mxu0 0
        %1670 = vmatpush1.bf16.msra.mxu0 %v1616
        %1671 = vmatprep.subr.bf16.mxu0 0
        %1672 = vmatpush1.bf16.msra.mxu0 0
        %1673 = vmatprep.subr.bf16.mxu0 0
        %1674 = vmatpush1.bf16.msra.mxu0 0
        %1675 = vmatprep.subr.bf16.mxu0 0
        %1676 = vmatpush1.bf16.msra.mxu0 0
        %1677 = vmatprep.subr.bf16.mxu0 0
        %1678 = vmatpush1.bf16.msra.mxu0 0
        %1679 = vmatprep.subr.bf16.mxu0 0
        %1680 = vmatpush1.bf16.msra.mxu0 0
        %1681 = vmatprep.subr.bf16.mxu0 0
        %1682 = vmatpush1.bf16.msra.mxu0 0
        %1683 = vmatprep.subr.bf16.mxu0 0
        %1684 = vmatpush1.bf16.msra.mxu0 0
        %1685 = vmatprep.subr.bf16.mxu0 0
        %1686 = vmatpush1.bf16.msra.mxu0 0
        %1687 = vmatprep.subr.bf16.mxu0 0
        %1688 = vmatpush1.bf16.msra.mxu0 0
        %1689 = vmatprep.subr.bf16.mxu0 0
        %1690 = vmatpush1.bf16.msra.mxu0 0
        %1691 = vmatprep.subr.bf16.mxu0 0
        %1692 = vmatpush1.bf16.msra.mxu0 0
        %1693 = vmatprep.subr.bf16.mxu0 0
        %1694 = vmatpush1.bf16.msra.mxu0 0
        %1695 = vmatprep.subr.bf16.mxu0 0
        %1696 = vmatpush1.bf16.msra.mxu0 0
        %1697 = vmatprep.subr.bf16.mxu0 0
        %1698 = vmatpush1.bf16.msra.mxu0 0
        %1699 = vmatprep.mubr.bf16.mxu0 0
        %1700 = vmatmul.mubr.bf16.gmra.mrb[0].mxu0 %v1620
        %v1701 = vpop.f32.mrb[0].mxu0
        %v1702 = vadd.f32 0.0, %v1701
        %v1703 = vpop.f32.mrb[0].mxu0
        %v1704 = vpop.f32.mrb[0].mxu0
        %v1705 = vadd.f32 0.0, %v1704
        %v1706 = vpop.f32.mrb[0].mxu0
        %1707 = vmatprep.mubr.bf16.mxu0 0
        %1708 = vmatmul.mubr.bf16.gmra.mrb[0].mxu0 %v1623
        %v1709 = vpop.f32.mrb[0].mxu0
        %v1710 = vadd.f32 0.0, %v1709
        %v1711 = vpop.f32.mrb[0].mxu0
        %v1712 = vpop.f32.mrb[0].mxu0
        %v1713 = vadd.f32 0.0, %v1712
        %v1714 = vpop.f32.mrb[0].mxu0
        %1715 = vmatprep.mubr.bf16.mxu0 0
        %1716 = vmatmul.mubr.bf16.gmra.mrb[0].mxu0 %v1626
        %v1717 = vpop.f32.mrb[0].mxu0
        %v1718 = vadd.f32 0.0, %v1717
        %v1719 = vpop.f32.mrb[0].mxu0
        %v1720 = vpop.f32.mrb[0].mxu0
        %v1721 = vadd.f32 0.0, %v1720
        %v1722 = vpop.f32.mrb[0].mxu0
        %1723 = vmatprep.mubr.bf16.mxu0 0
        %1724 = vmatmul.mubr.bf16.gmra.mrb[0].mxu0 %v1629
        %v1725 = vpop.f32.mrb[0].mxu0
        %v1726 = vadd.f32 0.0, %v1725
        %v1727 = vpop.f32.mrb[0].mxu0
        %v1728 = vpop.f32.mrb[0].mxu0
        %v1729 = vadd.f32 0.0, %v1728
        %v1730 = vpop.f32.mrb[0].mxu0
        %1731 = vmatprep.mubr.bf16.mxu0 0
        %1732 = vmatmul.mubr.bf16.gmra.mrb[0].mxu0 %v1632
        %v1733 = vpop.f32.mrb[0].mxu0
        %v1734 = vadd.f32 0.0, %v1733
        %v1735 = vpop.f32.mrb[0].mxu0
        %v1736 = vpop.f32.mrb[0].mxu0
        %v1737 = vadd.f32 0.0, %v1736
        %v1738 = vpop.f32.mrb[0].mxu0
        %1739 = vmatprep.mubr.bf16.mxu0 0
        %1740 = vmatmul.mubr.bf16.gmra.mrb[0].mxu0 %v1635
        %v1741 = vpop.f32.mrb[0].mxu0
        %v1742 = vadd.f32 0.0, %v1741
        %v1743 = vpop.f32.mrb[0].mxu0
        %v1744 = vpop.f32.mrb[0].mxu0
        %v1745 = vadd.f32 0.0, %v1744
        %v1746 = vpop.f32.mrb[0].mxu0
        %1747 = vmatprep.mubr.bf16.mxu0 0
        %1748 = vmatmul.mubr.bf16.gmra.mrb[0].mxu0 %v1638
        %v1749 = vpop.f32.mrb[0].mxu0
        %v1750 = vadd.f32 0.0, %v1749
        %v1751 = vpop.f32.mrb[0].mxu0
        %v1752 = vpop.f32.mrb[0].mxu0
        %v1753 = vadd.f32 0.0, %v1752
        %v1754 = vpop.f32.mrb[0].mxu0
        %1755 = vmatprep.mubr.bf16.mxu0 0
        %1756 = vmatmul.mubr.bf16.gmra.mrb[0].mxu0 %v1641
        %v1757 = vpop.f32.mrb[0].mxu0
        %v1758 = vadd.f32 0.0, %v1757
        %v1759 = vpop.f32.mrb[0].mxu0
        %v1760 = vpop.f32.mrb[0].mxu0
        %v1761 = vadd.f32 0.0, %v1760
        %v1762 = vpop.f32.mrb[0].mxu0
        %1763 = vmatprep.mubr.bf16.mxu0 0
        %1764 = vmatmul.mubr.bf16.gmra.mrb[0].mxu0 %v1644
        %v1765 = vpop.f32.mrb[0].mxu0
        %v1766 = vadd.f32 0.0, %v1765
        %v1767 = vpop.f32.mrb[0].mxu0
        %v1768 = vpop.f32.mrb[0].mxu0
        %v1769 = vadd.f32 0.0, %v1768
        %v1770 = vpop.f32.mrb[0].mxu0
        %1771 = vmatprep.mubr.bf16.mxu0 0
        %1772 = vmatmul.mubr.bf16.gmra.mrb[0].mxu0 %v1647
        %v1773 = vpop.f32.mrb[0].mxu0
        %v1774 = vadd.f32 0.0, %v1773
        %v1775 = vpop.f32.mrb[0].mxu0
        %v1776 = vpop.f32.mrb[0].mxu0
        %v1777 = vadd.f32 0.0, %v1776
        %v1778 = vpop.f32.mrb[0].mxu0
        %1779 = vmatprep.mubr.bf16.mxu0 0
        %1780 = vmatmul.mubr.bf16.gmra.mrb[0].mxu0 %v1650
        %v1781 = vpop.f32.mrb[0].mxu0
        %v1782 = vadd.f32 0.0, %v1781
        %v1783 = vpop.f32.mrb[0].mxu0
        %v1784 = vpop.f32.mrb[0].mxu0
        %v1785 = vadd.f32 0.0, %v1784
        %v1786 = vpop.f32.mrb[0].mxu0
        %1787 = vmatprep.mubr.bf16.mxu0 0
        %1788 = vmatmul.mubr.bf16.gmra.mrb[0].mxu0 %v1653
        %v1789 = vpop.f32.mrb[0].mxu0
        %v1790 = vadd.f32 0.0, %v1789
        %v1791 = vpop.f32.mrb[0].mxu0
        %v1792 = vpop.f32.mrb[0].mxu0
        %v1793 = vadd.f32 0.0, %v1792
        %v1794 = vpop.f32.mrb[0].mxu0
        %1795 = vmatprep.mubr.bf16.mxu0 0
        %1796 = vmatmul.mubr.bf16.gmra.mrb[0].mxu0 %v1656
        %v1797 = vpop.f32.mrb[0].mxu0
        %v1798 = vadd.f32 0.0, %v1797
        %v1799 = vpop.f32.mrb[0].mxu0
        %v1800 = vpop.f32.mrb[0].mxu0
        %v1801 = vadd.f32 0.0, %v1800
        %v1802 = vpop.f32.mrb[0].mxu0
        %1803 = vmatprep.mubr.bf16.mxu0 0
        %1804 = vmatmul.mubr.bf16.gmra.mrb[0].mxu0 %v1659
        %v1805 = vpop.f32.mrb[0].mxu0
        %v1806 = vadd.f32 0.0, %v1805
        %v1807 = vpop.f32.mrb[0].mxu0
        %v1808 = vpop.f32.mrb[0].mxu0
        %v1809 = vadd.f32 0.0, %v1808
        %v1810 = vpop.f32.mrb[0].mxu0
        %1811 = vmatprep.mubr.bf16.mxu0 0
        %1812 = vmatmul.mubr.bf16.gmra.mrb[0].mxu0 %v1662
        %v1813 = vpop.f32.mrb[0].mxu0
        %v1814 = vadd.f32 0.0, %v1813
        %v1815 = vpop.f32.mrb[0].mxu0
        %v1816 = vpop.f32.mrb[0].mxu0
        %v1817 = vadd.f32 0.0, %v1816
        %v1818 = vpop.f32.mrb[0].mxu0
        %1819 = vmatprep.mubr.bf16.mxu0 0
        %1820 = vmatmul.mubr.bf16.gmra.mrb[0].mxu0 %v1665
        %v1821 = vpop.f32.mrb[0].mxu0
        %v1822 = vadd.f32 0.0, %v1821
        %v1823 = vpop.f32.mrb[0].mxu0
        %v1824 = vpop.f32.mrb[0].mxu0
        %v1825 = vadd.f32 0.0, %v1824
        %v1826 = vpop.f32.mrb[0].mxu0
        %1827 = vdwg.mxu0
        %v1828 = vadd.f32 %v1297, %v1702
        %v1829 = vadd.f32 %v1300, %v1705
        %v1830 = vadd.f32 %v1305, %v1710
        %v1831 = vadd.f32 %v1308, %v1713
        %v1832 = vadd.f32 %v1313, %v1718
        %v1833 = vadd.f32 %v1316, %v1721
        %v1834 = vadd.f32 %v1321, %v1726
        %v1835 = vadd.f32 %v1324, %v1729
        %v1836 = vadd.f32 %v1329, %v1734
        %v1837 = vadd.f32 %v1332, %v1737
        %v1838 = vadd.f32 %v1337, %v1742
        %v1839 = vadd.f32 %v1340, %v1745
        %v1840 = vadd.f32 %v1345, %v1750
        %v1841 = vadd.f32 %v1348, %v1753
        %v1842 = vadd.f32 %v1353, %v1758
        %v1843 = vadd.f32 %v1356, %v1761
        %v1844 = vadd.f32 %v1361, %v1766
        %v1845 = vadd.f32 %v1364, %v1769
        %v1846 = vadd.f32 %v1369, %v1774
        %v1847 = vadd.f32 %v1372, %v1777
        %v1848 = vadd.f32 %v1377, %v1782
        %v1849 = vadd.f32 %v1380, %v1785
        %v1850 = vadd.f32 %v1385, %v1790
        %v1851 = vadd.f32 %v1388, %v1793
        %v1852 = vadd.f32 %v1393, %v1798
        %v1853 = vadd.f32 %v1396, %v1801
        %v1854 = vadd.f32 %v1401, %v1806
        %v1855 = vadd.f32 %v1404, %v1809
        %v1856 = vadd.f32 %v1409, %v1814
        %v1857 = vadd.f32 %v1412, %v1817
        %v1858 = vadd.f32 %v1417, %v1822
        %v1859 = vadd.f32 %v1420, %v1825
        %v1860 = vld [vmem:[%s9] sm:$0x1]
        %v1861 = vlaneseq
        %v1862 = vshrl.u32 %v1861, 7
        %v1863 = vsub.s32 0, %v1862
        %v1864 = vrot.slane %v1860, %v1863
        %v1865 = vadd.f32 %v1828, %v1864
        %v1866 = vadd.f32 %v1829, %v1864
        %v1867 = vadd.f32 %v1830, %v1864
        %v1868 = vadd.f32 %v1831, %v1864
        %v1869 = vadd.f32 %v1832, %v1864
        %v1870 = vadd.f32 %v1833, %v1864
        %v1871 = vadd.f32 %v1834, %v1864
        %v1872 = vadd.f32 %v1835, %v1864
        %v1873 = vadd.f32 %v1836, %v1864
        %v1874 = vadd.f32 %v1837, %v1864
        %v1875 = vadd.f32 %v1838, %v1864
        %v1876 = vadd.f32 %v1839, %v1864
        %v1877 = vadd.f32 %v1840, %v1864
        %v1878 = vadd.f32 %v1841, %v1864
        %v1879 = vadd.f32 %v1842, %v1864
        %v1880 = vadd.f32 %v1843, %v1864
        %v1881 = vadd.f32 %v1844, %v1864
        %v1882 = vadd.f32 %v1845, %v1864
        %v1883 = vadd.f32 %v1846, %v1864
        %v1884 = vadd.f32 %v1847, %v1864
        %v1885 = vadd.f32 %v1848, %v1864
        %v1886 = vadd.f32 %v1849, %v1864
        %v1887 = vadd.f32 %v1850, %v1864
        %v1888 = vadd.f32 %v1851, %v1864
        %v1889 = vadd.f32 %v1852, %v1864
        %v1890 = vadd.f32 %v1853, %v1864
        %v1891 = vadd.f32 %v1854, %v1864
        %v1892 = vadd.f32 %v1855, %v1864
        %v1893 = vadd.f32 %v1856, %v1864
        %v1894 = vadd.f32 %v1857, %v1864
        %v1895 = vadd.f32 %v1858, %v1864
        %v1896 = vadd.f32 %v1859, %v1864
        %v1897 = vmax.f32 %v1865, 0.0
        %v1898 = vmax.f32 %v1866, 0.0
        %v1899 = vmax.f32 %v1867, 0.0
        %v1900 = vmax.f32 %v1868, 0.0
        %v1901 = vmax.f32 %v1869, 0.0
        %v1902 = vmax.f32 %v1870, 0.0
        %v1903 = vmax.f32 %v1871, 0.0
        %v1904 = vmax.f32 %v1872, 0.0
        %v1905 = vmax.f32 %v1873, 0.0
        %v1906 = vmax.f32 %v1874, 0.0
        %v1907 = vmax.f32 %v1875, 0.0
        %v1908 = vmax.f32 %v1876, 0.0
        %v1909 = vmax.f32 %v1877, 0.0
        %v1910 = vmax.f32 %v1878, 0.0
        %v1911 = vmax.f32 %v1879, 0.0
        %v1912 = vmax.f32 %v1880, 0.0
        %v1913 = vmax.f32 %v1881, 0.0
        %v1914 = vmax.f32 %v1882, 0.0
        %v1915 = vmax.f32 %v1883, 0.0
        %v1916 = vmax.f32 %v1884, 0.0
        %v1917 = vmax.f32 %v1885, 0.0
        %v1918 = vmax.f32 %v1886, 0.0
        %v1919 = vmax.f32 %v1887, 0.0
        %v1920 = vmax.f32 %v1888, 0.0
        %v1921 = vmax.f32 %v1889, 0.0
        %v1922 = vmax.f32 %v1890, 0.0
        %v1923 = vmax.f32 %v1891, 0.0
        %v1924 = vmax.f32 %v1892, 0.0
        %v1925 = vmax.f32 %v1893, 0.0
        %v1926 = vmax.f32 %v1894, 0.0
        %v1927 = vmax.f32 %v1895, 0.0
        %v1928 = vmax.f32 %v1896, 0.0
        %v1929 = vld [vmem:[%s6] sm:$0xf]
        %v1930 = vld [vmem:[%s6 + $0x4] sm:$0xf]
        %v1931 = vld [vmem:[%s6 + $0x8] sm:$0xf]
        %v1932 = vld [vmem:[%s6 + $0xc] sm:$0xf]
        %v1933 = vld [vmem:[%s6 + $0x10] sm:$0xf]
        %v1934 = vld [vmem:[%s6 + $0x14] sm:$0xf]
        %v1935 = vld [vmem:[%s6 + $0x18] sm:$0xf]
        %v1936 = vld [vmem:[%s6 + $0x1c] sm:$0xf]
        %v1937 = vpack.c.bf16 %v1898, %v1897
        %v1938 = vpack.c.bf16 %v1900, %v1899
        %v1939 = vpack.c.bf16 %v1902, %v1901
        %v1940 = vpack.c.bf16 %v1904, %v1903
        %v1941 = vpack.c.bf16 %v1906, %v1905
        %v1942 = vpack.c.bf16 %v1908, %v1907
        %v1943 = vpack.c.bf16 %v1910, %v1909
        %v1944 = vpack.c.bf16 %v1912, %v1911
        %v1945 = vpack.c.bf16 %v1914, %v1913
        %v1946 = vpack.c.bf16 %v1916, %v1915
        %v1947 = vpack.c.bf16 %v1918, %v1917
        %v1948 = vpack.c.bf16 %v1920, %v1919
        %v1949 = vpack.c.bf16 %v1922, %v1921
        %v1950 = vpack.c.bf16 %v1924, %v1923
        %v1951 = vpack.c.bf16 %v1926, %v1925
        %v1952 = vpack.c.bf16 %v1928, %v1927
        %v1953 = vld [vmem:[%s9 + $0xd] sm:$0x1]
        %v1954 = vlaneseq
        %v1955 = vshrl.u32 %v1954, 7
        %v1956 = vsub.s32 0, %v1955
        %v1957 = vrot.slane %v1953, %v1956
        %v1966 = vunpack.c.l.b16 %v1929
        %v1967 = vunpack.c.l.b16 %v1930
        %v1968 = vunpack.c.l.b16 %v1931
        %v1969 = vunpack.c.l.b16 %v1932
        %v1970 = vunpack.c.l.b16 %v1933
        %v1971 = vunpack.c.l.b16 %v1934
        %v1972 = vunpack.c.l.b16 %v1935
        %v1973 = vunpack.c.l.b16 %v1936
        %v1974 = vpack.c.b16 %v1967, %v1966
        %v1975 = vpack.c.b16 %v1969, %v1968
        %v1976 = vpack.c.b16 %v1971, %v1970
        %v1977 = vpack.c.b16 %v1973, %v1972
        %vm1982 = vcmask 523264
        %v1984 = vsel %vm1982, %v1937, 0
        %v1987 = vsel %vm1982, %v1938, 0
        %v1990 = vsel %vm1982, %v1939, 0
        %v1993 = vsel %vm1982, %v1940, 0
        %v1996 = vsel %vm1982, %v1941, 0
        %v1999 = vsel %vm1982, %v1942, 0
        %v2002 = vsel %vm1982, %v1943, 0
        %v2005 = vsel %vm1982, %v1944, 0
        %v2008 = vsel %vm1982, %v1945, 0
        %v2011 = vsel %vm1982, %v1946, 0
        %v2014 = vsel %vm1982, %v1947, 0
        %v2017 = vsel %vm1982, %v1948, 0
        %v2020 = vsel %vm1982, %v1949, 0
        %v2023 = vsel %vm1982, %v1950, 0
        %v2026 = vsel %vm1982, %v1951, 0
        %v2029 = vsel %vm1982, %v1952, 0
        %2031 = vmatprep.subr.bf16.mxu0 0
        %2032 = vmatpush1.bf16.msra.mxu0 %v1974
        %2033 = vmatprep.subr.bf16.mxu0 0
        %2034 = vmatpush1.bf16.msra.mxu0 %v1975
        %2035 = vmatprep.subr.bf16.mxu0 0
        %2036 = vmatpush1.bf16.msra.mxu0 %v1976
        %2037 = vmatprep.subr.bf16.mxu0 0
        %2038 = vmatpush1.bf16.msra.mxu0 %v1977
        %2039 = vmatprep.subr.bf16.mxu0 0
        %2040 = vmatpush1.bf16.msra.mxu0 0
        %2041 = vmatprep.subr.bf16.mxu0 0
        %2042 = vmatpush1.bf16.msra.mxu0 0
        %2043 = vmatprep.subr.bf16.mxu0 0
        %2044 = vmatpush1.bf16.msra.mxu0 0
        %2045 = vmatprep.subr.bf16.mxu0 0
        %2046 = vmatpush1.bf16.msra.mxu0 0
        %2047 = vmatprep.subr.bf16.mxu0 0
        %2048 = vmatpush1.bf16.msra.mxu0 0
        %2049 = vmatprep.subr.bf16.mxu0 0
        %2050 = vmatpush1.bf16.msra.mxu0 0
        %2051 = vmatprep.subr.bf16.mxu0 0
        %2052 = vmatpush1.bf16.msra.mxu0 0
        %2053 = vmatprep.subr.bf16.mxu0 0
        %2054 = vmatpush1.bf16.msra.mxu0 0
        %2055 = vmatprep.subr.bf16.mxu0 0
        %2056 = vmatpush1.bf16.msra.mxu0 0
        %2057 = vmatprep.subr.bf16.mxu0 0
        %2058 = vmatpush1.bf16.msra.mxu0 0
        %2059 = vmatprep.subr.bf16.mxu0 0
        %2060 = vmatpush1.bf16.msra.mxu0 0
        %2061 = vmatprep.subr.bf16.mxu0 0
        %2062 = vmatpush1.bf16.msra.mxu0 0
        %2063 = vmatprep.mubr.bf16.mxu0 0
        %2064 = vmatmul.mubr.bf16.gmra.mrb[0].mxu0 %v1984
        %v2065 = vpop.f32.mrb[0].mxu0
        %v2066 = vadd.f32 %v1957, %v2065
        %v2067 = vpop.f32.mrb[0].mxu0
        %v2068 = vpop.f32.mrb[0].mxu0
        %v2069 = vadd.f32 %v1957, %v2068
        %v2070 = vpop.f32.mrb[0].mxu0
        %2071 = vmatprep.mubr.bf16.mxu0 0
        %2072 = vmatmul.mubr.bf16.gmra.mrb[0].mxu0 %v1987
        %v2073 = vpop.f32.mrb[0].mxu0
        %v2074 = vadd.f32 %v1957, %v2073
        %v2075 = vpop.f32.mrb[0].mxu0
        %v2076 = vpop.f32.mrb[0].mxu0
        %v2077 = vadd.f32 %v1957, %v2076
        %v2078 = vpop.f32.mrb[0].mxu0
        %2079 = vmatprep.mubr.bf16.mxu0 0
        %2080 = vmatmul.mubr.bf16.gmra.mrb[0].mxu0 %v1990
        %v2081 = vpop.f32.mrb[0].mxu0
        %v2082 = vadd.f32 %v1957, %v2081
        %v2083 = vpop.f32.mrb[0].mxu0
        %v2084 = vpop.f32.mrb[0].mxu0
        %v2085 = vadd.f32 %v1957, %v2084
        %v2086 = vpop.f32.mrb[0].mxu0
        %2087 = vmatprep.mubr.bf16.mxu0 0
        %2088 = vmatmul.mubr.bf16.gmra.mrb[0].mxu0 %v1993
        %v2089 = vpop.f32.mrb[0].mxu0
        %v2090 = vadd.f32 %v1957, %v2089
        %v2091 = vpop.f32.mrb[0].mxu0
        %v2092 = vpop.f32.mrb[0].mxu0
        %v2093 = vadd.f32 %v1957, %v2092
        %v2094 = vpop.f32.mrb[0].mxu0
        %2095 = vmatprep.mubr.bf16.mxu0 0
        %2096 = vmatmul.mubr.bf16.gmra.mrb[0].mxu0 %v1996
        %v2097 = vpop.f32.mrb[0].mxu0
        %v2098 = vadd.f32 %v1957, %v2097
        %v2099 = vpop.f32.mrb[0].mxu0
        %v2100 = vpop.f32.mrb[0].mxu0
        %v2101 = vadd.f32 %v1957, %v2100
        %v2102 = vpop.f32.mrb[0].mxu0
        %2103 = vmatprep.mubr.bf16.mxu0 0
        %2104 = vmatmul.mubr.bf16.gmra.mrb[0].mxu0 %v1999
        %v2105 = vpop.f32.mrb[0].mxu0
        %v2106 = vadd.f32 %v1957, %v2105
        %v2107 = vpop.f32.mrb[0].mxu0
        %v2108 = vpop.f32.mrb[0].mxu0
        %v2109 = vadd.f32 %v1957, %v2108
        %v2110 = vpop.f32.mrb[0].mxu0
        %2111 = vmatprep.mubr.bf16.mxu0 0
        %2112 = vmatmul.mubr.bf16.gmra.mrb[0].mxu0 %v2002
        %v2113 = vpop.f32.mrb[0].mxu0
        %v2114 = vadd.f32 %v1957, %v2113
        %v2115 = vpop.f32.mrb[0].mxu0
        %v2116 = vpop.f32.mrb[0].mxu0
        %v2117 = vadd.f32 %v1957, %v2116
        %v2118 = vpop.f32.mrb[0].mxu0
        %2119 = vmatprep.mubr.bf16.mxu0 0
        %2120 = vmatmul.mubr.bf16.gmra.mrb[0].mxu0 %v2005
        %v2121 = vpop.f32.mrb[0].mxu0
        %v2122 = vadd.f32 %v1957, %v2121
        %v2123 = vpop.f32.mrb[0].mxu0
        %v2124 = vpop.f32.mrb[0].mxu0
        %v2125 = vadd.f32 %v1957, %v2124
        %v2126 = vpop.f32.mrb[0].mxu0
        %2127 = vmatprep.mubr.bf16.mxu0 0
        %2128 = vmatmul.mubr.bf16.gmra.mrb[0].mxu0 %v2008
        %v2129 = vpop.f32.mrb[0].mxu0
        %v2130 = vadd.f32 %v1957, %v2129
        %v2131 = vpop.f32.mrb[0].mxu0
        %v2132 = vpop.f32.mrb[0].mxu0
        %v2133 = vadd.f32 %v1957, %v2132
        %v2134 = vpop.f32.mrb[0].mxu0
        %2135 = vmatprep.mubr.bf16.mxu0 0
        %2136 = vmatmul.mubr.bf16.gmra.mrb[0].mxu0 %v2011
        %v2137 = vpop.f32.mrb[0].mxu0
        %v2138 = vadd.f32 %v1957, %v2137
        %v2139 = vpop.f32.mrb[0].mxu0
        %v2140 = vpop.f32.mrb[0].mxu0
        %v2141 = vadd.f32 %v1957, %v2140
        %v2142 = vpop.f32.mrb[0].mxu0
        %2143 = vmatprep.mubr.bf16.mxu0 0
        %2144 = vmatmul.mubr.bf16.gmra.mrb[0].mxu0 %v2014
        %v2145 = vpop.f32.mrb[0].mxu0
        %v2146 = vadd.f32 %v1957, %v2145
        %v2147 = vpop.f32.mrb[0].mxu0
        %v2148 = vpop.f32.mrb[0].mxu0
        %v2149 = vadd.f32 %v1957, %v2148
        %v2150 = vpop.f32.mrb[0].mxu0
        %2151 = vmatprep.mubr.bf16.mxu0 0
        %2152 = vmatmul.mubr.bf16.gmra.mrb[0].mxu0 %v2017
        %v2153 = vpop.f32.mrb[0].mxu0
        %v2154 = vadd.f32 %v1957, %v2153
        %v2155 = vpop.f32.mrb[0].mxu0
        %v2156 = vpop.f32.mrb[0].mxu0
        %v2157 = vadd.f32 %v1957, %v2156
        %v2158 = vpop.f32.mrb[0].mxu0
        %2159 = vmatprep.mubr.bf16.mxu0 0
        %2160 = vmatmul.mubr.bf16.gmra.mrb[0].mxu0 %v2020
        %v2161 = vpop.f32.mrb[0].mxu0
        %v2162 = vadd.f32 %v1957, %v2161
        %v2163 = vpop.f32.mrb[0].mxu0
        %v2164 = vpop.f32.mrb[0].mxu0
        %v2165 = vadd.f32 %v1957, %v2164
        %v2166 = vpop.f32.mrb[0].mxu0
        %2167 = vmatprep.mubr.bf16.mxu0 0
        %2168 = vmatmul.mubr.bf16.gmra.mrb[0].mxu0 %v2023
        %v2169 = vpop.f32.mrb[0].mxu0
        %v2170 = vadd.f32 %v1957, %v2169
        %v2171 = vpop.f32.mrb[0].mxu0
        %v2172 = vpop.f32.mrb[0].mxu0
        %v2173 = vadd.f32 %v1957, %v2172
        %v2174 = vpop.f32.mrb[0].mxu0
        %2175 = vmatprep.mubr.bf16.mxu0 0
        %2176 = vmatmul.mubr.bf16.gmra.mrb[0].mxu0 %v2026
        %v2177 = vpop.f32.mrb[0].mxu0
        %v2178 = vadd.f32 %v1957, %v2177
        %v2179 = vpop.f32.mrb[0].mxu0
        %v2180 = vpop.f32.mrb[0].mxu0
        %v2181 = vadd.f32 %v1957, %v2180
        %v2182 = vpop.f32.mrb[0].mxu0
        %2183 = vmatprep.mubr.bf16.mxu0 0
        %2184 = vmatmul.mubr.bf16.gmra.mrb[0].mxu0 %v2029
        %v2185 = vpop.f32.mrb[0].mxu0
        %v2186 = vadd.f32 %v1957, %v2185
        %v2187 = vpop.f32.mrb[0].mxu0
        %v2188 = vpop.f32.mrb[0].mxu0
        %v2189 = vadd.f32 %v1957, %v2188
        %v2190 = vpop.f32.mrb[0].mxu0
        %2191 = vdwg.mxu0
        %v2192 = vtanh.pop %v2066
        %v2193 = vtanh.pop %v2069
        %v2194 = vtanh.pop %v2074
        %v2195 = vtanh.pop %v2077
        %v2196 = vtanh.pop %v2082
        %v2197 = vtanh.pop %v2085
        %v2198 = vtanh.pop %v2090
        %v2199 = vtanh.pop %v2093
        %v2200 = vtanh.pop %v2098
        %v2201 = vtanh.pop %v2101
        %v2202 = vtanh.pop %v2106
        %v2203 = vtanh.pop %v2109
        %v2204 = vtanh.pop %v2114
        %v2205 = vtanh.pop %v2117
        %v2206 = vtanh.pop %v2122
        %v2207 = vtanh.pop %v2125
        %v2208 = vtanh.pop %v2130
        %v2209 = vtanh.pop %v2133
        %v2210 = vtanh.pop %v2138
        %v2211 = vtanh.pop %v2141
        %v2212 = vtanh.pop %v2146
        %v2213 = vtanh.pop %v2149
        %v2214 = vtanh.pop %v2154
        %v2215 = vtanh.pop %v2157
        %v2216 = vtanh.pop %v2162
        %v2217 = vtanh.pop %v2165
        %v2218 = vtanh.pop %v2170
        %v2219 = vtanh.pop %v2173
        %v2220 = vtanh.pop %v2178
        %v2221 = vtanh.pop %v2181
        %v2222 = vtanh.pop %v2186
        %v2223 = vtanh.pop %v2189
        %v2224 = vld [vmem:[%s9 + $0xe] sm:$0x1]
        %v2225 = vlaneseq
        %v2226 = vshrl.u32 %v2225, 7
        %v2227 = vsub.s32 0, %v2226
        %v2228 = vrot.slane %v2224, %v2227
        %v2229 = vmul.f32 %v2192, %v2228
        %v2230 = vmul.f32 %v2193, %v2228
        %v2231 = vmul.f32 %v2194, %v2228
        %v2232 = vmul.f32 %v2195, %v2228
        %v2233 = vmul.f32 %v2196, %v2228
        %v2234 = vmul.f32 %v2197, %v2228
        %v2235 = vmul.f32 %v2198, %v2228
        %v2236 = vmul.f32 %v2199, %v2228
        %v2237 = vmul.f32 %v2200, %v2228
        %v2238 = vmul.f32 %v2201, %v2228
        %v2239 = vmul.f32 %v2202, %v2228
        %v2240 = vmul.f32 %v2203, %v2228
        %v2241 = vmul.f32 %v2204, %v2228
        %v2242 = vmul.f32 %v2205, %v2228
        %v2243 = vmul.f32 %v2206, %v2228
        %v2244 = vmul.f32 %v2207, %v2228
        %v2245 = vmul.f32 %v2208, %v2228
        %v2246 = vmul.f32 %v2209, %v2228
        %v2247 = vmul.f32 %v2210, %v2228
        %v2248 = vmul.f32 %v2211, %v2228
        %v2249 = vmul.f32 %v2212, %v2228
        %v2250 = vmul.f32 %v2213, %v2228
        %v2251 = vmul.f32 %v2214, %v2228
        %v2252 = vmul.f32 %v2215, %v2228
        %v2253 = vmul.f32 %v2216, %v2228
        %v2254 = vmul.f32 %v2217, %v2228
        %v2255 = vmul.f32 %v2218, %v2228
        %v2256 = vmul.f32 %v2219, %v2228
        %v2257 = vmul.f32 %v2220, %v2228
        %v2258 = vmul.f32 %v2221, %v2228
        %v2259 = vmul.f32 %v2222, %v2228
        %v2260 = vmul.f32 %v2223, %v2228
        %v2261 = vsel %vm912, %v2229, 0.0
        %2262 = vadd.xlane.f32.xlu0 %v2261
        %v2263 = vpop.xlane.xlu0 %2262
        %v2264 = vsel %vm912, %v2230, 0.0
        %2265 = vadd.xlane.f32.xlu0 %v2264
        %v2266 = vpop.xlane.xlu0 %2265
        %v2267 = vsel %vm912, %v2231, 0.0
        %2268 = vadd.xlane.f32.xlu0 %v2267
        %v2269 = vpop.xlane.xlu0 %2268
        %v2270 = vsel %vm912, %v2232, 0.0
        %2271 = vadd.xlane.f32.xlu0 %v2270
        %v2272 = vpop.xlane.xlu0 %2271
        %v2273 = vsel %vm912, %v2233, 0.0
        %2274 = vadd.xlane.f32.xlu0 %v2273
        %v2275 = vpop.xlane.xlu0 %2274
        %v2276 = vsel %vm912, %v2234, 0.0
        %2277 = vadd.xlane.f32.xlu0 %v2276
        %v2278 = vpop.xlane.xlu0 %2277
        %v2279 = vsel %vm912, %v2235, 0.0
        %2280 = vadd.xlane.f32.xlu0 %v2279
        %v2281 = vpop.xlane.xlu0 %2280
        %v2282 = vsel %vm912, %v2236, 0.0
        %2283 = vadd.xlane.f32.xlu0 %v2282
        %v2284 = vpop.xlane.xlu0 %2283
        %v2285 = vsel %vm912, %v2237, 0.0
        %2286 = vadd.xlane.f32.xlu0 %v2285
        %v2287 = vpop.xlane.xlu0 %2286
        %v2288 = vsel %vm912, %v2238, 0.0
        %2289 = vadd.xlane.f32.xlu0 %v2288
        %v2290 = vpop.xlane.xlu0 %2289
        %v2291 = vsel %vm912, %v2239, 0.0
        %2292 = vadd.xlane.f32.xlu0 %v2291
        %v2293 = vpop.xlane.xlu0 %2292
        %v2294 = vsel %vm912, %v2240, 0.0
        %2295 = vadd.xlane.f32.xlu0 %v2294
        %v2296 = vpop.xlane.xlu0 %2295
        %v2297 = vsel %vm912, %v2241, 0.0
        %2298 = vadd.xlane.f32.xlu0 %v2297
        %v2299 = vpop.xlane.xlu0 %2298
        %v2300 = vsel %vm912, %v2242, 0.0
        %2301 = vadd.xlane.f32.xlu0 %v2300
        %v2302 = vpop.xlane.xlu0 %2301
        %v2303 = vsel %vm912, %v2243, 0.0
        %2304 = vadd.xlane.f32.xlu0 %v2303
        %v2305 = vpop.xlane.xlu0 %2304
        %v2306 = vsel %vm912, %v2244, 0.0
        %2307 = vadd.xlane.f32.xlu0 %v2306
        %v2308 = vpop.xlane.xlu0 %2307
        %v2309 = vsel %vm912, %v2245, 0.0
        %2310 = vadd.xlane.f32.xlu0 %v2309
        %v2311 = vpop.xlane.xlu0 %2310
        %v2312 = vsel %vm912, %v2246, 0.0
        %2313 = vadd.xlane.f32.xlu0 %v2312
        %v2314 = vpop.xlane.xlu0 %2313
        %v2315 = vsel %vm912, %v2247, 0.0
        %2316 = vadd.xlane.f32.xlu0 %v2315
        %v2317 = vpop.xlane.xlu0 %2316
        %v2318 = vsel %vm912, %v2248, 0.0
        %2319 = vadd.xlane.f32.xlu0 %v2318
        %v2320 = vpop.xlane.xlu0 %2319
        %v2321 = vsel %vm912, %v2249, 0.0
        %2322 = vadd.xlane.f32.xlu0 %v2321
        %v2323 = vpop.xlane.xlu0 %2322
        %v2324 = vsel %vm912, %v2250, 0.0
        %2325 = vadd.xlane.f32.xlu0 %v2324
        %v2326 = vpop.xlane.xlu0 %2325
        %v2327 = vsel %vm912, %v2251, 0.0
        %2328 = vadd.xlane.f32.xlu0 %v2327
        %v2329 = vpop.xlane.xlu0 %2328
        %v2330 = vsel %vm912, %v2252, 0.0
        %2331 = vadd.xlane.f32.xlu0 %v2330
        %v2332 = vpop.xlane.xlu0 %2331
        %v2333 = vsel %vm912, %v2253, 0.0
        %2334 = vadd.xlane.f32.xlu0 %v2333
        %v2335 = vpop.xlane.xlu0 %2334
        %v2336 = vsel %vm912, %v2254, 0.0
        %2337 = vadd.xlane.f32.xlu0 %v2336
        %v2338 = vpop.xlane.xlu0 %2337
        %v2339 = vsel %vm912, %v2255, 0.0
        %2340 = vadd.xlane.f32.xlu0 %v2339
        %v2341 = vpop.xlane.xlu0 %2340
        %v2342 = vsel %vm912, %v2256, 0.0
        %2343 = vadd.xlane.f32.xlu0 %v2342
        %v2344 = vpop.xlane.xlu0 %2343
        %v2345 = vsel %vm912, %v2257, 0.0
        %2346 = vadd.xlane.f32.xlu0 %v2345
        %v2347 = vpop.xlane.xlu0 %2346
        %v2348 = vsel %vm912, %v2258, 0.0
        %2349 = vadd.xlane.f32.xlu0 %v2348
        %v2350 = vpop.xlane.xlu0 %2349
        %v2351 = vsel %vm912, %v2259, 0.0
        %2352 = vadd.xlane.f32.xlu0 %v2351
        %v2353 = vpop.xlane.xlu0 %2352
        %v2354 = vsel %vm912, %v2260, 0.0
        %2355 = vadd.xlane.f32.xlu0 %v2354
        %v2356 = vpop.xlane.xlu0 %2355
        %v2389 = vlaneseq
        %v2390 = vand.u32 %v2389, 127
        %v2391 = vlaneseq
        %v2392 = vshrl.u32 %v2391, 7
        %v2393 = vsub.s32 %v2390, %v2392
        %v2394 = vrot.slane %v2263, %v2393
        %v2395 = vadd.s32 %v2390, 4294967288
        %v2396 = vlaneseq
        %v2397 = vshrl.u32 %v2396, 7
        %v2398 = vsub.s32 %v2395, %v2397
        %v2399 = vrot.slane %v2266, %v2398
        %vm2400 = vcmask 130112
        %v2401 = vsel %vm2400, %v2399, %v2394
        %v2402 = vlaneseq
        %v2403 = vshrl.u32 %v2402, 7
        %v2404 = vsub.s32 %v2390, %v2403
        %v2405 = vrot.slane %v2269, %v2404
        %v2406 = vlaneseq
        %v2407 = vshrl.u32 %v2406, 7
        %v2408 = vsub.s32 %v2395, %v2407
        %v2409 = vrot.slane %v2272, %v2408
        %v2410 = vsel %vm2400, %v2409, %v2405
        %v2411 = vlaneseq
        %v2412 = vshrl.u32 %v2411, 7
        %v2413 = vsub.s32 %v2390, %v2412
        %v2414 = vrot.slane %v2275, %v2413
        %v2415 = vlaneseq
        %v2416 = vshrl.u32 %v2415, 7
        %v2417 = vsub.s32 %v2395, %v2416
        %v2418 = vrot.slane %v2278, %v2417
        %v2419 = vsel %vm2400, %v2418, %v2414
        %v2420 = vlaneseq
        %v2421 = vshrl.u32 %v2420, 7
        %v2422 = vsub.s32 %v2390, %v2421
        %v2423 = vrot.slane %v2281, %v2422
        %v2424 = vlaneseq
        %v2425 = vshrl.u32 %v2424, 7
        %v2426 = vsub.s32 %v2395, %v2425
        %v2427 = vrot.slane %v2284, %v2426
        %v2428 = vsel %vm2400, %v2427, %v2423
        %v2429 = vlaneseq
        %v2430 = vshrl.u32 %v2429, 7
        %v2431 = vsub.s32 %v2390, %v2430
        %v2432 = vrot.slane %v2287, %v2431
        %v2433 = vlaneseq
        %v2434 = vshrl.u32 %v2433, 7
        %v2435 = vsub.s32 %v2395, %v2434
        %v2436 = vrot.slane %v2290, %v2435
        %v2437 = vsel %vm2400, %v2436, %v2432
        %v2438 = vlaneseq
        %v2439 = vshrl.u32 %v2438, 7
        %v2440 = vsub.s32 %v2390, %v2439
        %v2441 = vrot.slane %v2293, %v2440
        %v2442 = vlaneseq
        %v2443 = vshrl.u32 %v2442, 7
        %v2444 = vsub.s32 %v2395, %v2443
        %v2445 = vrot.slane %v2296, %v2444
        %v2446 = vsel %vm2400, %v2445, %v2441
        %v2447 = vlaneseq
        %v2448 = vshrl.u32 %v2447, 7
        %v2449 = vsub.s32 %v2390, %v2448
        %v2450 = vrot.slane %v2299, %v2449
        %v2451 = vlaneseq
        %v2452 = vshrl.u32 %v2451, 7
        %v2453 = vsub.s32 %v2395, %v2452
        %v2454 = vrot.slane %v2302, %v2453
        %v2455 = vsel %vm2400, %v2454, %v2450
        %v2456 = vlaneseq
        %v2457 = vshrl.u32 %v2456, 7
        %v2458 = vsub.s32 %v2390, %v2457
        %v2459 = vrot.slane %v2305, %v2458
        %v2460 = vlaneseq
        %v2461 = vshrl.u32 %v2460, 7
        %v2462 = vsub.s32 %v2395, %v2461
        %v2463 = vrot.slane %v2308, %v2462
        %v2464 = vsel %vm2400, %v2463, %v2459
        %v2465 = vlaneseq
        %v2466 = vshrl.u32 %v2465, 7
        %v2467 = vsub.s32 %v2390, %v2466
        %v2468 = vrot.slane %v2311, %v2467
        %v2469 = vlaneseq
        %v2470 = vshrl.u32 %v2469, 7
        %v2471 = vsub.s32 %v2395, %v2470
        %v2472 = vrot.slane %v2314, %v2471
        %v2473 = vsel %vm2400, %v2472, %v2468
        %v2474 = vlaneseq
        %v2475 = vshrl.u32 %v2474, 7
        %v2476 = vsub.s32 %v2390, %v2475
        %v2477 = vrot.slane %v2317, %v2476
        %v2478 = vlaneseq
        %v2479 = vshrl.u32 %v2478, 7
        %v2480 = vsub.s32 %v2395, %v2479
        %v2481 = vrot.slane %v2320, %v2480
        %v2482 = vsel %vm2400, %v2481, %v2477
        %v2483 = vlaneseq
        %v2484 = vshrl.u32 %v2483, 7
        %v2485 = vsub.s32 %v2390, %v2484
        %v2486 = vrot.slane %v2323, %v2485
        %v2487 = vlaneseq
        %v2488 = vshrl.u32 %v2487, 7
        %v2489 = vsub.s32 %v2395, %v2488
        %v2490 = vrot.slane %v2326, %v2489
        %v2491 = vsel %vm2400, %v2490, %v2486
        %v2492 = vlaneseq
        %v2493 = vshrl.u32 %v2492, 7
        %v2494 = vsub.s32 %v2390, %v2493
        %v2495 = vrot.slane %v2329, %v2494
        %v2496 = vlaneseq
        %v2497 = vshrl.u32 %v2496, 7
        %v2498 = vsub.s32 %v2395, %v2497
        %v2499 = vrot.slane %v2332, %v2498
        %v2500 = vsel %vm2400, %v2499, %v2495
        %v2501 = vlaneseq
        %v2502 = vshrl.u32 %v2501, 7
        %v2503 = vsub.s32 %v2390, %v2502
        %v2504 = vrot.slane %v2335, %v2503
        %v2505 = vlaneseq
        %v2506 = vshrl.u32 %v2505, 7
        %v2507 = vsub.s32 %v2395, %v2506
        %v2508 = vrot.slane %v2338, %v2507
        %v2509 = vsel %vm2400, %v2508, %v2504
        %v2510 = vlaneseq
        %v2511 = vshrl.u32 %v2510, 7
        %v2512 = vsub.s32 %v2390, %v2511
        %v2513 = vrot.slane %v2341, %v2512
        %v2514 = vlaneseq
        %v2515 = vshrl.u32 %v2514, 7
        %v2516 = vsub.s32 %v2395, %v2515
        %v2517 = vrot.slane %v2344, %v2516
        %v2518 = vsel %vm2400, %v2517, %v2513
        %v2519 = vlaneseq
        %v2520 = vshrl.u32 %v2519, 7
        %v2521 = vsub.s32 %v2390, %v2520
        %v2522 = vrot.slane %v2347, %v2521
        %v2523 = vlaneseq
        %v2524 = vshrl.u32 %v2523, 7
        %v2525 = vsub.s32 %v2395, %v2524
        %v2526 = vrot.slane %v2350, %v2525
        %v2527 = vsel %vm2400, %v2526, %v2522
        %v2528 = vlaneseq
        %v2529 = vshrl.u32 %v2528, 7
        %v2530 = vsub.s32 %v2390, %v2529
        %v2531 = vrot.slane %v2353, %v2530
        %v2532 = vlaneseq
        %v2533 = vshrl.u32 %v2532, 7
        %v2534 = vsub.s32 %v2395, %v2533
        %v2535 = vrot.slane %v2356, %v2534
        %v2536 = vsel %vm2400, %v2535, %v2531
        %vm2537 = vcmask 1041409
        %v2538 = vsel %vm2537, %v2410, %v2401
        %vm2539 = vcmask 1042434
        %v2540 = vsel %vm2539, %v2419, %v2538
        %vm2541 = vcmask 1043459
        %v2542 = vsel %vm2541, %v2428, %v2540
        %vm2543 = vcmask 1044484
        %v2544 = vsel %vm2543, %v2437, %v2542
        %vm2545 = vcmask 1045509
        %v2546 = vsel %vm2545, %v2446, %v2544
        %vm2547 = vcmask 1046534
        %v2548 = vsel %vm2547, %v2455, %v2546
        %vm2549 = vcmask 1047559
        %v2550 = vsel %vm2549, %v2464, %v2548
        %v2551 = vsel %vm2537, %v2482, %v2473
        %v2552 = vsel %vm2539, %v2491, %v2551
        %v2553 = vsel %vm2541, %v2500, %v2552
        %v2554 = vsel %vm2543, %v2509, %v2553
        %v2555 = vsel %vm2545, %v2518, %v2554
        %v2556 = vsel %vm2547, %v2527, %v2555
        %v2557 = vsel %vm2549, %v2536, %v2556
        %vm2560 = vcmask 130048
        %v2561 = vsel %vm2560, %v2550, -inf
        %2562 = vmax.xlane.f32.xlu0 %v2561
        %v2563 = vpop.xlane.xlu0 %2562
        %v2564 = vsel %vm2560, %v2557, -inf
        %2565 = vmax.xlane.f32.xlu0 %v2564
        %v2566 = vpop.xlane.xlu0 %2565
        %v2569 = vlaneseq
        %v2570 = vshrl.u32 %v2569, 7
        %v2571 = vsub.s32 0, %v2570
        %v2572 = vrot.slane %v2563, %v2571
        %v2573 = vlaneseq
        %v2574 = vshrl.u32 %v2573, 7
        %v2575 = vsub.s32 1, %v2574
        %v2576 = vrot.slane %v2563, %v2575
        %v2577 = vlaneseq
        %v2578 = vshrl.u32 %v2577, 7
        %v2579 = vsub.s32 2, %v2578
        %v2580 = vrot.slane %v2563, %v2579
        %v2581 = vlaneseq
        %v2582 = vshrl.u32 %v2581, 7
        %v2583 = vsub.s32 3, %v2582
        %v2584 = vrot.slane %v2563, %v2583
        %v2585 = vlaneseq
        %v2586 = vshrl.u32 %v2585, 7
        %v2587 = vsub.s32 4, %v2586
        %v2588 = vrot.slane %v2563, %v2587
        %v2589 = vlaneseq
        %v2590 = vshrl.u32 %v2589, 7
        %v2591 = vsub.s32 5, %v2590
        %v2592 = vrot.slane %v2563, %v2591
        %v2593 = vlaneseq
        %v2594 = vshrl.u32 %v2593, 7
        %v2595 = vsub.s32 6, %v2594
        %v2596 = vrot.slane %v2563, %v2595
        %v2597 = vlaneseq
        %v2598 = vshrl.u32 %v2597, 7
        %v2599 = vsub.s32 7, %v2598
        %v2600 = vrot.slane %v2563, %v2599
        %v2601 = vlaneseq
        %v2602 = vshrl.u32 %v2601, 7
        %v2603 = vsub.s32 0, %v2602
        %v2604 = vrot.slane %v2566, %v2603
        %v2605 = vlaneseq
        %v2606 = vshrl.u32 %v2605, 7
        %v2607 = vsub.s32 1, %v2606
        %v2608 = vrot.slane %v2566, %v2607
        %v2609 = vlaneseq
        %v2610 = vshrl.u32 %v2609, 7
        %v2611 = vsub.s32 2, %v2610
        %v2612 = vrot.slane %v2566, %v2611
        %v2613 = vlaneseq
        %v2614 = vshrl.u32 %v2613, 7
        %v2615 = vsub.s32 3, %v2614
        %v2616 = vrot.slane %v2566, %v2615
        %v2617 = vlaneseq
        %v2618 = vshrl.u32 %v2617, 7
        %v2619 = vsub.s32 4, %v2618
        %v2620 = vrot.slane %v2566, %v2619
        %v2621 = vlaneseq
        %v2622 = vshrl.u32 %v2621, 7
        %v2623 = vsub.s32 5, %v2622
        %v2624 = vrot.slane %v2566, %v2623
        %v2625 = vlaneseq
        %v2626 = vshrl.u32 %v2625, 7
        %v2627 = vsub.s32 6, %v2626
        %v2628 = vrot.slane %v2566, %v2627
        %v2629 = vlaneseq
        %v2630 = vshrl.u32 %v2629, 7
        %v2631 = vsub.s32 7, %v2630
        %v2632 = vrot.slane %v2566, %v2631
        %v2649 = vsub.f32 %v2263, %v2572
        %v2650 = vsub.f32 %v2266, %v2572
        %v2651 = vsub.f32 %v2269, %v2576
        %v2652 = vsub.f32 %v2272, %v2576
        %v2653 = vsub.f32 %v2275, %v2580
        %v2654 = vsub.f32 %v2278, %v2580
        %v2655 = vsub.f32 %v2281, %v2584
        %v2656 = vsub.f32 %v2284, %v2584
        %v2657 = vsub.f32 %v2287, %v2588
        %v2658 = vsub.f32 %v2290, %v2588
        %v2659 = vsub.f32 %v2293, %v2592
        %v2660 = vsub.f32 %v2296, %v2592
        %v2661 = vsub.f32 %v2299, %v2596
        %v2662 = vsub.f32 %v2302, %v2596
        %v2663 = vsub.f32 %v2305, %v2600
        %v2664 = vsub.f32 %v2308, %v2600
        %v2665 = vsub.f32 %v2311, %v2604
        %v2666 = vsub.f32 %v2314, %v2604
        %v2667 = vsub.f32 %v2317, %v2608
        %v2668 = vsub.f32 %v2320, %v2608
        %v2669 = vsub.f32 %v2323, %v2612
        %v2670 = vsub.f32 %v2326, %v2612
        %v2671 = vsub.f32 %v2329, %v2616
        %v2672 = vsub.f32 %v2332, %v2616
        %v2673 = vsub.f32 %v2335, %v2620
        %v2674 = vsub.f32 %v2338, %v2620
        %v2675 = vsub.f32 %v2341, %v2624
        %v2676 = vsub.f32 %v2344, %v2624
        %v2677 = vsub.f32 %v2347, %v2628
        %v2678 = vsub.f32 %v2350, %v2628
        %v2679 = vsub.f32 %v2353, %v2632
        %v2680 = vsub.f32 %v2356, %v2632
        %v2681 = vmul.f32 %v2649, 1.442695
        %v2682 = vpow.pop %v2681
        %v2683 = vmul.f32 %v2650, 1.442695
        %v2684 = vpow.pop %v2683
        %v2685 = vmul.f32 %v2651, 1.442695
        %v2686 = vpow.pop %v2685
        %v2687 = vmul.f32 %v2652, 1.442695
        %v2688 = vpow.pop %v2687
        %v2689 = vmul.f32 %v2653, 1.442695
        %v2690 = vpow.pop %v2689
        %v2691 = vmul.f32 %v2654, 1.442695
        %v2692 = vpow.pop %v2691
        %v2693 = vmul.f32 %v2655, 1.442695
        %v2694 = vpow.pop %v2693
        %v2695 = vmul.f32 %v2656, 1.442695
        %v2696 = vpow.pop %v2695
        %v2697 = vmul.f32 %v2657, 1.442695
        %v2698 = vpow.pop %v2697
        %v2699 = vmul.f32 %v2658, 1.442695
        %v2700 = vpow.pop %v2699
        %v2701 = vmul.f32 %v2659, 1.442695
        %v2702 = vpow.pop %v2701
        %v2703 = vmul.f32 %v2660, 1.442695
        %v2704 = vpow.pop %v2703
        %v2705 = vmul.f32 %v2661, 1.442695
        %v2706 = vpow.pop %v2705
        %v2707 = vmul.f32 %v2662, 1.442695
        %v2708 = vpow.pop %v2707
        %v2709 = vmul.f32 %v2663, 1.442695
        %v2710 = vpow.pop %v2709
        %v2711 = vmul.f32 %v2664, 1.442695
        %v2712 = vpow.pop %v2711
        %v2713 = vmul.f32 %v2665, 1.442695
        %v2714 = vpow.pop %v2713
        %v2715 = vmul.f32 %v2666, 1.442695
        %v2716 = vpow.pop %v2715
        %v2717 = vmul.f32 %v2667, 1.442695
        %v2718 = vpow.pop %v2717
        %v2719 = vmul.f32 %v2668, 1.442695
        %v2720 = vpow.pop %v2719
        %v2721 = vmul.f32 %v2669, 1.442695
        %v2722 = vpow.pop %v2721
        %v2723 = vmul.f32 %v2670, 1.442695
        %v2724 = vpow.pop %v2723
        %v2725 = vmul.f32 %v2671, 1.442695
        %v2726 = vpow.pop %v2725
        %v2727 = vmul.f32 %v2672, 1.442695
        %v2728 = vpow.pop %v2727
        %v2729 = vmul.f32 %v2673, 1.442695
        %v2730 = vpow.pop %v2729
        %v2731 = vmul.f32 %v2674, 1.442695
        %v2732 = vpow.pop %v2731
        %v2733 = vmul.f32 %v2675, 1.442695
        %v2734 = vpow.pop %v2733
        %v2735 = vmul.f32 %v2676, 1.442695
        %v2736 = vpow.pop %v2735
        %v2737 = vmul.f32 %v2677, 1.442695
        %v2738 = vpow.pop %v2737
        %v2739 = vmul.f32 %v2678, 1.442695
        %v2740 = vpow.pop %v2739
        %v2741 = vmul.f32 %v2679, 1.442695
        %v2742 = vpow.pop %v2741
        %v2743 = vmul.f32 %v2680, 1.442695
        %v2744 = vpow.pop %v2743
        %2777 = vset.pattern.permute.xlu0 0
        %2778 = vperm.xlu0 %2777, %v2682
        %v2779 = vpop.permute.xlu0 %2778
        %2780 = vset.pattern.permute.xlu0 0
        %2781 = vperm.xlu0 %2780, %v2684
        %v2782 = vpop.permute.xlu0 %2781
        %2783 = vset.pattern.permute.xlu0 0
        %2784 = vperm.xlu0 %2783, %v2686
        %v2785 = vpop.permute.xlu0 %2784
        %2786 = vset.pattern.permute.xlu0 0
        %2787 = vperm.xlu0 %2786, %v2688
        %v2788 = vpop.permute.xlu0 %2787
        %2789 = vset.pattern.permute.xlu0 0
        %2790 = vperm.xlu0 %2789, %v2690
        %v2791 = vpop.permute.xlu0 %2790
        %2792 = vset.pattern.permute.xlu0 0
        %2793 = vperm.xlu0 %2792, %v2692
        %v2794 = vpop.permute.xlu0 %2793
        %2795 = vset.pattern.permute.xlu0 0
        %2796 = vperm.xlu0 %2795, %v2694
        %v2797 = vpop.permute.xlu0 %2796
        %2798 = vset.pattern.permute.xlu0 0
        %2799 = vperm.xlu0 %2798, %v2696
        %v2800 = vpop.permute.xlu0 %2799
        %2801 = vset.pattern.permute.xlu0 0
        %2802 = vperm.xlu0 %2801, %v2698
        %v2803 = vpop.permute.xlu0 %2802
        %2804 = vset.pattern.permute.xlu0 0
        %2805 = vperm.xlu0 %2804, %v2700
        %v2806 = vpop.permute.xlu0 %2805
        %2807 = vset.pattern.permute.xlu0 0
        %2808 = vperm.xlu0 %2807, %v2702
        %v2809 = vpop.permute.xlu0 %2808
        %2810 = vset.pattern.permute.xlu0 0
        %2811 = vperm.xlu0 %2810, %v2704
        %v2812 = vpop.permute.xlu0 %2811
        %2813 = vset.pattern.permute.xlu0 0
        %2814 = vperm.xlu0 %2813, %v2706
        %v2815 = vpop.permute.xlu0 %2814
        %2816 = vset.pattern.permute.xlu0 0
        %2817 = vperm.xlu0 %2816, %v2708
        %v2818 = vpop.permute.xlu0 %2817
        %2819 = vset.pattern.permute.xlu0 0
        %2820 = vperm.xlu0 %2819, %v2710
        %v2821 = vpop.permute.xlu0 %2820
        %2822 = vset.pattern.permute.xlu0 0
        %2823 = vperm.xlu0 %2822, %v2712
        %v2824 = vpop.permute.xlu0 %2823
        %2825 = vset.pattern.permute.xlu0 0
        %2826 = vperm.xlu0 %2825, %v2714
        %v2827 = vpop.permute.xlu0 %2826
        %2828 = vset.pattern.permute.xlu0 0
        %2829 = vperm.xlu0 %2828, %v2716
        %v2830 = vpop.permute.xlu0 %2829
        %2831 = vset.pattern.permute.xlu0 0
        %2832 = vperm.xlu0 %2831, %v2718
        %v2833 = vpop.permute.xlu0 %2832
        %2834 = vset.pattern.permute.xlu0 0
        %2835 = vperm.xlu0 %2834, %v2720
        %v2836 = vpop.permute.xlu0 %2835
        %2837 = vset.pattern.permute.xlu0 0
        %2838 = vperm.xlu0 %2837, %v2722
        %v2839 = vpop.permute.xlu0 %2838
        %2840 = vset.pattern.permute.xlu0 0
        %2841 = vperm.xlu0 %2840, %v2724
        %v2842 = vpop.permute.xlu0 %2841
        %2843 = vset.pattern.permute.xlu0 0
        %2844 = vperm.xlu0 %2843, %v2726
        %v2845 = vpop.permute.xlu0 %2844
        %2846 = vset.pattern.permute.xlu0 0
        %2847 = vperm.xlu0 %2846, %v2728
        %v2848 = vpop.permute.xlu0 %2847
        %2849 = vset.pattern.permute.xlu0 0
        %2850 = vperm.xlu0 %2849, %v2730
        %v2851 = vpop.permute.xlu0 %2850
        %2852 = vset.pattern.permute.xlu0 0
        %2853 = vperm.xlu0 %2852, %v2732
        %v2854 = vpop.permute.xlu0 %2853
        %2855 = vset.pattern.permute.xlu0 0
        %2856 = vperm.xlu0 %2855, %v2734
        %v2857 = vpop.permute.xlu0 %2856
        %2858 = vset.pattern.permute.xlu0 0
        %2859 = vperm.xlu0 %2858, %v2736
        %v2860 = vpop.permute.xlu0 %2859
        %2861 = vset.pattern.permute.xlu0 0
        %2862 = vperm.xlu0 %2861, %v2738
        %v2863 = vpop.permute.xlu0 %2862
        %2864 = vset.pattern.permute.xlu0 0
        %2865 = vperm.xlu0 %2864, %v2740
        %v2866 = vpop.permute.xlu0 %2865
        %2867 = vset.pattern.permute.xlu0 0
        %2868 = vperm.xlu0 %2867, %v2742
        %v2869 = vpop.permute.xlu0 %2868
        %2870 = vset.pattern.permute.xlu0 0
        %2871 = vperm.xlu0 %2870, %v2744
        %v2872 = vpop.permute.xlu0 %2871
        %v2873 = vlaneseq
        %v2874 = vshrl.u32 %v2873, 7
        %v2875 = vsub.s32 %v2390, %v2874
        %v2876 = vrot.slane %v2779, %v2875
        %v2877 = vlaneseq
        %v2878 = vshrl.u32 %v2877, 7
        %v2879 = vsub.s32 %v2395, %v2878
        %v2880 = vrot.slane %v2782, %v2879
        %v2881 = vsel %vm2400, %v2880, %v2876
        %v2882 = vlaneseq
        %v2883 = vshrl.u32 %v2882, 7
        %v2884 = vsub.s32 %v2390, %v2883
        %v2885 = vrot.slane %v2785, %v2884
        %v2886 = vlaneseq
        %v2887 = vshrl.u32 %v2886, 7
        %v2888 = vsub.s32 %v2395, %v2887
        %v2889 = vrot.slane %v2788, %v2888
        %v2890 = vsel %vm2400, %v2889, %v2885
        %v2891 = vlaneseq
        %v2892 = vshrl.u32 %v2891, 7
        %v2893 = vsub.s32 %v2390, %v2892
        %v2894 = vrot.slane %v2791, %v2893
        %v2895 = vlaneseq
        %v2896 = vshrl.u32 %v2895, 7
        %v2897 = vsub.s32 %v2395, %v2896
        %v2898 = vrot.slane %v2794, %v2897
        %v2899 = vsel %vm2400, %v2898, %v2894
        %v2900 = vlaneseq
        %v2901 = vshrl.u32 %v2900, 7
        %v2902 = vsub.s32 %v2390, %v2901
        %v2903 = vrot.slane %v2797, %v2902
        %v2904 = vlaneseq
        %v2905 = vshrl.u32 %v2904, 7
        %v2906 = vsub.s32 %v2395, %v2905
        %v2907 = vrot.slane %v2800, %v2906
        %v2908 = vsel %vm2400, %v2907, %v2903
        %v2909 = vlaneseq
        %v2910 = vshrl.u32 %v2909, 7
        %v2911 = vsub.s32 %v2390, %v2910
        %v2912 = vrot.slane %v2803, %v2911
        %v2913 = vlaneseq
        %v2914 = vshrl.u32 %v2913, 7
        %v2915 = vsub.s32 %v2395, %v2914
        %v2916 = vrot.slane %v2806, %v2915
        %v2917 = vsel %vm2400, %v2916, %v2912
        %v2918 = vlaneseq
        %v2919 = vshrl.u32 %v2918, 7
        %v2920 = vsub.s32 %v2390, %v2919
        %v2921 = vrot.slane %v2809, %v2920
        %v2922 = vlaneseq
        %v2923 = vshrl.u32 %v2922, 7
        %v2924 = vsub.s32 %v2395, %v2923
        %v2925 = vrot.slane %v2812, %v2924
        %v2926 = vsel %vm2400, %v2925, %v2921
        %v2927 = vlaneseq
        %v2928 = vshrl.u32 %v2927, 7
        %v2929 = vsub.s32 %v2390, %v2928
        %v2930 = vrot.slane %v2815, %v2929
        %v2931 = vlaneseq
        %v2932 = vshrl.u32 %v2931, 7
        %v2933 = vsub.s32 %v2395, %v2932
        %v2934 = vrot.slane %v2818, %v2933
        %v2935 = vsel %vm2400, %v2934, %v2930
        %v2936 = vlaneseq
        %v2937 = vshrl.u32 %v2936, 7
        %v2938 = vsub.s32 %v2390, %v2937
        %v2939 = vrot.slane %v2821, %v2938
        %v2940 = vlaneseq
        %v2941 = vshrl.u32 %v2940, 7
        %v2942 = vsub.s32 %v2395, %v2941
        %v2943 = vrot.slane %v2824, %v2942
        %v2944 = vsel %vm2400, %v2943, %v2939
        %v2945 = vlaneseq
        %v2946 = vshrl.u32 %v2945, 7
        %v2947 = vsub.s32 %v2390, %v2946
        %v2948 = vrot.slane %v2827, %v2947
        %v2949 = vlaneseq
        %v2950 = vshrl.u32 %v2949, 7
        %v2951 = vsub.s32 %v2395, %v2950
        %v2952 = vrot.slane %v2830, %v2951
        %v2953 = vsel %vm2400, %v2952, %v2948
        %v2954 = vlaneseq
        %v2955 = vshrl.u32 %v2954, 7
        %v2956 = vsub.s32 %v2390, %v2955
        %v2957 = vrot.slane %v2833, %v2956
        %v2958 = vlaneseq
        %v2959 = vshrl.u32 %v2958, 7
        %v2960 = vsub.s32 %v2395, %v2959
        %v2961 = vrot.slane %v2836, %v2960
        %v2962 = vsel %vm2400, %v2961, %v2957
        %v2963 = vlaneseq
        %v2964 = vshrl.u32 %v2963, 7
        %v2965 = vsub.s32 %v2390, %v2964
        %v2966 = vrot.slane %v2839, %v2965
        %v2967 = vlaneseq
        %v2968 = vshrl.u32 %v2967, 7
        %v2969 = vsub.s32 %v2395, %v2968
        %v2970 = vrot.slane %v2842, %v2969
        %v2971 = vsel %vm2400, %v2970, %v2966
        %v2972 = vlaneseq
        %v2973 = vshrl.u32 %v2972, 7
        %v2974 = vsub.s32 %v2390, %v2973
        %v2975 = vrot.slane %v2845, %v2974
        %v2976 = vlaneseq
        %v2977 = vshrl.u32 %v2976, 7
        %v2978 = vsub.s32 %v2395, %v2977
        %v2979 = vrot.slane %v2848, %v2978
        %v2980 = vsel %vm2400, %v2979, %v2975
        %v2981 = vlaneseq
        %v2982 = vshrl.u32 %v2981, 7
        %v2983 = vsub.s32 %v2390, %v2982
        %v2984 = vrot.slane %v2851, %v2983
        %v2985 = vlaneseq
        %v2986 = vshrl.u32 %v2985, 7
        %v2987 = vsub.s32 %v2395, %v2986
        %v2988 = vrot.slane %v2854, %v2987
        %v2989 = vsel %vm2400, %v2988, %v2984
        %v2990 = vlaneseq
        %v2991 = vshrl.u32 %v2990, 7
        %v2992 = vsub.s32 %v2390, %v2991
        %v2993 = vrot.slane %v2857, %v2992
        %v2994 = vlaneseq
        %v2995 = vshrl.u32 %v2994, 7
        %v2996 = vsub.s32 %v2395, %v2995
        %v2997 = vrot.slane %v2860, %v2996
        %v2998 = vsel %vm2400, %v2997, %v2993
        %v2999 = vlaneseq
        %v3000 = vshrl.u32 %v2999, 7
        %v3001 = vsub.s32 %v2390, %v3000
        %v3002 = vrot.slane %v2863, %v3001
        %v3003 = vlaneseq
        %v3004 = vshrl.u32 %v3003, 7
        %v3005 = vsub.s32 %v2395, %v3004
        %v3006 = vrot.slane %v2866, %v3005
        %v3007 = vsel %vm2400, %v3006, %v3002
        %v3008 = vlaneseq
        %v3009 = vshrl.u32 %v3008, 7
        %v3010 = vsub.s32 %v2390, %v3009
        %v3011 = vrot.slane %v2869, %v3010
        %v3012 = vlaneseq
        %v3013 = vshrl.u32 %v3012, 7
        %v3014 = vsub.s32 %v2395, %v3013
        %v3015 = vrot.slane %v2872, %v3014
        %v3016 = vsel %vm2400, %v3015, %v3011
        %v3017 = vsel %vm2537, %v2890, %v2881
        %v3018 = vsel %vm2539, %v2899, %v3017
        %v3019 = vsel %vm2541, %v2908, %v3018
        %v3020 = vsel %vm2543, %v2917, %v3019
        %v3021 = vsel %vm2545, %v2926, %v3020
        %v3022 = vsel %vm2547, %v2935, %v3021
        %v3023 = vsel %vm2549, %v2944, %v3022
        %v3024 = vsel %vm2537, %v2962, %v2953
        %v3025 = vsel %vm2539, %v2971, %v3024
        %v3026 = vsel %vm2541, %v2980, %v3025
        %v3027 = vsel %vm2543, %v2989, %v3026
        %v3028 = vsel %vm2545, %v2998, %v3027
        %v3029 = vsel %vm2547, %v3007, %v3028
        %v3030 = vsel %vm2549, %v3016, %v3029
        %v3033 = vsel %vm2560, %v3023, 0.0
        %3034 = vadd.xlane.f32.xlu0 %v3033
        %v3035 = vpop.xlane.xlu0 %3034
        %v3036 = vsel %vm2560, %v3030, 0.0
        %3037 = vadd.xlane.f32.xlu0 %v3036
        %v3038 = vpop.xlane.xlu0 %3037
        %v3039 = vrcp.pop %v3035
        %v3040 = vrcp.pop %v3038
        %v3043 = vlaneseq
        %v3044 = vshrl.u32 %v3043, 7
        %v3045 = vsub.s32 0, %v3044
        %v3046 = vrot.slane %v3039, %v3045
        %v3047 = vlaneseq
        %v3048 = vshrl.u32 %v3047, 7
        %v3049 = vsub.s32 1, %v3048
        %v3050 = vrot.slane %v3039, %v3049
        %v3051 = vlaneseq
        %v3052 = vshrl.u32 %v3051, 7
        %v3053 = vsub.s32 2, %v3052
        %v3054 = vrot.slane %v3039, %v3053
        %v3055 = vlaneseq
        %v3056 = vshrl.u32 %v3055, 7
        %v3057 = vsub.s32 3, %v3056
        %v3058 = vrot.slane %v3039, %v3057
        %v3059 = vlaneseq
        %v3060 = vshrl.u32 %v3059, 7
        %v3061 = vsub.s32 4, %v3060
        %v3062 = vrot.slane %v3039, %v3061
        %v3063 = vlaneseq
        %v3064 = vshrl.u32 %v3063, 7
        %v3065 = vsub.s32 5, %v3064
        %v3066 = vrot.slane %v3039, %v3065
        %v3067 = vlaneseq
        %v3068 = vshrl.u32 %v3067, 7
        %v3069 = vsub.s32 6, %v3068
        %v3070 = vrot.slane %v3039, %v3069
        %v3071 = vlaneseq
        %v3072 = vshrl.u32 %v3071, 7
        %v3073 = vsub.s32 7, %v3072
        %v3074 = vrot.slane %v3039, %v3073
        %v3075 = vlaneseq
        %v3076 = vshrl.u32 %v3075, 7
        %v3077 = vsub.s32 0, %v3076
        %v3078 = vrot.slane %v3040, %v3077
        %v3079 = vlaneseq
        %v3080 = vshrl.u32 %v3079, 7
        %v3081 = vsub.s32 1, %v3080
        %v3082 = vrot.slane %v3040, %v3081
        %v3083 = vlaneseq
        %v3084 = vshrl.u32 %v3083, 7
        %v3085 = vsub.s32 2, %v3084
        %v3086 = vrot.slane %v3040, %v3085
        %v3087 = vlaneseq
        %v3088 = vshrl.u32 %v3087, 7
        %v3089 = vsub.s32 3, %v3088
        %v3090 = vrot.slane %v3040, %v3089
        %v3091 = vlaneseq
        %v3092 = vshrl.u32 %v3091, 7
        %v3093 = vsub.s32 4, %v3092
        %v3094 = vrot.slane %v3040, %v3093
        %v3095 = vlaneseq
        %v3096 = vshrl.u32 %v3095, 7
        %v3097 = vsub.s32 5, %v3096
        %v3098 = vrot.slane %v3040, %v3097
        %v3099 = vlaneseq
        %v3100 = vshrl.u32 %v3099, 7
        %v3101 = vsub.s32 6, %v3100
        %v3102 = vrot.slane %v3040, %v3101
        %v3103 = vlaneseq
        %v3104 = vshrl.u32 %v3103, 7
        %v3105 = vsub.s32 7, %v3104
        %v3106 = vrot.slane %v3040, %v3105
        %v3123 = vmul.f32 %v2682, %v3046
        %v3124 = vmul.f32 %v2684, %v3046
        %v3125 = vmul.f32 %v2686, %v3050
        %v3126 = vmul.f32 %v2688, %v3050
        %v3127 = vmul.f32 %v2690, %v3054
        %v3128 = vmul.f32 %v2692, %v3054
        %v3129 = vmul.f32 %v2694, %v3058
        %v3130 = vmul.f32 %v2696, %v3058
        %v3131 = vmul.f32 %v2698, %v3062
        %v3132 = vmul.f32 %v2700, %v3062
        %v3133 = vmul.f32 %v2702, %v3066
        %v3134 = vmul.f32 %v2704, %v3066
        %v3135 = vmul.f32 %v2706, %v3070
        %v3136 = vmul.f32 %v2708, %v3070
        %v3137 = vmul.f32 %v2710, %v3074
        %v3138 = vmul.f32 %v2712, %v3074
        %v3139 = vmul.f32 %v2714, %v3078
        %v3140 = vmul.f32 %v2716, %v3078
        %v3141 = vmul.f32 %v2718, %v3082
        %v3142 = vmul.f32 %v2720, %v3082
        %v3143 = vmul.f32 %v2722, %v3086
        %v3144 = vmul.f32 %v2724, %v3086
        %v3145 = vmul.f32 %v2726, %v3090
        %v3146 = vmul.f32 %v2728, %v3090
        %v3147 = vmul.f32 %v2730, %v3094
        %v3148 = vmul.f32 %v2732, %v3094
        %v3149 = vmul.f32 %v2734, %v3098
        %v3150 = vmul.f32 %v2736, %v3098
        %v3151 = vmul.f32 %v2738, %v3102
        %v3152 = vmul.f32 %v2740, %v3102
        %v3153 = vmul.f32 %v2742, %v3106
        %v3154 = vmul.f32 %v2744, %v3106
        %3156 = vset.pattern.permute.xlu0 0
        %3157 = vperm.xlu0 %3156, %v3123
        %v3158 = vpop.permute.xlu0 %3157
        %3161 = vset.pattern.permute.xlu0 0
        %3162 = vperm.xlu0 %3161, %v3124
        %v3163 = vpop.permute.xlu0 %3162
        %3166 = vset.pattern.permute.xlu0 0
        %3167 = vperm.xlu0 %3166, %v3125
        %v3168 = vpop.permute.xlu0 %3167
        %3171 = vset.pattern.permute.xlu0 0
        %3172 = vperm.xlu0 %3171, %v3126
        %v3173 = vpop.permute.xlu0 %3172
        %3176 = vset.pattern.permute.xlu0 0
        %3177 = vperm.xlu0 %3176, %v3127
        %v3178 = vpop.permute.xlu0 %3177
        %3181 = vset.pattern.permute.xlu0 0
        %3182 = vperm.xlu0 %3181, %v3128
        %v3183 = vpop.permute.xlu0 %3182
        %3186 = vset.pattern.permute.xlu0 0
        %3187 = vperm.xlu0 %3186, %v3129
        %v3188 = vpop.permute.xlu0 %3187
        %3191 = vset.pattern.permute.xlu0 0
        %3192 = vperm.xlu0 %3191, %v3130
        %v3193 = vpop.permute.xlu0 %3192
        %3196 = vset.pattern.permute.xlu0 0
        %3197 = vperm.xlu0 %3196, %v3131
        %v3198 = vpop.permute.xlu0 %3197
        %3201 = vset.pattern.permute.xlu0 0
        %3202 = vperm.xlu0 %3201, %v3132
        %v3203 = vpop.permute.xlu0 %3202
        %3206 = vset.pattern.permute.xlu0 0
        %3207 = vperm.xlu0 %3206, %v3133
        %v3208 = vpop.permute.xlu0 %3207
        %3211 = vset.pattern.permute.xlu0 0
        %3212 = vperm.xlu0 %3211, %v3134
        %v3213 = vpop.permute.xlu0 %3212
        %3216 = vset.pattern.permute.xlu0 0
        %3217 = vperm.xlu0 %3216, %v3135
        %v3218 = vpop.permute.xlu0 %3217
        %3221 = vset.pattern.permute.xlu0 0
        %3222 = vperm.xlu0 %3221, %v3136
        %v3223 = vpop.permute.xlu0 %3222
        %3226 = vset.pattern.permute.xlu0 0
        %3227 = vperm.xlu0 %3226, %v3137
        %v3228 = vpop.permute.xlu0 %3227
        %3231 = vset.pattern.permute.xlu0 0
        %3232 = vperm.xlu0 %3231, %v3138
        %v3233 = vpop.permute.xlu0 %3232
        %3236 = vset.pattern.permute.xlu0 0
        %3237 = vperm.xlu0 %3236, %v3139
        %v3238 = vpop.permute.xlu0 %3237
        %3241 = vset.pattern.permute.xlu0 0
        %3242 = vperm.xlu0 %3241, %v3140
        %v3243 = vpop.permute.xlu0 %3242
        %3246 = vset.pattern.permute.xlu0 0
        %3247 = vperm.xlu0 %3246, %v3141
        %v3248 = vpop.permute.xlu0 %3247
        %3251 = vset.pattern.permute.xlu0 0
        %3252 = vperm.xlu0 %3251, %v3142
        %v3253 = vpop.permute.xlu0 %3252
        %3256 = vset.pattern.permute.xlu0 0
        %3257 = vperm.xlu0 %3256, %v3143
        %v3258 = vpop.permute.xlu0 %3257
        %3261 = vset.pattern.permute.xlu0 0
        %3262 = vperm.xlu0 %3261, %v3144
        %v3263 = vpop.permute.xlu0 %3262
        %3266 = vset.pattern.permute.xlu0 0
        %3267 = vperm.xlu0 %3266, %v3145
        %v3268 = vpop.permute.xlu0 %3267
        %3271 = vset.pattern.permute.xlu0 0
        %3272 = vperm.xlu0 %3271, %v3146
        %v3273 = vpop.permute.xlu0 %3272
        %3276 = vset.pattern.permute.xlu0 0
        %3277 = vperm.xlu0 %3276, %v3147
        %v3278 = vpop.permute.xlu0 %3277
        %3281 = vset.pattern.permute.xlu0 0
        %3282 = vperm.xlu0 %3281, %v3148
        %v3283 = vpop.permute.xlu0 %3282
        %3286 = vset.pattern.permute.xlu0 0
        %3287 = vperm.xlu0 %3286, %v3149
        %v3288 = vpop.permute.xlu0 %3287
        %3291 = vset.pattern.permute.xlu0 0
        %3292 = vperm.xlu0 %3291, %v3150
        %v3293 = vpop.permute.xlu0 %3292
        %3296 = vset.pattern.permute.xlu0 0
        %3297 = vperm.xlu0 %3296, %v3151
        %v3298 = vpop.permute.xlu0 %3297
        %3301 = vset.pattern.permute.xlu0 0
        %3302 = vperm.xlu0 %3301, %v3152
        %v3303 = vpop.permute.xlu0 %3302
        %3306 = vset.pattern.permute.xlu0 0
        %3307 = vperm.xlu0 %3306, %v3153
        %v3308 = vpop.permute.xlu0 %3307
        %3311 = vset.pattern.permute.xlu0 0
        %3312 = vperm.xlu0 %3311, %v3154
        %v3313 = vpop.permute.xlu0 %3312
        %v3315 = vmul.f32 %v3158, %v1897
        %v3316 = vmul.f32 %v3163, %v1898
        %v3317 = vmul.f32 %v3168, %v1899
        %v3318 = vmul.f32 %v3173, %v1900
        %v3319 = vmul.f32 %v3178, %v1901
        %v3320 = vmul.f32 %v3183, %v1902
        %v3321 = vmul.f32 %v3188, %v1903
        %v3322 = vmul.f32 %v3193, %v1904
        %v3323 = vmul.f32 %v3198, %v1905
        %v3324 = vmul.f32 %v3203, %v1906
        %v3325 = vmul.f32 %v3208, %v1907
        %v3326 = vmul.f32 %v3213, %v1908
        %v3327 = vmul.f32 %v3218, %v1909
        %v3328 = vmul.f32 %v3223, %v1910
        %v3329 = vmul.f32 %v3228, %v1911
        %v3330 = vmul.f32 %v3233, %v1912
        %v3331 = vmul.f32 %v3238, %v1913
        %v3332 = vmul.f32 %v3243, %v1914
        %v3333 = vmul.f32 %v3248, %v1915
        %v3334 = vmul.f32 %v3253, %v1916
        %v3335 = vmul.f32 %v3258, %v1917
        %v3336 = vmul.f32 %v3263, %v1918
        %v3337 = vmul.f32 %v3268, %v1919
        %v3338 = vmul.f32 %v3273, %v1920
        %v3339 = vmul.f32 %v3278, %v1921
        %v3340 = vmul.f32 %v3283, %v1922
        %v3341 = vmul.f32 %v3288, %v1923
        %v3342 = vmul.f32 %v3293, %v1924
        %v3343 = vmul.f32 %v3298, %v1925
        %v3344 = vmul.f32 %v3303, %v1926
        %v3345 = vmul.f32 %v3308, %v1927
        %v3346 = vmul.f32 %v3313, %v1928
        %v3347 = vsel %vm1982, %v3315, 0.0
        %v3348 = vsel %vm1982, %v3316, 0.0
        %v3349 = vadd.f32 %v3347, %v3348
        %v3350 = vrot.slane %v3349, 4
        %v3351 = vadd.f32 %v3349, %v3350
        %v3352 = vrot.slane %v3351, 2
        %v3353 = vadd.f32 %v3351, %v3352
        %v3354 = vrot.slane %v3353, 1
        %v3355 = vadd.f32 %v3353, %v3354
        %v3356 = vsel %vm1982, %v3317, 0.0
        %v3357 = vsel %vm1982, %v3318, 0.0
        %v3358 = vadd.f32 %v3356, %v3357
        %v3359 = vrot.slane %v3358, 4
        %v3360 = vadd.f32 %v3358, %v3359
        %v3361 = vrot.slane %v3360, 2
        %v3362 = vadd.f32 %v3360, %v3361
        %v3363 = vrot.slane %v3362, 1
        %v3364 = vadd.f32 %v3362, %v3363
        %v3365 = vsel %vm1982, %v3319, 0.0
        %v3366 = vsel %vm1982, %v3320, 0.0
        %v3367 = vadd.f32 %v3365, %v3366
        %v3368 = vrot.slane %v3367, 4
        %v3369 = vadd.f32 %v3367, %v3368
        %v3370 = vrot.slane %v3369, 2
        %v3371 = vadd.f32 %v3369, %v3370
        %v3372 = vrot.slane %v3371, 1
        %v3373 = vadd.f32 %v3371, %v3372
        %v3374 = vsel %vm1982, %v3321, 0.0
        %v3375 = vsel %vm1982, %v3322, 0.0
        %v3376 = vadd.f32 %v3374, %v3375
        %v3377 = vrot.slane %v3376, 4
        %v3378 = vadd.f32 %v3376, %v3377
        %v3379 = vrot.slane %v3378, 2
        %v3380 = vadd.f32 %v3378, %v3379
        %v3381 = vrot.slane %v3380, 1
        %v3382 = vadd.f32 %v3380, %v3381
        %v3383 = vsel %vm1982, %v3323, 0.0
        %v3384 = vsel %vm1982, %v3324, 0.0
        %v3385 = vadd.f32 %v3383, %v3384
        %v3386 = vrot.slane %v3385, 4
        %v3387 = vadd.f32 %v3385, %v3386
        %v3388 = vrot.slane %v3387, 2
        %v3389 = vadd.f32 %v3387, %v3388
        %v3390 = vrot.slane %v3389, 1
        %v3391 = vadd.f32 %v3389, %v3390
        %v3392 = vsel %vm1982, %v3325, 0.0
        %v3393 = vsel %vm1982, %v3326, 0.0
        %v3394 = vadd.f32 %v3392, %v3393
        %v3395 = vrot.slane %v3394, 4
        %v3396 = vadd.f32 %v3394, %v3395
        %v3397 = vrot.slane %v3396, 2
        %v3398 = vadd.f32 %v3396, %v3397
        %v3399 = vrot.slane %v3398, 1
        %v3400 = vadd.f32 %v3398, %v3399
        %v3401 = vsel %vm1982, %v3327, 0.0
        %v3402 = vsel %vm1982, %v3328, 0.0
        %v3403 = vadd.f32 %v3401, %v3402
        %v3404 = vrot.slane %v3403, 4
        %v3405 = vadd.f32 %v3403, %v3404
        %v3406 = vrot.slane %v3405, 2
        %v3407 = vadd.f32 %v3405, %v3406
        %v3408 = vrot.slane %v3407, 1
        %v3409 = vadd.f32 %v3407, %v3408
        %v3410 = vsel %vm1982, %v3329, 0.0
        %v3411 = vsel %vm1982, %v3330, 0.0
        %v3412 = vadd.f32 %v3410, %v3411
        %v3413 = vrot.slane %v3412, 4
        %v3414 = vadd.f32 %v3412, %v3413
        %v3415 = vrot.slane %v3414, 2
        %v3416 = vadd.f32 %v3414, %v3415
        %v3417 = vrot.slane %v3416, 1
        %v3418 = vadd.f32 %v3416, %v3417
        %v3419 = vsel %vm1982, %v3331, 0.0
        %v3420 = vsel %vm1982, %v3332, 0.0
        %v3421 = vadd.f32 %v3419, %v3420
        %v3422 = vrot.slane %v3421, 4
        %v3423 = vadd.f32 %v3421, %v3422
        %v3424 = vrot.slane %v3423, 2
        %v3425 = vadd.f32 %v3423, %v3424
        %v3426 = vrot.slane %v3425, 1
        %v3427 = vadd.f32 %v3425, %v3426
        %v3428 = vsel %vm1982, %v3333, 0.0
        %v3429 = vsel %vm1982, %v3334, 0.0
        %v3430 = vadd.f32 %v3428, %v3429
        %v3431 = vrot.slane %v3430, 4
        %v3432 = vadd.f32 %v3430, %v3431
        %v3433 = vrot.slane %v3432, 2
        %v3434 = vadd.f32 %v3432, %v3433
        %v3435 = vrot.slane %v3434, 1
        %v3436 = vadd.f32 %v3434, %v3435
        %v3437 = vsel %vm1982, %v3335, 0.0
        %v3438 = vsel %vm1982, %v3336, 0.0
        %v3439 = vadd.f32 %v3437, %v3438
        %v3440 = vrot.slane %v3439, 4
        %v3441 = vadd.f32 %v3439, %v3440
        %v3442 = vrot.slane %v3441, 2
        %v3443 = vadd.f32 %v3441, %v3442
        %v3444 = vrot.slane %v3443, 1
        %v3445 = vadd.f32 %v3443, %v3444
        %v3446 = vsel %vm1982, %v3337, 0.0
        %v3447 = vsel %vm1982, %v3338, 0.0
        %v3448 = vadd.f32 %v3446, %v3447
        %v3449 = vrot.slane %v3448, 4
        %v3450 = vadd.f32 %v3448, %v3449
        %v3451 = vrot.slane %v3450, 2
        %v3452 = vadd.f32 %v3450, %v3451
        %v3453 = vrot.slane %v3452, 1
        %v3454 = vadd.f32 %v3452, %v3453
        %v3455 = vsel %vm1982, %v3339, 0.0
        %v3456 = vsel %vm1982, %v3340, 0.0
        %v3457 = vadd.f32 %v3455, %v3456
        %v3458 = vrot.slane %v3457, 4
        %v3459 = vadd.f32 %v3457, %v3458
        %v3460 = vrot.slane %v3459, 2
        %v3461 = vadd.f32 %v3459, %v3460
        %v3462 = vrot.slane %v3461, 1
        %v3463 = vadd.f32 %v3461, %v3462
        %v3464 = vsel %vm1982, %v3341, 0.0
        %v3465 = vsel %vm1982, %v3342, 0.0
        %v3466 = vadd.f32 %v3464, %v3465
        %v3467 = vrot.slane %v3466, 4
        %v3468 = vadd.f32 %v3466, %v3467
        %v3469 = vrot.slane %v3468, 2
        %v3470 = vadd.f32 %v3468, %v3469
        %v3471 = vrot.slane %v3470, 1
        %v3472 = vadd.f32 %v3470, %v3471
        %v3473 = vsel %vm1982, %v3343, 0.0
        %v3474 = vsel %vm1982, %v3344, 0.0
        %v3475 = vadd.f32 %v3473, %v3474
        %v3476 = vrot.slane %v3475, 4
        %v3477 = vadd.f32 %v3475, %v3476
        %v3478 = vrot.slane %v3477, 2
        %v3479 = vadd.f32 %v3477, %v3478
        %v3480 = vrot.slane %v3479, 1
        %v3481 = vadd.f32 %v3479, %v3480
        %v3482 = vsel %vm1982, %v3345, 0.0
        %v3483 = vsel %vm1982, %v3346, 0.0
        %v3484 = vadd.f32 %v3482, %v3483
        %v3485 = vrot.slane %v3484, 4
        %v3486 = vadd.f32 %v3484, %v3485
        %v3487 = vrot.slane %v3486, 2
        %v3488 = vadd.f32 %v3486, %v3487
        %v3489 = vrot.slane %v3488, 1
        %v3490 = vadd.f32 %v3488, %v3489
        %v3491 = vld [vmem:[%s9 + $0x7] sm:$0x1]
        %v3492 = vld [vmem:[%s9 + $0x8] sm:$0x1]
        %v3509 = vsel %vm2537, %v3364, %v3355
        %v3510 = vsel %vm2539, %v3373, %v3509
        %v3511 = vsel %vm2541, %v3382, %v3510
        %v3512 = vsel %vm2543, %v3391, %v3511
        %v3513 = vsel %vm2545, %v3400, %v3512
        %v3514 = vsel %vm2547, %v3409, %v3513
        %v3515 = vsel %vm2549, %v3418, %v3514
        %v3516 = vsel %vm2537, %v3436, %v3427
        %v3517 = vsel %vm2539, %v3445, %v3516
        %v3518 = vsel %vm2541, %v3454, %v3517
        %v3519 = vsel %vm2543, %v3463, %v3518
        %v3520 = vsel %vm2545, %v3472, %v3519
        %v3521 = vsel %vm2547, %v3481, %v3520
        %v3522 = vsel %vm2549, %v3490, %v3521
        %v3525 = vsel %vm1982, %v3515, 0.0
        %3526 = vadd.xlane.f32.xlu0 %v3525
        %v3527 = vpop.xlane.xlu0 %3526
        %v3528 = vsel %vm1982, %v3522, 0.0
        %3529 = vadd.xlane.f32.xlu0 %v3528
        %v3530 = vpop.xlane.xlu0 %3529
        %v3531 = vrcp.pop 64.0
        %v3532 = vmul.f32 %v3527, %v3531
        %v3533 = vmul.f32 %v3530, %v3531
        %v3536 = vrot.slane %v3532, 1
        %v3537 = vrot.slane %v3532, 2
        %v3538 = vrot.slane %v3532, 3
        %v3539 = vrot.slane %v3532, 4
        %v3540 = vrot.slane %v3532, 5
        %v3541 = vrot.slane %v3532, 6
        %v3542 = vrot.slane %v3532, 7
        %v3543 = vrot.slane %v3533, 1
        %v3544 = vrot.slane %v3533, 2
        %v3545 = vrot.slane %v3533, 3
        %v3546 = vrot.slane %v3533, 4
        %v3547 = vrot.slane %v3533, 5
        %v3548 = vrot.slane %v3533, 6
        %v3549 = vrot.slane %v3533, 7
        %v3566 = vsub.f32 %v3355, %v3532
        %v3567 = vsub.f32 %v3364, %v3536
        %v3568 = vsub.f32 %v3373, %v3537
        %v3569 = vsub.f32 %v3382, %v3538
        %v3570 = vsub.f32 %v3391, %v3539
        %v3571 = vsub.f32 %v3400, %v3540
        %v3572 = vsub.f32 %v3409, %v3541
        %v3573 = vsub.f32 %v3418, %v3542
        %v3574 = vsub.f32 %v3427, %v3533
        %v3575 = vsub.f32 %v3436, %v3543
        %v3576 = vsub.f32 %v3445, %v3544
        %v3577 = vsub.f32 %v3454, %v3545
        %v3578 = vsub.f32 %v3463, %v3546
        %v3579 = vsub.f32 %v3472, %v3547
        %v3580 = vsub.f32 %v3481, %v3548
        %v3581 = vsub.f32 %v3490, %v3549
        %v3582 = vmul.f32 %v3566, %v3566
        %v3583 = vmul.f32 %v3567, %v3567
        %v3584 = vmul.f32 %v3568, %v3568
        %v3585 = vmul.f32 %v3569, %v3569
        %v3586 = vmul.f32 %v3570, %v3570
        %v3587 = vmul.f32 %v3571, %v3571
        %v3588 = vmul.f32 %v3572, %v3572
        %v3589 = vmul.f32 %v3573, %v3573
        %v3590 = vmul.f32 %v3574, %v3574
        %v3591 = vmul.f32 %v3575, %v3575
        %v3592 = vmul.f32 %v3576, %v3576
        %v3593 = vmul.f32 %v3577, %v3577
        %v3594 = vmul.f32 %v3578, %v3578
        %v3595 = vmul.f32 %v3579, %v3579
        %v3596 = vmul.f32 %v3580, %v3580
        %v3597 = vmul.f32 %v3581, %v3581
        %v3614 = vrot.slane %v3583, 7
        %v3615 = vsel %vm2537, %v3614, %v3582
        %v3616 = vrot.slane %v3584, 6
        %v3617 = vsel %vm2539, %v3616, %v3615
        %v3618 = vrot.slane %v3585, 5
        %v3619 = vsel %vm2541, %v3618, %v3617
        %v3620 = vrot.slane %v3586, 4
        %v3621 = vsel %vm2543, %v3620, %v3619
        %v3622 = vrot.slane %v3587, 3
        %v3623 = vsel %vm2545, %v3622, %v3621
        %v3624 = vrot.slane %v3588, 2
        %v3625 = vsel %vm2547, %v3624, %v3623
        %v3626 = vrot.slane %v3589, 1
        %v3627 = vsel %vm2549, %v3626, %v3625
        %v3628 = vrot.slane %v3591, 7
        %v3629 = vsel %vm2537, %v3628, %v3590
        %v3630 = vrot.slane %v3592, 6
        %v3631 = vsel %vm2539, %v3630, %v3629
        %v3632 = vrot.slane %v3593, 5
        %v3633 = vsel %vm2541, %v3632, %v3631
        %v3634 = vrot.slane %v3594, 4
        %v3635 = vsel %vm2543, %v3634, %v3633
        %v3636 = vrot.slane %v3595, 3
        %v3637 = vsel %vm2545, %v3636, %v3635
        %v3638 = vrot.slane %v3596, 2
        %v3639 = vsel %vm2547, %v3638, %v3637
        %v3640 = vrot.slane %v3597, 1
        %v3641 = vsel %vm2549, %v3640, %v3639
        %v3644 = vsel %vm1982, %v3627, 0.0
        %3645 = vadd.xlane.f32.xlu0 %v3644
        %v3646 = vpop.xlane.xlu0 %3645
        %v3647 = vsel %vm1982, %v3641, 0.0
        %3648 = vadd.xlane.f32.xlu0 %v3647
        %v3649 = vpop.xlane.xlu0 %3648
        %v3650 = vmul.f32 %v3646, %v3531
        %v3651 = vmul.f32 %v3649, %v3531
        %v3652 = vadd.f32 %v3650, 1e-05
        %v3653 = vadd.f32 %v3651, 1e-05
        %v3654 = vrsqrt.pop %v3652
        %v3655 = vrsqrt.pop %v3653
        %v3658 = vrot.slane %v3654, 1
        %v3659 = vrot.slane %v3654, 2
        %v3660 = vrot.slane %v3654, 3
        %v3661 = vrot.slane %v3654, 4
        %v3662 = vrot.slane %v3654, 5
        %v3663 = vrot.slane %v3654, 6
        %v3664 = vrot.slane %v3654, 7
        %v3665 = vrot.slane %v3655, 1
        %v3666 = vrot.slane %v3655, 2
        %v3667 = vrot.slane %v3655, 3
        %v3668 = vrot.slane %v3655, 4
        %v3669 = vrot.slane %v3655, 5
        %v3670 = vrot.slane %v3655, 6
        %v3671 = vrot.slane %v3655, 7
        %v3688 = vmul.f32 %v3566, %v3654
        %v3689 = vmul.f32 %v3567, %v3658
        %v3690 = vmul.f32 %v3568, %v3659
        %v3691 = vmul.f32 %v3569, %v3660
        %v3692 = vmul.f32 %v3570, %v3661
        %v3693 = vmul.f32 %v3571, %v3662
        %v3694 = vmul.f32 %v3572, %v3663
        %v3695 = vmul.f32 %v3573, %v3664
        %v3696 = vmul.f32 %v3574, %v3655
        %v3697 = vmul.f32 %v3575, %v3665
        %v3698 = vmul.f32 %v3576, %v3666
        %v3699 = vmul.f32 %v3577, %v3667
        %v3700 = vmul.f32 %v3578, %v3668
        %v3701 = vmul.f32 %v3579, %v3669
        %v3702 = vmul.f32 %v3580, %v3670
        %v3703 = vmul.f32 %v3581, %v3671
        %v3704 = vlaneseq
        %v3705 = vshrl.u32 %v3704, 7
        %v3706 = vsub.s32 0, %v3705
        %v3707 = vrot.slane %v3491, %v3706
        %v3708 = vmul.f32 %v3688, %v3707
        %v3709 = vmul.f32 %v3689, %v3707
        %v3710 = vmul.f32 %v3690, %v3707
        %v3711 = vmul.f32 %v3691, %v3707
        %v3712 = vmul.f32 %v3692, %v3707
        %v3713 = vmul.f32 %v3693, %v3707
        %v3714 = vmul.f32 %v3694, %v3707
        %v3715 = vmul.f32 %v3695, %v3707
        %v3716 = vmul.f32 %v3696, %v3707
        %v3717 = vmul.f32 %v3697, %v3707
        %v3718 = vmul.f32 %v3698, %v3707
        %v3719 = vmul.f32 %v3699, %v3707
        %v3720 = vmul.f32 %v3700, %v3707
        %v3721 = vmul.f32 %v3701, %v3707
        %v3722 = vmul.f32 %v3702, %v3707
        %v3723 = vmul.f32 %v3703, %v3707
        %v3724 = vlaneseq
        %v3725 = vshrl.u32 %v3724, 7
        %v3726 = vsub.s32 0, %v3725
        %v3727 = vrot.slane %v3492, %v3726
        %v3728 = vadd.f32 %v3708, %v3727
        %v3729 = vadd.f32 %v3709, %v3727
        %v3730 = vadd.f32 %v3710, %v3727
        %v3731 = vadd.f32 %v3711, %v3727
        %v3732 = vadd.f32 %v3712, %v3727
        %v3733 = vadd.f32 %v3713, %v3727
        %v3734 = vadd.f32 %v3714, %v3727
        %v3735 = vadd.f32 %v3715, %v3727
        %v3736 = vadd.f32 %v3716, %v3727
        %v3737 = vadd.f32 %v3717, %v3727
        %v3738 = vadd.f32 %v3718, %v3727
        %v3739 = vadd.f32 %v3719, %v3727
        %v3740 = vadd.f32 %v3720, %v3727
        %v3741 = vadd.f32 %v3721, %v3727
        %v3742 = vadd.f32 %v3722, %v3727
        %v3743 = vadd.f32 %v3723, %v3727
        %v3744 = vld [vmem:[%s399] sm:$0xf]
        %v3745 = vld [vmem:[%s399 + $0x4] sm:$0xf]
        %v3746 = vld [vmem:[%s4] sm:$0xf]
        %v3747 = vld [vmem:[%s4 + $0x4] sm:$0xf]
        %v3748 = vld [vmem:[%s9 + $0x1] sm:$0x1]
        %v3749 = vlaneseq
        %v3750 = vshrl.u32 %v3749, 7
        %v3751 = vsub.s32 0, %v3750
        %v3752 = vrot.slane %v3748, %v3751
        %v3755 = vunpack.c.l.b16 %v3744
        %v3756 = vunpack.c.l.b16 %v3745
        %v3757 = vpack.c.b16 %v3756, %v3755
        %v3760 = vunpack.c.l.b16 %v3746
        %v3761 = vunpack.c.l.b16 %v3747
        %v3762 = vpack.c.b16 %v3761, %v3760
        %v3765 = vsel %vm2560, %v3757, 0
        %3767 = vmatprep.subr.bf16.mxu0 0
        %3768 = vmatpush1.bf16.msra.mxu0 %v3762
        %3769 = vmatprep.subr.bf16.mxu0 0
        %3770 = vmatpush1.bf16.msra.mxu0 0
        %3771 = vmatprep.subr.bf16.mxu0 0
        %3772 = vmatpush1.bf16.msra.mxu0 0
        %3773 = vmatprep.subr.bf16.mxu0 0
        %3774 = vmatpush1.bf16.msra.mxu0 0
        %3775 = vmatprep.subr.bf16.mxu0 0
        %3776 = vmatpush1.bf16.msra.mxu0 0
        %3777 = vmatprep.subr.bf16.mxu0 0
        %3778 = vmatpush1.bf16.msra.mxu0 0
        %3779 = vmatprep.subr.bf16.mxu0 0
        %3780 = vmatpush1.bf16.msra.mxu0 0
        %3781 = vmatprep.subr.bf16.mxu0 0
        %3782 = vmatpush1.bf16.msra.mxu0 0
        %3783 = vmatprep.subr.bf16.mxu0 0
        %3784 = vmatpush1.bf16.msra.mxu0 0
        %3785 = vmatprep.subr.bf16.mxu0 0
        %3786 = vmatpush1.bf16.msra.mxu0 0
        %3787 = vmatprep.subr.bf16.mxu0 0
        %3788 = vmatpush1.bf16.msra.mxu0 0
        %3789 = vmatprep.subr.bf16.mxu0 0
        %3790 = vmatpush1.bf16.msra.mxu0 0
        %3791 = vmatprep.subr.bf16.mxu0 0
        %3792 = vmatpush1.bf16.msra.mxu0 0
        %3793 = vmatprep.subr.bf16.mxu0 0
        %3794 = vmatpush1.bf16.msra.mxu0 0
        %3795 = vmatprep.subr.bf16.mxu0 0
        %3796 = vmatpush1.bf16.msra.mxu0 0
        %3797 = vmatprep.subr.bf16.mxu0 0
        %3798 = vmatpush1.bf16.msra.mxu0 0
        %3799 = vmatprep.mubr.bf16.mxu0 0
        %3800 = vmatmul.mubr.bf16.gmra.mrb[0].mxu0 %v3765
        %v3801 = vpop.f32.mrb[0].mxu0
        %v3802 = vadd.f32 %v3752, %v3801
        %v3803 = vpop.f32.mrb[0].mxu0
        %v3804 = vpop.f32.mrb[0].mxu0
        %v3805 = vadd.f32 %v3752, %v3804
        %v3806 = vpop.f32.mrb[0].mxu0
        %3807 = vdwg.mxu0
        %v3808 = vld [vmem:[%s9 + $0x3] sm:$0x1]
        %v3809 = vld [vmem:[%s9 + $0x4] sm:$0x1]
        %v3810 = vsel %vm1982, %v3802, 0.0
        %3811 = vadd.xlane.f32.xlu0 %v3810
        %v3812 = vpop.xlane.xlu0 %3811
        %v3813 = vsel %vm1982, %v3805, 0.0
        %3814 = vadd.xlane.f32.xlu0 %v3813
        %v3815 = vpop.xlane.xlu0 %3814
        %v3816 = vmul.f32 %v3812, %v3531
        %v3817 = vmul.f32 %v3815, %v3531
        %v3818 = vsub.f32 %v3802, %v3816
        %v3819 = vsub.f32 %v3805, %v3817
        %v3820 = vmul.f32 %v3818, %v3818
        %v3821 = vmul.f32 %v3819, %v3819
        %v3822 = vsel %vm1982, %v3820, 0.0
        %3823 = vadd.xlane.f32.xlu0 %v3822
        %v3824 = vpop.xlane.xlu0 %3823
        %v3825 = vsel %vm1982, %v3821, 0.0
        %3826 = vadd.xlane.f32.xlu0 %v3825
        %v3827 = vpop.xlane.xlu0 %3826
        %v3828 = vmul.f32 %v3824, %v3531
        %v3829 = vmul.f32 %v3827, %v3531
        %v3830 = vadd.f32 %v3828, 1e-05
        %v3831 = vadd.f32 %v3829, 1e-05
        %v3832 = vrsqrt.pop %v3830
        %v3833 = vrsqrt.pop %v3831
        %v3834 = vmul.f32 %v3818, %v3832
        %v3835 = vmul.f32 %v3819, %v3833
        %v3836 = vlaneseq
        %v3837 = vshrl.u32 %v3836, 7
        %v3838 = vsub.s32 0, %v3837
        %v3839 = vrot.slane %v3808, %v3838
        %v3840 = vmul.f32 %v3834, %v3839
        %v3841 = vmul.f32 %v3835, %v3839
        %v3842 = vlaneseq
        %v3843 = vshrl.u32 %v3842, 7
        %v3844 = vsub.s32 0, %v3843
        %v3845 = vrot.slane %v3809, %v3844
        %v3846 = vadd.f32 %v3840, %v3845
        %v3847 = vadd.f32 %v3841, %v3845
        %v3848 = vld [vmem:[%s405] sm:$0xf]
        %v3849 = vld [vmem:[%s405 + $0x4] sm:$0xf]
        %v3850 = vld [vmem:[%s5] sm:$0xf]
        %v3851 = vld [vmem:[%s5 + $0x4] sm:$0xf]
        %v3852 = vld [vmem:[%s9 + $0x2] sm:$0x1]
        %v3853 = vlaneseq
        %v3854 = vshrl.u32 %v3853, 7
        %v3855 = vsub.s32 0, %v3854
        %v3856 = vrot.slane %v3852, %v3855
        %v3859 = vunpack.c.l.b16 %v3848
        %v3860 = vunpack.c.l.b16 %v3849
        %v3861 = vpack.c.b16 %v3860, %v3859
        %v3864 = vunpack.c.l.b16 %v3850
        %v3865 = vunpack.c.l.b16 %v3851
        %v3866 = vpack.c.b16 %v3865, %v3864
        %v3869 = vsel %vm2560, %v3861, 0
        %3871 = vmatprep.subr.bf16.mxu0 0
        %3872 = vmatpush1.bf16.msra.mxu0 %v3866
        %3873 = vmatprep.subr.bf16.mxu0 0
        %3874 = vmatpush1.bf16.msra.mxu0 0
        %3875 = vmatprep.subr.bf16.mxu0 0
        %3876 = vmatpush1.bf16.msra.mxu0 0
        %3877 = vmatprep.subr.bf16.mxu0 0
        %3878 = vmatpush1.bf16.msra.mxu0 0
        %3879 = vmatprep.subr.bf16.mxu0 0
        %3880 = vmatpush1.bf16.msra.mxu0 0
        %3881 = vmatprep.subr.bf16.mxu0 0
        %3882 = vmatpush1.bf16.msra.mxu0 0
        %3883 = vmatprep.subr.bf16.mxu0 0
        %3884 = vmatpush1.bf16.msra.mxu0 0
        %3885 = vmatprep.subr.bf16.mxu0 0
        %3886 = vmatpush1.bf16.msra.mxu0 0
        %3887 = vmatprep.subr.bf16.mxu0 0
        %3888 = vmatpush1.bf16.msra.mxu0 0
        %3889 = vmatprep.subr.bf16.mxu0 0
        %3890 = vmatpush1.bf16.msra.mxu0 0
        %3891 = vmatprep.subr.bf16.mxu0 0
        %3892 = vmatpush1.bf16.msra.mxu0 0
        %3893 = vmatprep.subr.bf16.mxu0 0
        %3894 = vmatpush1.bf16.msra.mxu0 0
        %3895 = vmatprep.subr.bf16.mxu0 0
        %3896 = vmatpush1.bf16.msra.mxu0 0
        %3897 = vmatprep.subr.bf16.mxu0 0
        %3898 = vmatpush1.bf16.msra.mxu0 0
        %3899 = vmatprep.subr.bf16.mxu0 0
        %3900 = vmatpush1.bf16.msra.mxu0 0
        %3901 = vmatprep.subr.bf16.mxu0 0
        %3902 = vmatpush1.bf16.msra.mxu0 0
        %3903 = vmatprep.mubr.bf16.mxu0 0
        %3904 = vmatmul.mubr.bf16.gmra.mrb[0].mxu0 %v3869
        %v3905 = vpop.f32.mrb[0].mxu0
        %v3906 = vadd.f32 %v3856, %v3905
        %v3907 = vpop.f32.mrb[0].mxu0
        %v3908 = vpop.f32.mrb[0].mxu0
        %v3909 = vadd.f32 %v3856, %v3908
        %v3910 = vpop.f32.mrb[0].mxu0
        %3911 = vdwg.mxu0
        %v3912 = vld [vmem:[%s9 + $0x5] sm:$0x1]
        %v3913 = vld [vmem:[%s9 + $0x6] sm:$0x1]
        %v3914 = vsel %vm1982, %v3906, 0.0
        %3915 = vadd.xlane.f32.xlu0 %v3914
        %v3916 = vpop.xlane.xlu0 %3915
        %v3917 = vsel %vm1982, %v3909, 0.0
        %3918 = vadd.xlane.f32.xlu0 %v3917
        %v3919 = vpop.xlane.xlu0 %3918
        %v3920 = vmul.f32 %v3916, %v3531
        %v3921 = vmul.f32 %v3919, %v3531
        %v3922 = vsub.f32 %v3906, %v3920
        %v3923 = vsub.f32 %v3909, %v3921
        %v3924 = vmul.f32 %v3922, %v3922
        %v3925 = vmul.f32 %v3923, %v3923
        %v3926 = vsel %vm1982, %v3924, 0.0
        %3927 = vadd.xlane.f32.xlu0 %v3926
        %v3928 = vpop.xlane.xlu0 %3927
        %v3929 = vsel %vm1982, %v3925, 0.0
        %3930 = vadd.xlane.f32.xlu0 %v3929
        %v3931 = vpop.xlane.xlu0 %3930
        %v3932 = vmul.f32 %v3928, %v3531
        %v3933 = vmul.f32 %v3931, %v3531
        %v3934 = vadd.f32 %v3932, 1e-05
        %v3935 = vadd.f32 %v3933, 1e-05
        %v3936 = vrsqrt.pop %v3934
        %v3937 = vrsqrt.pop %v3935
        %v3938 = vmul.f32 %v3922, %v3936
        %v3939 = vmul.f32 %v3923, %v3937
        %v3940 = vlaneseq
        %v3941 = vshrl.u32 %v3940, 7
        %v3942 = vsub.s32 0, %v3941
        %v3943 = vrot.slane %v3912, %v3942
        %v3944 = vmul.f32 %v3938, %v3943
        %v3945 = vmul.f32 %v3939, %v3943
        %v3946 = vlaneseq
        %v3947 = vshrl.u32 %v3946, 7
        %v3948 = vsub.s32 0, %v3947
        %v3949 = vrot.slane %v3913, %v3948
        %v3950 = vadd.f32 %v3944, %v3949
        %v3951 = vadd.f32 %v3945, %v3949
        %v3952 = vld [vmem:[%s7] sm:$0xf]
        %v3953 = vld [vmem:[%s7 + $0x4] sm:$0xf]
        %v3954 = vld [vmem:[%s7 + $0x8] sm:$0xf]
        %v3955 = vld [vmem:[%s7 + $0xc] sm:$0xf]
        %v3956 = vld [vmem:[%s7 + $0x10] sm:$0xf]
        %v3957 = vld [vmem:[%s7 + $0x14] sm:$0xf]
        %v3958 = vld [vmem:[%s7 + $0x18] sm:$0xf]
        %v3959 = vld [vmem:[%s7 + $0x1c] sm:$0xf]
        %v3960 = vld [vmem:[%s9 + $0xf] sm:$0x1]
        %v3961 = vld [vmem:[%s9 + $0x10] sm:$0x1]
        %v3962 = vpack.c.bf16 %v3728, %v3728
        %v3963 = vpack.c.bf16 %v3729, %v3729
        %v3964 = vpack.c.bf16 %v3730, %v3730
        %v3965 = vpack.c.bf16 %v3731, %v3731
        %v3966 = vpack.c.bf16 %v3732, %v3732
        %v3967 = vpack.c.bf16 %v3733, %v3733
        %v3968 = vpack.c.bf16 %v3734, %v3734
        %v3969 = vpack.c.bf16 %v3735, %v3735
        %v3970 = vpack.c.bf16 %v3736, %v3736
        %v3971 = vpack.c.bf16 %v3737, %v3737
        %v3972 = vpack.c.bf16 %v3738, %v3738
        %v3973 = vpack.c.bf16 %v3739, %v3739
        %v3974 = vpack.c.bf16 %v3740, %v3740
        %v3975 = vpack.c.bf16 %v3741, %v3741
        %v3976 = vpack.c.bf16 %v3742, %v3742
        %v3977 = vpack.c.bf16 %v3743, %v3743
        %v3978 = vlaneseq
        %v3979 = vshrl.u32 %v3978, 7
        %v3980 = vsub.s32 0, %v3979
        %v3981 = vrot.slane %v3960, %v3980
        %v3998 = vunpack.c.l.b16 %v3962
        %v3999 = vunpack.c.l.b16 %v3963
        %v4000 = vunpack.c.l.b16 %v3964
        %v4001 = vunpack.c.l.b16 %v3965
        %v4002 = vunpack.c.l.b16 %v3966
        %v4003 = vunpack.c.l.b16 %v3967
        %v4004 = vunpack.c.l.b16 %v3968
        %v4005 = vunpack.c.l.b16 %v3969
        %v4006 = vunpack.c.l.b16 %v3970
        %v4007 = vunpack.c.l.b16 %v3971
        %v4008 = vunpack.c.l.b16 %v3972
        %v4009 = vunpack.c.l.b16 %v3973
        %v4010 = vunpack.c.l.b16 %v3974
        %v4011 = vunpack.c.l.b16 %v3975
        %v4012 = vunpack.c.l.b16 %v3976
        %v4013 = vunpack.c.l.b16 %v3977
        %v4014 = vrot.slane %v3999, 7
        %v4015 = vsel %vm2537, %v4014, %v3998
        %v4016 = vrot.slane %v4000, 6
        %v4017 = vsel %vm2539, %v4016, %v4015
        %v4018 = vrot.slane %v4001, 5
        %v4019 = vsel %vm2541, %v4018, %v4017
        %v4020 = vrot.slane %v4002, 4
        %v4021 = vsel %vm2543, %v4020, %v4019
        %v4022 = vrot.slane %v4003, 3
        %v4023 = vsel %vm2545, %v4022, %v4021
        %v4024 = vrot.slane %v4004, 2
        %v4025 = vsel %vm2547, %v4024, %v4023
        %v4026 = vrot.slane %v4005, 1
        %v4027 = vsel %vm2549, %v4026, %v4025
        %v4028 = vrot.slane %v4007, 7
        %v4029 = vsel %vm2537, %v4028, %v4006
        %v4030 = vrot.slane %v4008, 6
        %v4031 = vsel %vm2539, %v4030, %v4029
        %v4032 = vrot.slane %v4009, 5
        %v4033 = vsel %vm2541, %v4032, %v4031
        %v4034 = vrot.slane %v4010, 4
        %v4035 = vsel %vm2543, %v4034, %v4033
        %v4036 = vrot.slane %v4011, 3
        %v4037 = vsel %vm2545, %v4036, %v4035
        %v4038 = vrot.slane %v4012, 2
        %v4039 = vsel %vm2547, %v4038, %v4037
        %v4040 = vrot.slane %v4013, 1
        %v4041 = vsel %vm2549, %v4040, %v4039
        %v4042 = vpack.c.b16 %v4041, %v4027
        %v4051 = vunpack.c.l.b16 %v3952
        %v4052 = vunpack.c.l.b16 %v3953
        %v4053 = vunpack.c.l.b16 %v3954
        %v4054 = vunpack.c.l.b16 %v3955
        %v4055 = vunpack.c.l.b16 %v3956
        %v4056 = vunpack.c.l.b16 %v3957
        %v4057 = vunpack.c.l.b16 %v3958
        %v4058 = vunpack.c.l.b16 %v3959
        %v4059 = vpack.c.b16 %v4052, %v4051
        %v4060 = vpack.c.b16 %v4054, %v4053
        %v4061 = vpack.c.b16 %v4056, %v4055
        %v4062 = vpack.c.b16 %v4058, %v4057
        %v4068 = vsel %vm1982, %v4042, 0
        %4070 = vmatprep.subr.bf16.mxu0 0
        %4071 = vmatpush1.bf16.msra.mxu0 %v4059
        %4072 = vmatprep.subr.bf16.mxu0 0
        %4073 = vmatpush1.bf16.msra.mxu0 %v4060
        %4074 = vmatprep.subr.bf16.mxu0 0
        %4075 = vmatpush1.bf16.msra.mxu0 %v4061
        %4076 = vmatprep.subr.bf16.mxu0 0
        %4077 = vmatpush1.bf16.msra.mxu0 %v4062
        %4078 = vmatprep.subr.bf16.mxu0 0
        %4079 = vmatpush1.bf16.msra.mxu0 0
        %4080 = vmatprep.subr.bf16.mxu0 0
        %4081 = vmatpush1.bf16.msra.mxu0 0
        %4082 = vmatprep.subr.bf16.mxu0 0
        %4083 = vmatpush1.bf16.msra.mxu0 0
        %4084 = vmatprep.subr.bf16.mxu0 0
        %4085 = vmatpush1.bf16.msra.mxu0 0
        %4086 = vmatprep.subr.bf16.mxu0 0
        %4087 = vmatpush1.bf16.msra.mxu0 0
        %4088 = vmatprep.subr.bf16.mxu0 0
        %4089 = vmatpush1.bf16.msra.mxu0 0
        %4090 = vmatprep.subr.bf16.mxu0 0
        %4091 = vmatpush1.bf16.msra.mxu0 0
        %4092 = vmatprep.subr.bf16.mxu0 0
        %4093 = vmatpush1.bf16.msra.mxu0 0
        %4094 = vmatprep.subr.bf16.mxu0 0
        %4095 = vmatpush1.bf16.msra.mxu0 0
        %4096 = vmatprep.subr.bf16.mxu0 0
        %4097 = vmatpush1.bf16.msra.mxu0 0
        %4098 = vmatprep.subr.bf16.mxu0 0
        %4099 = vmatpush1.bf16.msra.mxu0 0
        %4100 = vmatprep.subr.bf16.mxu0 0
        %4101 = vmatpush1.bf16.msra.mxu0 0
        %4102 = vmatprep.mubr.bf16.mxu0 0
        %4103 = vmatmul.mubr.bf16.gmra.mrb[0].mxu0 %v4068
        %v4104 = vpop.f32.mrb[0].mxu0
        %v4105 = vadd.f32 %v3981, %v4104
        %v4106 = vpop.f32.mrb[0].mxu0
        %v4107 = vpop.f32.mrb[0].mxu0
        %v4108 = vadd.f32 %v3981, %v4107
        %v4109 = vpop.f32.mrb[0].mxu0
        %4110 = vdwg.mxu0
        %v4111 = vtanh.pop %v4105
        %v4112 = vtanh.pop %v4108
        %v4113 = vlaneseq
        %v4114 = vshrl.u32 %v4113, 7
        %v4115 = vsub.s32 0, %v4114
        %v4116 = vrot.slane %v3961, %v4115
        %v4117 = vmul.f32 %v4111, %v4116
        %v4118 = vmul.f32 %v4112, %v4116
        %v4119 = vsel %vm912, %v4117, 0.0
        %4120 = vadd.xlane.f32.xlu0 %v4119
        %v4121 = vpop.xlane.xlu0 %4120
        %v4122 = vsel %vm912, %v4118, 0.0
        %4123 = vadd.xlane.f32.xlu0 %v4122
        %v4124 = vpop.xlane.xlu0 %4123
        %v4125 = vpack.c.bf16 %v3847, %v3846
        %v4127 = vsel %vm1982, %v4125, 0
        %4129 = vmatprep.subr.bf16.mxu0 0
        %4130 = vmatpush1.bf16.msra.mxu0 %v4059
        %4131 = vmatprep.subr.bf16.mxu0 0
        %4132 = vmatpush1.bf16.msra.mxu0 %v4060
        %4133 = vmatprep.subr.bf16.mxu0 0
        %4134 = vmatpush1.bf16.msra.mxu0 %v4061
        %4135 = vmatprep.subr.bf16.mxu0 0
        %4136 = vmatpush1.bf16.msra.mxu0 %v4062
        %4137 = vmatprep.subr.bf16.mxu0 0
        %4138 = vmatpush1.bf16.msra.mxu0 0
        %4139 = vmatprep.subr.bf16.mxu0 0
        %4140 = vmatpush1.bf16.msra.mxu0 0
        %4141 = vmatprep.subr.bf16.mxu0 0
        %4142 = vmatpush1.bf16.msra.mxu0 0
        %4143 = vmatprep.subr.bf16.mxu0 0
        %4144 = vmatpush1.bf16.msra.mxu0 0
        %4145 = vmatprep.subr.bf16.mxu0 0
        %4146 = vmatpush1.bf16.msra.mxu0 0
        %4147 = vmatprep.subr.bf16.mxu0 0
        %4148 = vmatpush1.bf16.msra.mxu0 0
        %4149 = vmatprep.subr.bf16.mxu0 0
        %4150 = vmatpush1.bf16.msra.mxu0 0
        %4151 = vmatprep.subr.bf16.mxu0 0
        %4152 = vmatpush1.bf16.msra.mxu0 0
        %4153 = vmatprep.subr.bf16.mxu0 0
        %4154 = vmatpush1.bf16.msra.mxu0 0
        %4155 = vmatprep.subr.bf16.mxu0 0
        %4156 = vmatpush1.bf16.msra.mxu0 0
        %4157 = vmatprep.subr.bf16.mxu0 0
        %4158 = vmatpush1.bf16.msra.mxu0 0
        %4159 = vmatprep.subr.bf16.mxu0 0
        %4160 = vmatpush1.bf16.msra.mxu0 0
        %4161 = vmatprep.mubr.bf16.mxu0 0
        %4162 = vmatmul.mubr.bf16.gmra.mrb[0].mxu0 %v4127
        %v4163 = vpop.f32.mrb[0].mxu0
        %v4164 = vadd.f32 %v3981, %v4163
        %v4165 = vpop.f32.mrb[0].mxu0
        %v4166 = vpop.f32.mrb[0].mxu0
        %v4167 = vadd.f32 %v3981, %v4166
        %v4168 = vpop.f32.mrb[0].mxu0
        %4169 = vdwg.mxu0
        %v4170 = vtanh.pop %v4164
        %v4171 = vtanh.pop %v4167
        %v4172 = vmul.f32 %v4170, %v4116
        %v4173 = vmul.f32 %v4171, %v4116
        %v4174 = vsel %vm912, %v4172, 0.0
        %4175 = vadd.xlane.f32.xlu0 %v4174
        %v4176 = vpop.xlane.xlu0 %4175
        %v4177 = vsel %vm912, %v4173, 0.0
        %4178 = vadd.xlane.f32.xlu0 %v4177
        %v4179 = vpop.xlane.xlu0 %4178
        %v4180 = vpack.c.bf16 %v3951, %v3950
        %v4182 = vsel %vm1982, %v4180, 0
        %4184 = vmatprep.subr.bf16.mxu0 0
        %4185 = vmatpush1.bf16.msra.mxu0 %v4059
        %4186 = vmatprep.subr.bf16.mxu0 0
        %4187 = vmatpush1.bf16.msra.mxu0 %v4060
        %4188 = vmatprep.subr.bf16.mxu0 0
        %4189 = vmatpush1.bf16.msra.mxu0 %v4061
        %4190 = vmatprep.subr.bf16.mxu0 0
        %4191 = vmatpush1.bf16.msra.mxu0 %v4062
        %4192 = vmatprep.subr.bf16.mxu0 0
        %4193 = vmatpush1.bf16.msra.mxu0 0
        %4194 = vmatprep.subr.bf16.mxu0 0
        %4195 = vmatpush1.bf16.msra.mxu0 0
        %4196 = vmatprep.subr.bf16.mxu0 0
        %4197 = vmatpush1.bf16.msra.mxu0 0
        %4198 = vmatprep.subr.bf16.mxu0 0
        %4199 = vmatpush1.bf16.msra.mxu0 0
        %4200 = vmatprep.subr.bf16.mxu0 0
        %4201 = vmatpush1.bf16.msra.mxu0 0
        %4202 = vmatprep.subr.bf16.mxu0 0
        %4203 = vmatpush1.bf16.msra.mxu0 0
        %4204 = vmatprep.subr.bf16.mxu0 0
        %4205 = vmatpush1.bf16.msra.mxu0 0
        %4206 = vmatprep.subr.bf16.mxu0 0
        %4207 = vmatpush1.bf16.msra.mxu0 0
        %4208 = vmatprep.subr.bf16.mxu0 0
        %4209 = vmatpush1.bf16.msra.mxu0 0
        %4210 = vmatprep.subr.bf16.mxu0 0
        %4211 = vmatpush1.bf16.msra.mxu0 0
        %4212 = vmatprep.subr.bf16.mxu0 0
        %4213 = vmatpush1.bf16.msra.mxu0 0
        %4214 = vmatprep.subr.bf16.mxu0 0
        %4215 = vmatpush1.bf16.msra.mxu0 0
        %4216 = vmatprep.mubr.bf16.mxu0 0
        %4217 = vmatmul.mubr.bf16.gmra.mrb[0].mxu0 %v4182
        %v4218 = vpop.f32.mrb[0].mxu0
        %v4219 = vadd.f32 %v3981, %v4218
        %v4220 = vpop.f32.mrb[0].mxu0
        %v4221 = vpop.f32.mrb[0].mxu0
        %v4222 = vadd.f32 %v3981, %v4221
        %v4223 = vpop.f32.mrb[0].mxu0
        %4224 = vdwg.mxu0
        %v4225 = vtanh.pop %v4219
        %v4226 = vtanh.pop %v4222
        %v4227 = vmul.f32 %v4225, %v4116
        %v4228 = vmul.f32 %v4226, %v4116
        %v4229 = vsel %vm912, %v4227, 0.0
        %4230 = vadd.xlane.f32.xlu0 %v4229
        %v4231 = vpop.xlane.xlu0 %4230
        %v4232 = vsel %vm912, %v4228, 0.0
        %4233 = vadd.xlane.f32.xlu0 %v4232
        %v4234 = vpop.xlane.xlu0 %4233
        %v4235 = vmax.f32 %v4121, %v4176
        %v4236 = vmax.f32 %v4124, %v4179
        %v4237 = vmax.f32 %v4235, %v4231
        %v4238 = vmax.f32 %v4236, %v4234
        %v4239 = vsub.f32 %v4121, %v4237
        %v4240 = vsub.f32 %v4124, %v4238
        %v4241 = vmul.f32 %v4239, 1.442695
        %v4242 = vpow.pop %v4241
        %v4243 = vmul.f32 %v4240, 1.442695
        %v4244 = vpow.pop %v4243
        %v4245 = vsub.f32 %v4176, %v4237
        %v4246 = vsub.f32 %v4179, %v4238
        %v4247 = vmul.f32 %v4245, 1.442695
        %v4248 = vpow.pop %v4247
        %v4249 = vmul.f32 %v4246, 1.442695
        %v4250 = vpow.pop %v4249
        %v4251 = vsub.f32 %v4231, %v4237
        %v4252 = vsub.f32 %v4234, %v4238
        %v4253 = vmul.f32 %v4251, 1.442695
        %v4254 = vpow.pop %v4253
        %v4255 = vmul.f32 %v4252, 1.442695
        %v4256 = vpow.pop %v4255
        %v4257 = vadd.f32 %v4242, %v4248
        %v4258 = vadd.f32 %v4244, %v4250
        %v4259 = vadd.f32 %v4257, %v4254
        %v4260 = vadd.f32 %v4258, %v4256
        %v4261 = vrcp.pop %v4259
        %v4262 = vrcp.pop %v4260
        %v4279 = vrot.slane %v3729, 7
        %v4280 = vsel %vm2537, %v4279, %v3728
        %v4281 = vrot.slane %v3730, 6
        %v4282 = vsel %vm2539, %v4281, %v4280
        %v4283 = vrot.slane %v3731, 5
        %v4284 = vsel %vm2541, %v4283, %v4282
        %v4285 = vrot.slane %v3732, 4
        %v4286 = vsel %vm2543, %v4285, %v4284
        %v4287 = vrot.slane %v3733, 3
        %v4288 = vsel %vm2545, %v4287, %v4286
        %v4289 = vrot.slane %v3734, 2
        %v4290 = vsel %vm2547, %v4289, %v4288
        %v4291 = vrot.slane %v3735, 1
        %v4292 = vsel %vm2549, %v4291, %v4290
        %v4293 = vrot.slane %v3737, 7
        %v4294 = vsel %vm2537, %v4293, %v3736
        %v4295 = vrot.slane %v3738, 6
        %v4296 = vsel %vm2539, %v4295, %v4294
        %v4297 = vrot.slane %v3739, 5
        %v4298 = vsel %vm2541, %v4297, %v4296
        %v4299 = vrot.slane %v3740, 4
        %v4300 = vsel %vm2543, %v4299, %v4298
        %v4301 = vrot.slane %v3741, 3
        %v4302 = vsel %vm2545, %v4301, %v4300
        %v4303 = vrot.slane %v3742, 2
        %v4304 = vsel %vm2547, %v4303, %v4302
        %v4305 = vrot.slane %v3743, 1
        %v4306 = vsel %vm2549, %v4305, %v4304
        %v4309 = vmul.f32 %v4242, %v4292
        %v4310 = vmul.f32 %v4244, %v4306
        %v4311 = vmul.f32 %v4248, %v3846
        %v4312 = vmul.f32 %v4250, %v3847
        %v4313 = vadd.f32 %v4309, %v4311
        %v4314 = vadd.f32 %v4310, %v4312
        %v4315 = vmul.f32 %v4254, %v3950
        %v4316 = vmul.f32 %v4256, %v3951
        %v4317 = vadd.f32 %v4313, %v4315
        %v4318 = vadd.f32 %v4314, %v4316
        %v4319 = vmul.f32 %v4317, %v4261
        %v4320 = vmul.f32 %v4318, %v4262
        %v4321 = vld [vmem:[%s9 + $0x9] sm:$0x1]
        %v4322 = vld [vmem:[%s9 + $0xa] sm:$0x1]
        %v4323 = vsel %vm1982, %v4319, 0.0
        %4324 = vadd.xlane.f32.xlu0 %v4323
        %v4325 = vpop.xlane.xlu0 %4324
        %v4326 = vsel %vm1982, %v4320, 0.0
        %4327 = vadd.xlane.f32.xlu0 %v4326
        %v4328 = vpop.xlane.xlu0 %4327
        %v4329 = vmul.f32 %v4325, %v3531
        %v4330 = vmul.f32 %v4328, %v3531
        %v4331 = vsub.f32 %v4319, %v4329
        %v4332 = vsub.f32 %v4320, %v4330
        %v4333 = vmul.f32 %v4331, %v4331
        %v4334 = vmul.f32 %v4332, %v4332
        %v4335 = vsel %vm1982, %v4333, 0.0
        %4336 = vadd.xlane.f32.xlu0 %v4335
        %v4337 = vpop.xlane.xlu0 %4336
        %v4338 = vsel %vm1982, %v4334, 0.0
        %4339 = vadd.xlane.f32.xlu0 %v4338
        %v4340 = vpop.xlane.xlu0 %4339
        %v4341 = vmul.f32 %v4337, %v3531
        %v4342 = vmul.f32 %v4340, %v3531
        %v4343 = vadd.f32 %v4341, 1e-05
        %v4344 = vadd.f32 %v4342, 1e-05
        %v4345 = vrsqrt.pop %v4343
        %v4346 = vrsqrt.pop %v4344
        %v4347 = vmul.f32 %v4331, %v4345
        %v4348 = vmul.f32 %v4332, %v4346
        %v4349 = vlaneseq
        %v4350 = vshrl.u32 %v4349, 7
        %v4351 = vsub.s32 0, %v4350
        %v4352 = vrot.slane %v4321, %v4351
        %v4353 = vmul.f32 %v4347, %v4352
        %v4354 = vmul.f32 %v4348, %v4352
        %v4355 = vlaneseq
        %v4356 = vshrl.u32 %v4355, 7
        %v4357 = vsub.s32 0, %v4356
        %v4358 = vrot.slane %v4322, %v4357
        %v4359 = vadd.f32 %v4353, %v4358
        %v4360 = vadd.f32 %v4354, %v4358
        %v4361 = vld [vmem:[%s8] sm:$0xf]
        %v4362 = vld [vmem:[%s8 + $0x4] sm:$0xf]
        %v4363 = vld [vmem:[%s8 + $0x8] sm:$0xf]
        %v4364 = vld [vmem:[%s8 + $0xc] sm:$0xf]
        %v4365 = vld [vmem:[%s8 + $0x10] sm:$0xf]
        %v4366 = vld [vmem:[%s8 + $0x14] sm:$0xf]
        %v4367 = vld [vmem:[%s8 + $0x18] sm:$0xf]
        %v4368 = vld [vmem:[%s8 + $0x1c] sm:$0xf]
        %v4369 = vpack.c.bf16 %v4360, %v4359
        %v4370 = vld [vmem:[%s9 + $0x11] sm:$0x1]
        %v4371 = vlaneseq
        %v4372 = vshrl.u32 %v4371, 7
        %v4373 = vsub.s32 0, %v4372
        %v4374 = vrot.slane %v4370, %v4373
        %v4383 = vunpack.c.l.b16 %v4361
        %v4384 = vunpack.c.l.b16 %v4362
        %v4385 = vunpack.c.l.b16 %v4363
        %v4386 = vunpack.c.l.b16 %v4364
        %v4387 = vunpack.c.l.b16 %v4365
        %v4388 = vunpack.c.l.b16 %v4366
        %v4389 = vunpack.c.l.b16 %v4367
        %v4390 = vunpack.c.l.b16 %v4368
        %v4391 = vpack.c.b16 %v4384, %v4383
        %v4392 = vpack.c.b16 %v4386, %v4385
        %v4393 = vpack.c.b16 %v4388, %v4387
        %v4394 = vpack.c.b16 %v4390, %v4389
        %v4400 = vsel %vm1982, %v4369, 0
        %4402 = vmatprep.subr.bf16.mxu0 0
        %4403 = vmatpush1.bf16.msra.mxu0 %v4391
        %4404 = vmatprep.subr.bf16.mxu0 0
        %4405 = vmatpush1.bf16.msra.mxu0 %v4392
        %4406 = vmatprep.subr.bf16.mxu0 0
        %4407 = vmatpush1.bf16.msra.mxu0 %v4393
        %4408 = vmatprep.subr.bf16.mxu0 0
        %4409 = vmatpush1.bf16.msra.mxu0 %v4394
        %4410 = vmatprep.subr.bf16.mxu0 0
        %4411 = vmatpush1.bf16.msra.mxu0 0
        %4412 = vmatprep.subr.bf16.mxu0 0
        %4413 = vmatpush1.bf16.msra.mxu0 0
        %4414 = vmatprep.subr.bf16.mxu0 0
        %4415 = vmatpush1.bf16.msra.mxu0 0
        %4416 = vmatprep.subr.bf16.mxu0 0
        %4417 = vmatpush1.bf16.msra.mxu0 0
        %4418 = vmatprep.subr.bf16.mxu0 0
        %4419 = vmatpush1.bf16.msra.mxu0 0
        %4420 = vmatprep.subr.bf16.mxu0 0
        %4421 = vmatpush1.bf16.msra.mxu0 0
        %4422 = vmatprep.subr.bf16.mxu0 0
        %4423 = vmatpush1.bf16.msra.mxu0 0
        %4424 = vmatprep.subr.bf16.mxu0 0
        %4425 = vmatpush1.bf16.msra.mxu0 0
        %4426 = vmatprep.subr.bf16.mxu0 0
        %4427 = vmatpush1.bf16.msra.mxu0 0
        %4428 = vmatprep.subr.bf16.mxu0 0
        %4429 = vmatpush1.bf16.msra.mxu0 0
        %4430 = vmatprep.subr.bf16.mxu0 0
        %4431 = vmatpush1.bf16.msra.mxu0 0
        %4432 = vmatprep.subr.bf16.mxu0 0
        %4433 = vmatpush1.bf16.msra.mxu0 0
        %4434 = vmatprep.mubr.bf16.mxu0 0
        %4435 = vmatmul.mubr.bf16.gmra.mrb[0].mxu0 %v4400
        %v4436 = vpop.f32.mrb[0].mxu0
        %v4437 = vadd.f32 %v4374, %v4436
        %v4438 = vpop.f32.mrb[0].mxu0
        %v4439 = vpop.f32.mrb[0].mxu0
        %v4440 = vadd.f32 %v4374, %v4439
        %v4441 = vpop.f32.mrb[0].mxu0
        %4442 = vdwg.mxu0
        %v4443 = vtanh.pop %v4437
        %v4444 = vtanh.pop %v4440
        %v4445 = vld [vmem:[%s9 + $0x12] sm:$0x1]
        %v4446 = vlaneseq
        %v4447 = vshrl.u32 %v4446, 7
        %v4448 = vsub.s32 0, %v4447
        %v4449 = vrot.slane %v4445, %v4448
        %v4450 = vmul.f32 %v4443, %v4449
        %v4451 = vmul.f32 %v4444, %v4449
        %v4452 = vsel %vm912, %v4450, 0.0
        %4453 = vadd.xlane.f32.xlu0 %v4452
        %v4454 = vpop.xlane.xlu0 %4453
        %v4455 = vsel %vm912, %v4451, 0.0
        %4456 = vadd.xlane.f32.xlu0 %v4455
        %v4457 = vpop.xlane.xlu0 %4456
        %v4460 = vlaneseq
        %v4461 = vshrl.u32 %v4460, 7
        %v4462 = vsub.s32 %v2390, %v4461
        %v4463 = vrot.slane %v4454, %v4462
        %v4464 = vlaneseq
        %v4465 = vshrl.u32 %v4464, 7
        %v4466 = vsub.s32 %v2390, %v4465
        %v4467 = vrot.slane %v4457, %v4466
        %v4468 = vsel %vm2537, %v4467, %v4463
        %vm4470 = vcmask 58368
        %v4471 = vsel %vm4470, %v4468, -inf
        %4472 = vmax.xlane.f32.xlu0 %v4471
        %v4473 = vpop.xlane.xlu0 %4472
        %v4475 = vlaneseq
        %v4476 = vshrl.u32 %v4475, 7
        %v4477 = vsub.s32 0, %v4476
        %v4478 = vrot.slane %v4473, %v4477
        %v4479 = vlaneseq
        %v4480 = vshrl.u32 %v4479, 7
        %v4481 = vsub.s32 1, %v4480
        %v4482 = vrot.slane %v4473, %v4481
        %v4485 = vsub.f32 %v4454, %v4478
        %v4486 = vsub.f32 %v4457, %v4482
        %v4487 = vmul.f32 %v4485, 1.442695
        %v4488 = vpow.pop %v4487
        %v4489 = vmul.f32 %v4486, 1.442695
        %v4490 = vpow.pop %v4489
        %4493 = vset.pattern.permute.xlu0 0
        %4494 = vperm.xlu0 %4493, %v4488
        %v4495 = vpop.permute.xlu0 %4494
        %4496 = vset.pattern.permute.xlu0 0
        %4497 = vperm.xlu0 %4496, %v4490
        %v4498 = vpop.permute.xlu0 %4497
        %v4499 = vlaneseq
        %v4500 = vshrl.u32 %v4499, 7
        %v4501 = vsub.s32 %v2390, %v4500
        %v4502 = vrot.slane %v4495, %v4501
        %v4503 = vlaneseq
        %v4504 = vshrl.u32 %v4503, 7
        %v4505 = vsub.s32 %v2390, %v4504
        %v4506 = vrot.slane %v4498, %v4505
        %v4507 = vsel %vm2537, %v4506, %v4502
        %v4509 = vsel %vm4470, %v4507, 0.0
        %4510 = vadd.xlane.f32.xlu0 %v4509
        %v4511 = vpop.xlane.xlu0 %4510
        %v4512 = vrcp.pop %v4511
        %v4514 = vlaneseq
        %v4515 = vshrl.u32 %v4514, 7
        %v4516 = vsub.s32 0, %v4515
        %v4517 = vrot.slane %v4512, %v4516
        %v4518 = vlaneseq
        %v4519 = vshrl.u32 %v4518, 7
        %v4520 = vsub.s32 1, %v4519
        %v4521 = vrot.slane %v4512, %v4520
        %v4524 = vmul.f32 %v4488, %v4517
        %v4525 = vmul.f32 %v4490, %v4521
        %4527 = vset.pattern.permute.xlu0 0
        %4528 = vperm.xlu0 %4527, %v4524
        %v4529 = vpop.permute.xlu0 %4528
        %4532 = vset.pattern.permute.xlu0 0
        %4533 = vperm.xlu0 %4532, %v4525
        %v4534 = vpop.permute.xlu0 %4533
        %v4536 = vmul.f32 %v4529, %v4359
        %v4537 = vmul.f32 %v4534, %v4360
        %v4538 = vsel %vm1982, %v4536, 0.0
        %v4539 = vrot.slane %v4538, 4
        %v4540 = vadd.f32 %v4538, %v4539
        %v4541 = vrot.slane %v4540, 2
        %v4542 = vadd.f32 %v4540, %v4541
        %v4543 = vrot.slane %v4542, 1
        %v4544 = vadd.f32 %v4542, %v4543
        %v4545 = vsel %vm1982, %v4537, 0.0
        %v4546 = vrot.slane %v4545, 4
        %v4547 = vadd.f32 %v4545, %v4546
        %v4548 = vrot.slane %v4547, 2
        %v4549 = vadd.f32 %v4547, %v4548
        %v4550 = vrot.slane %v4549, 1
        %v4551 = vadd.f32 %v4549, %v4550
        %v4552 = vld [vmem:[%s9 + $0xb] sm:$0x1]
        %v4553 = vld [vmem:[%s9 + $0xc] sm:$0x1]
        %v4556 = vsel %vm2537, %v4551, %v4544
        %vm4558 = vcmask 517120
        %v4559 = vsel %vm4558, %v4556, 0.0
        %4560 = vadd.xlane.f32.xlu0 %v4559
        %v4561 = vpop.xlane.xlu0 %4560
        %v4562 = vmul.f32 %v4561, %v3531
        %v4564 = vrot.slane %v4562, 1
        %v4567 = vsub.f32 %v4544, %v4562
        %v4568 = vsub.f32 %v4551, %v4564
        %v4569 = vmul.f32 %v4567, %v4567
        %v4570 = vmul.f32 %v4568, %v4568
        %v4573 = vrot.slane %v4570, 7
        %v4574 = vsel %vm2537, %v4573, %v4569
        %v4576 = vsel %vm4558, %v4574, 0.0
        %4577 = vadd.xlane.f32.xlu0 %v4576
        %v4578 = vpop.xlane.xlu0 %4577
        %v4579 = vmul.f32 %v4578, %v3531
        %v4580 = vadd.f32 %v4579, 1e-05
        %v4581 = vrsqrt.pop %v4580
        %v4583 = vrot.slane %v4581, 1
        %v4586 = vmul.f32 %v4567, %v4581
        %v4587 = vmul.f32 %v4568, %v4583
        %v4588 = vlaneseq
        %v4589 = vshrl.u32 %v4588, 7
        %v4590 = vsub.s32 0, %v4589
        %v4591 = vrot.slane %v4552, %v4590
        %v4592 = vmul.f32 %v4586, %v4591
        %v4593 = vmul.f32 %v4587, %v4591
        %v4594 = vlaneseq
        %v4595 = vshrl.u32 %v4594, 7
        %v4596 = vsub.s32 0, %v4595
        %v4597 = vrot.slane %v4553, %v4596
        %v4598 = vadd.f32 %v4592, %v4597
        %v4599 = vadd.f32 %v4593, %v4597
        %v4602 = vrot.slane %v4599, 7
        %v4603 = vsel %vm2537, %v4602, %v4598
        %4605 = vst.msk [vmem:[%s387] sm:$0x3] %vm4558, %v4603
        %s4606 = sand.u32 %s257, 1
        %s4607 = scalar_lea.sflag [#allocation3], %s4606
        %s4608 = sand.u32 %s257, 1
        %s4609 = smul.addr %s4608, 2
        %s4610 = scalar_lea.vmem [#allocation2], %s4609
        // Predicated region
        $region61: #{tpu_custom_call.1} parent=59 // pred_check
          %p4611 = pneg %p267
        $region62: #{tpu_custom_call.1} parent=59 // pred_check_branch
          %4613 = sbr.rel (%p4611) target = $region64
        $region63: #{tpu_custom_call.1} parent=59 // pred_region
          %s4615 = ssub.s32 32, 32
          %4616 = vsyncadd %s4607, %s4615
          %s4617 = smul.addr %s24, 32
          %s4618 = scalar_lea.hbm %s10, %s4617
          %s4620 = sshll.u32 %s4610, 4
          %s4621 = int_to_ptr.vmem [resolvable:$true] %s4620
          %4623 = dma.vmem_to_hbm [thread:$0]  %s4621, 32, %s4618, %s4607
        $region64: #{tpu_custom_call.1} parent=59 // pred_fallthru
          _
      $region60: #{tpu_custom_call.1} parent=5 // pred_fallthru
        _
      %p4624 = scmp.le.s32.totalorder 2, %s19
      // Predicated region
      $region65: #{tpu_custom_call.1} parent=5 // pred_check
        %p4625 = pneg %p4624
      $region66: #{tpu_custom_call.1} parent=5 // pred_check_branch
        %4627 = sbr.rel (%p4625) target = $region68
      $region67: #{tpu_custom_call.1} parent=5 // pred_region
        %s4628 = ssub.s32 %s19, 2
        // Predicated region
        $region69: #{tpu_custom_call.1} parent=67 // pred_check
          %p4629 = pneg %p273
        $region70: #{tpu_custom_call.1} parent=67 // pred_check_branch
          %4631 = sbr.rel (%p4629) target = $region72
        $region71: #{tpu_custom_call.1} parent=67 // pred_region
          %s4632 = sand.u32 %s258, 1
          %s4633 = scalar_lea.sflag [#allocation3], %s4632
          %s4634 = sand.u32 %s258, 1
          %s4635 = smul.addr %s4634, 2
          %s4636 = scalar_lea.vmem [#allocation2], %s4635
          %4637 = dma.done %s4633, 32
        $region72: #{tpu_custom_call.1} parent=67 // pred_fallthru
          _
      $region68: #{tpu_custom_call.1} parent=5 // pred_fallthru
        _
    $region6: #{tpu_custom_call.1} parent=1 // loop_footer
      %s23 = sadd.s32 1, %s19
    $region7: #{tpu_custom_call.1} parent=1 // loop_footer_branch
      %18 = sbr.rel target = $region3
    $region8: #{tpu_custom_call.1} parent=1 // loop_exit
      _
    %4638 = vsyncpa [#allocation3], 1
    %s4639 = scalar_lea.sflag [#allocation3], 1
    %4640 = vsyncpa %s4639, 1

</llo_original>
